<compile_context>
chip_gen: v6e
topology: v6e:2x2x1
jax: 0.10.0
libtpu: 0.0.40
codegen_flags: <defaults>
</compile_context>

<pallas_src>
import functools

import jax
import jax.numpy as jnp
from jax import lax
from jax.experimental import pallas as pl
from jax.experimental.pallas import tpu as pltpu

_PI = 3.141592653589793
_TB = 8        # batch rows per tile (sublane aligned)
_CHUNK = 128   # negatives per pipelined gather chunk (lane aligned output stores)


# --------------------------- per-chunk score functions ------------------------
# base : (TB, Db)            combined positive-side vector (precomputed in wrapper)
# negs : tuple of (TB, CHUNK, w) gathered entity-row components
# return (TB, CHUNK) scores

def _transe_score(base, negs, *, gamma):
    (neg,) = negs
    diff = base[:, None, :] - neg
    return gamma - jnp.sum(jnp.abs(diff), axis=-1)


def _distmult_score(base, negs):
    (neg,) = negs
    return jnp.sum(base[:, None, :] * neg, axis=-1)


def _rotate_score(base, negs, *, gamma, half):
    re_neg, im_neg = negs                       # (TB, CHUNK, half) each, half % 128 == 0
    re_d = base[:, None, :half] - re_neg
    im_d = base[:, None, half:] - im_neg
    return gamma - jnp.sum(jnp.sqrt(re_d * re_d + im_d * im_d), axis=-1)

# TODO(synk): ComplEx / PairRE / TripleRE / TransERR scoring kernels not implemented.


# ------------------------------- fused-gather kernel --------------------------

def _kge_gather_kernel(idx_ref, base_ref, ent_ref, out_ref, *scratch,
                       n_total, cpt, comp_offsets, comp_width, score_fn):
    """One (negative-tile, batch-tile) grid cell.

    idx_ref  : (b_pad * n_pad,) int32 in SMEM (scalar prefetch) - negative entity ids
    base_ref : (TB, Db) f32 VMEM      - positive-side combination (resident per tile)
    ent_ref  : (nentity, Dt) f32      - entity table, memory_space=pl.ANY (HBM)
    out_ref  : (TB, TN) f32 VMEM      - scores, TN = cpt * 128 (lane dense)
    scratch  : ncomp gather buffers (2, TB, CHUNK, comp_width) f32  +  DMA sem (2,)
    """
    *bufs, sem = scratch
    ncomp = len(bufs)
    jn = pl.program_id(0)
    ib = pl.program_id(1)
    row0 = ib * _TB
    col0 = jn * (cpt * _CHUNK)

    def issue(chunk_idx, slot):
        # Gather TB*CHUNK entity rows (one async copy per row per component).
        cbase = col0 + chunk_idx * _CHUNK
        for b in range(_TB):                               # static unroll (8)
            flat0 = (row0 + b) * n_total + cbase

            def body(k, carry, _flat0=flat0, _b=b):
                e = idx_ref[_flat0 + k]
                for j in range(ncomp):
                    pltpu.make_async_copy(
                        ent_ref.at[e, pl.ds(comp_offsets[j], comp_width)],
                        bufs[j].at[slot, _b, k],
                        sem.at[slot],
                    ).start()
                return carry

            lax.fori_loop(0, _CHUNK, body, 0)

    def wait(slot):
        # Aggregate wait: every row copy of this chunk signals sem[slot]; a descriptor
        # spanning the whole slot buffer matches the total byte count (paged-attention
        # multi-copy / single-wait pattern).
        for j in range(ncomp):
            pltpu.make_async_copy(bufs[j].at[slot], bufs[j].at[slot],
                                  sem.at[slot]).wait()

    issue(0, 0)
    base = base_ref[...]

    def step(c, carry):
        slot = c & 1
        wait(slot)

        @pl.when(c + 1 < cpt)
        def _():
            issue(c + 1, 1 - slot)      # prefetch next chunk while scoring this one

        negs = tuple(bufs[j][slot] for j in range(ncomp))
        col = pl.multiple_of(c * _CHUNK, _CHUNK)
        out_ref[:, pl.ds(col, _CHUNK)] = score_fn(base, negs)
        return carry

    lax.fori_loop(0, cpt, step, 0)


# --------------------------------- tiling helpers ------------------------------

def _round_up(x, m):
    return ((x + m - 1) // m) * m


def _pad_last(x, width):
    pad = width - x.shape[-1]
    if pad == 0:
        return x
    return jnp.pad(x, ((0, 0), (0, pad)))


def _largest_divisor_leq(m, cap):
    for d in range(min(cap, m), 0, -1):
        if m % d == 0:
            return d
    return 1


def _pick_layout(n):
    """Pad N only to the 128-lane chunk size, then split the padded range into grid
    tiles that exactly divide it (no over-padding) while keeping >= ~8 chunks per tile
    so the in-kernel gather pipeline has DMA/compute overlap.  Multiple N tiles let
    megacore (v7x) shard the N axis."""
    n_pad = _round_up(max(n, 1), _CHUNK)
    m = n_pad // _CHUNK
    n_tiles = _largest_divisor_leq(m, max(1, m // 8))
    cpt = m // n_tiles                                   # chunks per tile
    return n_pad, n_tiles, cpt


def _vmem_limit_bytes(d_total, tn, base_width):
    need = 5 * _TB * _CHUNK * d_total * 4                 # dbl-buffered gather + ~3 temps
    need += 2 * _TB * tn * 4 + 2 * _TB * base_width * 4   # pipelined out / base blocks
    need += 2 << 20
    # Hard cap at 48 MiB: safe per-TensorCore on v7x (64 MiB physical), fine elsewhere.
    return int(min(max(need, 16 << 20), 48 << 20))


# ---------------------------------- model wrapper ------------------------------

def init_params(key, model_name, nentity, nrelation, hidden_dim, gamma,
                double_entity_embedding=False, double_relation_embedding=False,
                triple_relation_embedding=False):
    epsilon = 2.0
    embedding_range = (gamma + epsilon) / hidden_dim
    entity_dim = hidden_dim * 2 if double_entity_embedding else hidden_dim
    # NOTE: mirrors the PyTorch code exactly -- the second assignment OVERWRITES the
    # double_relation_embedding one (known quirk of the reference implementation).
    relation_dim = hidden_dim * 2 if double_relation_embedding else hidden_dim
    relation_dim = hidden_dim * 3 if triple_relation_embedding else hidden_dim
    if model_name == 'RotatE' and (not double_entity_embedding or double_relation_embedding):
        raise ValueError('RotatE should use --double_entity_embedding')
    k1, k2 = jax.random.split(key)
    ent = jax.random.uniform(k1, (nentity, entity_dim), jnp.float32,
                             -embedding_range, embedding_range)
    relt = jax.random.uniform(k2, (nrelation, relation_dim), jnp.float32,
                              -embedding_range, embedding_range)
    return {
        'model_name': model_name,
        'entity_embedding': ent,
        'relation_embedding': relt,
        'gamma': float(gamma),
        'embedding_range': float(embedding_range),
        'u': 0.125,
    }


def _rotate_base_parts(pos, rel, emb_range, head_batch):
    """Rotated positive side as separate (B, h) real / imaginary parts."""
    h = rel.shape[-1]
    phase = rel / (emb_range / _PI)
    re_r, im_r = jnp.cos(phase), jnp.sin(phase)
    re_p, im_p = pos[:, :h], pos[:, h:]
    if head_batch:                          # pos is the tail side
        re_b = re_r * re_p + im_r * im_p
        im_b = re_r * im_p - im_r * re_p
    else:                                   # pos is the head side
        re_b = re_p * re_r - im_p * im_r
        im_b = re_p * im_r + im_p * re_r
    return re_b, im_b


def _plain_score(name, head, relation, tail, gamma, emb_range, mode):
    """Plain-JAX scoring (mirrors the PyTorch formulas); used for mode='single'."""
    if name == 'TransE':
        score = head + (relation - tail) if mode == 'head-batch' else head + relation - tail
        return gamma - jnp.sum(jnp.abs(score), axis=2)
    if name == 'DistMult':
        score = head * (relation * tail) if mode == 'head-batch' else (head * relation) * tail
        return jnp.sum(score, axis=2)
    if name == 'RotatE':
        re_h, im_h = jnp.split(head, 2, axis=2)
        re_t, im_t = jnp.split(tail, 2, axis=2)
        phase = relation / (emb_range / _PI)
        re_r, im_r = jnp.cos(phase), jnp.sin(phase)
        if mode == 'head-batch':
            re_s = re_r * re_t + im_r * im_t - re_h
            im_s = re_r * im_t - im_r * re_t - im_h
        else:
            re_s = re_h * re_r - im_h * im_r - re_t
            im_s = re_h * im_r + im_h * re_r - im_t
        return gamma - jnp.sum(jnp.sqrt(re_s * re_s + im_s * im_s), axis=2)
    raise ValueError('model %s not supported' % name)


def kge_forward(params, sample, mode='single'):
    name = params['model_name']
    ent = params['entity_embedding']
    relt = params['relation_embedding']
    gamma = params['gamma']
    emb_range = params['embedding_range']

    if mode == 'single':
        # N == 1: one lane wide; pallas_call fixed overhead dominates -> plain XLA.
        head = jnp.take(ent, sample[:, 0], axis=0)[:, None, :]
        relation = jnp.take(relt, sample[:, 1], axis=0)[:, None, :]
        tail = jnp.take(ent, sample[:, 2], axis=0)[:, None, :]
        return _plain_score(name, head, relation, tail, gamma, emb_range, mode)

    if mode == 'head-batch':
        tail_part, head_part = sample
        pos_idx, rel_idx, neg_idx = tail_part[:, 2], tail_part[:, 1], head_part
        head_batch = True
    elif mode == 'tail-batch':
        head_part, tail_part = sample
        pos_idx, rel_idx, neg_idx = head_part[:, 0], head_part[:, 1], tail_part
        head_batch = False
    else:
        raise ValueError('mode %s not supported' % mode)

    b, n = neg_idx.shape
    b_pad = _round_up(b, _TB)
    n_pad, n_tiles, cpt = _pick_layout(n)
    tn = cpt * _CHUNK

    pos_idx = pos_idx.astype(jnp.int32)
    rel_idx = rel_idx.astype(jnp.int32)
    neg_idx = neg_idx.astype(jnp.int32)
    # Pad index arrays (cheap); padded rows/cols point at entity 0 (valid) and the
    # corresponding scores are sliced off at the end.
    if b_pad != b:
        pos_idx = jnp.pad(pos_idx, (0, b_pad - b))
        rel_idx = jnp.pad(rel_idx, (0, b_pad - b))
        neg_idx = jnp.pad(neg_idx, ((0, b_pad - b), (0, 0)))
    if n_pad != n:
        neg_idx = jnp.pad(neg_idx, ((0, 0), (0, n_pad - n)))

    pos = jnp.take(ent, pos_idx, axis=0)            # (b_pad, De)  O(B*D), cheap
    rel = jnp.take(relt, rel_idx, axis=0)           # (b_pad, Dr)

    # Hoist the O(B*D) positive-side combination (incl. RotatE sin/cos) out of the
    # per-negative hot loop, and lane-pad everything to multiples of 128 so all
    # in-kernel DMAs / splits / stores are unmasked and tile-aligned.  Zero lane
    # padding contributes exactly 0 to every score function used here.
    if name == 'TransE':
        base = (pos - rel) if head_batch else (pos + rel)
        d_eff = _round_up(base.shape[1], 128)
        ent_prep = _pad_last(ent, d_eff)
        base = _pad_last(base, d_eff)
        comp_offsets, comp_width = (0,), d_eff
        score_fn = functools.partial(_transe_score, gamma=gamma)
    elif name == 'DistMult':
        base = (rel * pos) if head_batch else (pos * rel)
        d_eff = _round_up(base.shape[1], 128)
        ent_prep = _pad_last(ent, d_eff)
        base = _pad_last(base, d_eff)
        comp_offsets, comp_width = (0,), d_eff
        score_fn = _distmult_score
    elif name == 'RotatE':
        h = relt.shape[1]
        if ent.shape[1] != 2 * h:
            raise ValueError('RotatE expects entity_dim == 2 * relation_dim')
        re_b, im_b = _rotate_base_parts(pos, rel, emb_range, head_batch)
        h_eff = _round_up(h, 128)
        if h_eff != h:
            ent_prep = jnp.concatenate(
                [_pad_last(ent[:, :h], h_eff), _pad_last(ent[:, h:], h_eff)], axis=1)
            re_b, im_b = _pad_last(re_b, h_eff), _pad_last(im_b, h_eff)
        else:
            ent_prep = ent                  # halves already lane-aligned: zero-copy
        base = jnp.concatenate([re_b, im_b], axis=1)        # (b_pad, 2*h_eff)
        comp_offsets, comp_width = (0, h_eff), h_eff
        score_fn = functools.partial(_rotate_score, gamma=gamma, half=h_eff)
    else:
        raise ValueError('model %s not supported (Pallas port)' % name)

    base = base.astype(jnp.float32)
    ent_prep = ent_prep.astype(jnp.float32)
    base_width = base.shape[1]
    d_total = comp_width * len(comp_offsets)
    vmem_limit = _vmem_limit_bytes(d_total, tn, base_width)

    kernel = functools.partial(
        _kge_gather_kernel, n_total=n_pad, cpt=cpt,
        comp_offsets=comp_offsets, comp_width=comp_width, score_fn=score_fn)

    scratch_shapes = [pltpu.VMEM((2, _TB, _CHUNK, comp_width), jnp.float32)
                      for _ in comp_offsets]
    scratch_shapes.append(pltpu.SemaphoreType.DMA((2,)))

    scores = pl.pallas_call(
        kernel,
        out_shape=jax.ShapeDtypeStruct((b_pad, n_pad), jnp.float32),
        grid_spec=pltpu.PrefetchScalarGridSpec(
            num_scalar_prefetch=1,                     # neg_idx -> SMEM
            grid=(n_tiles, b_pad // _TB),              # N tiles first (megacore sharding)
            in_specs=[
                pl.BlockSpec((_TB, base_width), lambda jn, ib, idx: (ib, 0)),
                pl.BlockSpec(memory_space=pl.ANY),     # entity table stays in HBM
            ],
            out_specs=pl.BlockSpec((_TB, tn), lambda jn, ib, idx: (ib, jn)),
            scratch_shapes=scratch_shapes,
        ),
        compiler_params=pltpu.CompilerParams(
            dimension_semantics=("parallel", "parallel"),
            vmem_limit_bytes=vmem_limit,
        ),
    )(neg_idx.reshape(-1), base, ent_prep)

    return scores[:b, :n]


# ------------------------------- pure-JAX reference ----------------------------

def ref_forward(params, sample, mode='single'):
    ent = params['entity_embedding']
    relt = params['relation_embedding']
    if mode == 'single':
        head = jnp.take(ent, sample[:, 0], axis=0)[:, None, :]
        relation = jnp.take(relt, sample[:, 1], axis=0)[:, None, :]
        tail = jnp.take(ent, sample[:, 2], axis=0)[:, None, :]
    elif mode == 'head-batch':
        tail_part, head_part = sample
        B, N = head_part.shape
        head = jnp.take(ent, head_part.reshape(-1), axis=0).reshape(B, N, -1)
        relation = jnp.take(relt, tail_part[:, 1], axis=0)[:, None, :]
        tail = jnp.take(ent, tail_part[:, 2], axis=0)[:, None, :]
    else:
        head_part, tail_part = sample
        B, N = tail_part.shape
        head = jnp.take(ent, head_part[:, 0], axis=0)[:, None, :]
        relation = jnp.take(relt, head_part[:, 1], axis=0)[:, None, :]
        tail = jnp.take(ent, tail_part.reshape(-1), axis=0).reshape(B, N, -1)
    return _plain_score(params['model_name'], head, relation, tail,
                        params['gamma'], params['embedding_range'], mode)


# --------------------------------------- main ----------------------------------

if __name__ == "__main__":
    nentity, nrelation, hidden_dim, gamma = 64, 8, 32, 12.0
    B, N = 12, 2000   # small batch, eval-style negative set (exercises the pipeline)

    root = jax.random.PRNGKey(0)
    k_par, k_samp = jax.random.split(root)

    params_transe = init_params(k_par, 'TransE', nentity, nrelation, hidden_dim, gamma)
    params_distmult = dict(params_transe, model_name='DistMult')
    params_rotate = init_params(k_par, 'RotatE', nentity, nrelation, hidden_dim, gamma,
                                double_entity_embedding=True)

    k1, k2, k3, k4 = jax.random.split(k_samp, 4)
    positive_sample = jnp.stack(
        [jax.random.randint(k1, (B,), 0, nentity),
         jax.random.randint(k2, (B,), 0, nrelation),
         jax.random.randint(k3, (B,), 0, nentity)], axis=1).astype(jnp.int32)
    negative_sample = jax.random.randint(k4, (B, N), 0, nentity).astype(jnp.int32)

    cases = [
        (params_transe, positive_sample, 'single'),
        (params_transe, (positive_sample, negative_sample), 'tail-batch'),
        (params_transe, (positive_sample, negative_sample), 'head-batch'),
        (params_distmult, positive_sample, 'single'),
        (params_distmult, (positive_sample, negative_sample), 'tail-batch'),
        (params_distmult, (positive_sample, negative_sample), 'head-batch'),
        (params_rotate, positive_sample, 'single'),
        (params_rotate, (positive_sample, negative_sample), 'tail-batch'),
        (params_rotate, (positive_sample, negative_sample), 'head-batch'),
    ]

    for prm, samp, mode in cases:
        out = jax.block_until_ready(kge_forward(prm, samp, mode))
        ref = jax.block_until_ready(ref_forward(prm, samp, mode))
        assert out.shape == ref.shape, (prm['model_name'], mode, out.shape, ref.shape)
        assert jnp.allclose(out, ref, atol=1e-4, rtol=1e-4), (
            prm['model_name'], mode, float(jnp.max(jnp.abs(out - ref))))

    print("KERNEL_OK")
</pallas_src>

<mosaic_0001>
module attributes {stable_mosaic.version = 11 : i64} {
  func.func @_kge_gather_kernel(%arg0: i32, %arg1: i32, %arg2: memref<32768xi32, #tpu.memory_space<smem>>, %arg3: memref<8x128xf32, #tpu.memory_space<vmem>>, %arg4: memref<64x128xf32, #tpu.memory_space<any>>, %arg5: memref<8x1024xf32, #tpu.memory_space<vmem>>, %arg6: memref<2x8x128x128xf32, #tpu.memory_space<vmem>>, %arg7: memref<2x!tpu.dma_semaphore, #tpu.memory_space<semaphore_mem>>) attributes {dimension_semantics = [#tpu.dimension_semantics<parallel>, #tpu.dimension_semantics<parallel>], iteration_bounds = array<i64: 2, 2>, scalar_prefetch = 1 : i64, scratch_operands = 2 : i64, tpu.core_type = #tpu.core_type<tc>, window_params = [{transform_indices = @transform_0, window_bounds = array<i64: 8, 128>}, {}, {transform_indices = @transform_2, window_bounds = array<i64: 8, 1024>}]} {
    %c8_i32 = arith.constant 8 : i32
    %0 = arith.muli %arg1, %c8_i32 : i32
    %c1024_i32 = arith.constant 1024 : i32
    %1 = arith.muli %arg0, %c1024_i32 : i32
    %c0_i32 = arith.constant 0 : i32
    %2 = arith.addi %1, %c0_i32 : i32
    %c0_i32_0 = arith.constant 0 : i32
    %3 = arith.addi %0, %c0_i32_0 : i32
    %c2048_i32 = arith.constant 2048 : i32
    %4 = arith.muli %3, %c2048_i32 : i32
    %5 = arith.addi %4, %2 : i32
    %c0_i32_1 = arith.constant 0 : i32
    %c128_i32 = arith.constant 128 : i32
    %6 = arith.addi %c0_i32_1, %c128_i32 : i32
    %c1_i32 = arith.constant 1 : i32
    scf.for %arg8 = %c0_i32_1 to %6 step %c1_i32  : i32 {
      %37 = arith.addi %5, %arg8 : i32
      %38 = arith.index_cast %37 : i32 to index
      %39 = memref.load %arg2[%38] : memref<32768xi32, #tpu.memory_space<smem>>
      %c0_i32_44 = arith.constant 0 : i32
      %c0_i32_45 = arith.constant 0 : i32
      %c0_i32_46 = arith.constant 0 : i32
      %c0_i32_47 = arith.constant 0 : i32
      %40 = tpu.memref_slice %arg4[%39, %c0_i32_47] : memref<64x128xf32, #tpu.memory_space<any>> -> memref<1x128xf32, #tpu.memory_space<any>>
      %41 = tpu.memref_squeeze %40 : memref<1x128xf32, #tpu.memory_space<any>> -> memref<128xf32, #tpu.memory_space<any>>
      %c0_i32_48 = arith.constant 0 : i32
      %42 = tpu.memref_slice %arg6[%c0_i32_44, %c0_i32_45, %arg8, %c0_i32_48] : memref<2x8x128x128xf32, #tpu.memory_space<vmem>> -> memref<1x1x1x128xf32, #tpu.memory_space<vmem>>
      %43 = tpu.memref_squeeze %42 : memref<1x1x1x128xf32, #tpu.memory_space<vmem>> -> memref<128xf32, #tpu.memory_space<vmem>>
      %44 = tpu.memref_slice %arg7[%c0_i32_46] : memref<2x!tpu.dma_semaphore, #tpu.memory_space<semaphore_mem>> -> memref<1x!tpu.dma_semaphore, #tpu.memory_space<semaphore_mem>>
      %45 = tpu.memref_squeeze %44 : memref<1x!tpu.dma_semaphore, #tpu.memory_space<semaphore_mem>> -> memref<!tpu.dma_semaphore, #tpu.memory_space<semaphore_mem>>
      tpu.enqueue_dma source(%41 : memref<128xf32, #tpu.memory_space<any>>) target(%43 : memref<128xf32, #tpu.memory_space<vmem>>) target_semaphore(%45 : memref<!tpu.dma_semaphore, #tpu.memory_space<semaphore_mem>>)
    }
    %c128_i32_2 = arith.constant 128 : i32
    %c1_i32_3 = arith.constant 1 : i32
    %7 = arith.addi %0, %c1_i32_3 : i32
    %c2048_i32_4 = arith.constant 2048 : i32
    %8 = arith.muli %7, %c2048_i32_4 : i32
    %9 = arith.addi %8, %2 : i32
    %c0_i32_5 = arith.constant 0 : i32
    %c128_i32_6 = arith.constant 128 : i32
    %10 = arith.addi %c0_i32_5, %c128_i32_6 : i32
    %c1_i32_7 = arith.constant 1 : i32
    scf.for %arg8 = %c0_i32_5 to %10 step %c1_i32_7  : i32 {
      %37 = arith.addi %9, %arg8 : i32
      %38 = arith.index_cast %37 : i32 to index
      %39 = memref.load %arg2[%38] : memref<32768xi32, #tpu.memory_space<smem>>
      %c0_i32_44 = arith.constant 0 : i32
      %c1_i32_45 = arith.constant 1 : i32
      %c0_i32_46 = arith.constant 0 : i32
      %c0_i32_47 = arith.constant 0 : i32
      %40 = tpu.memref_slice %arg4[%39, %c0_i32_47] : memref<64x128xf32, #tpu.memory_space<any>> -> memref<1x128xf32, #tpu.memory_space<any>>
      %41 = tpu.memref_squeeze %40 : memref<1x128xf32, #tpu.memory_space<any>> -> memref<128xf32, #tpu.memory_space<any>>
      %c0_i32_48 = arith.constant 0 : i32
      %42 = tpu.memref_slice %arg6[%c0_i32_44, %c1_i32_45, %arg8, %c0_i32_48] : memref<2x8x128x128xf32, #tpu.memory_space<vmem>> -> memref<1x1x1x128xf32, #tpu.memory_space<vmem>>
      %43 = tpu.memref_squeeze %42 : memref<1x1x1x128xf32, #tpu.memory_space<vmem>> -> memref<128xf32, #tpu.memory_space<vmem>>
      %44 = tpu.memref_slice %arg7[%c0_i32_46] : memref<2x!tpu.dma_semaphore, #tpu.memory_space<semaphore_mem>> -> memref<1x!tpu.dma_semaphore, #tpu.memory_space<semaphore_mem>>
      %45 = tpu.memref_squeeze %44 : memref<1x!tpu.dma_semaphore, #tpu.memory_space<semaphore_mem>> -> memref<!tpu.dma_semaphore, #tpu.memory_space<semaphore_mem>>
      tpu.enqueue_dma source(%41 : memref<128xf32, #tpu.memory_space<any>>) target(%43 : memref<128xf32, #tpu.memory_space<vmem>>) target_semaphore(%45 : memref<!tpu.dma_semaphore, #tpu.memory_space<semaphore_mem>>)
    }
    %c128_i32_8 = arith.constant 128 : i32
    %c2_i32 = arith.constant 2 : i32
    %11 = arith.addi %0, %c2_i32 : i32
    %c2048_i32_9 = arith.constant 2048 : i32
    %12 = arith.muli %11, %c2048_i32_9 : i32
    %13 = arith.addi %12, %2 : i32
    %c0_i32_10 = arith.constant 0 : i32
    %c128_i32_11 = arith.constant 128 : i32
    %14 = arith.addi %c0_i32_10, %c128_i32_11 : i32
    %c1_i32_12 = arith.constant 1 : i32
    scf.for %arg8 = %c0_i32_10 to %14 step %c1_i32_12  : i32 {
      %37 = arith.addi %13, %arg8 : i32
      %38 = arith.index_cast %37 : i32 to index
      %39 = memref.load %arg2[%38] : memref<32768xi32, #tpu.memory_space<smem>>
      %c0_i32_44 = arith.constant 0 : i32
      %c2_i32_45 = arith.constant 2 : i32
      %c0_i32_46 = arith.constant 0 : i32
      %c0_i32_47 = arith.constant 0 : i32
      %40 = tpu.memref_slice %arg4[%39, %c0_i32_47] : memref<64x128xf32, #tpu.memory_space<any>> -> memref<1x128xf32, #tpu.memory_space<any>>
      %41 = tpu.memref_squeeze %40 : memref<1x128xf32, #tpu.memory_space<any>> -> memref<128xf32, #tpu.memory_space<any>>
      %c0_i32_48 = arith.constant 0 : i32
      %42 = tpu.memref_slice %arg6[%c0_i32_44, %c2_i32_45, %arg8, %c0_i32_48] : memref<2x8x128x128xf32, #tpu.memory_space<vmem>> -> memref<1x1x1x128xf32, #tpu.memory_space<vmem>>
      %43 = tpu.memref_squeeze %42 : memref<1x1x1x128xf32, #tpu.memory_space<vmem>> -> memref<128xf32, #tpu.memory_space<vmem>>
      %44 = tpu.memref_slice %arg7[%c0_i32_46] : memref<2x!tpu.dma_semaphore, #tpu.memory_space<semaphore_mem>> -> memref<1x!tpu.dma_semaphore, #tpu.memory_space<semaphore_mem>>
      %45 = tpu.memref_squeeze %44 : memref<1x!tpu.dma_semaphore, #tpu.memory_space<semaphore_mem>> -> memref<!tpu.dma_semaphore, #tpu.memory_space<semaphore_mem>>
      tpu.enqueue_dma source(%41 : memref<128xf32, #tpu.memory_space<any>>) target(%43 : memref<128xf32, #tpu.memory_space<vmem>>) target_semaphore(%45 : memref<!tpu.dma_semaphore, #tpu.memory_space<semaphore_mem>>)
    }
    %c128_i32_13 = arith.constant 128 : i32
    %c3_i32 = arith.constant 3 : i32
    %15 = arith.addi %0, %c3_i32 : i32
    %c2048_i32_14 = arith.constant 2048 : i32
    %16 = arith.muli %15, %c2048_i32_14 : i32
    %17 = arith.addi %16, %2 : i32
    %c0_i32_15 = arith.constant 0 : i32
    %c128_i32_16 = arith.constant 128 : i32
    %18 = arith.addi %c0_i32_15, %c128_i32_16 : i32
    %c1_i32_17 = arith.constant 1 : i32
    scf.for %arg8 = %c0_i32_15 to %18 step %c1_i32_17  : i32 {
      %37 = arith.addi %17, %arg8 : i32
      %38 = arith.index_cast %37 : i32 to index
      %39 = memref.load %arg2[%38] : memref<32768xi32, #tpu.memory_space<smem>>
      %c0_i32_44 = arith.constant 0 : i32
      %c3_i32_45 = arith.constant 3 : i32
      %c0_i32_46 = arith.constant 0 : i32
      %c0_i32_47 = arith.constant 0 : i32
      %40 = tpu.memref_slice %arg4[%39, %c0_i32_47] : memref<64x128xf32, #tpu.memory_space<any>> -> memref<1x128xf32, #tpu.memory_space<any>>
      %41 = tpu.memref_squeeze %40 : memref<1x128xf32, #tpu.memory_space<any>> -> memref<128xf32, #tpu.memory_space<any>>
      %c0_i32_48 = arith.constant 0 : i32
      %42 = tpu.memref_slice %arg6[%c0_i32_44, %c3_i32_45, %arg8, %c0_i32_48] : memref<2x8x128x128xf32, #tpu.memory_space<vmem>> -> memref<1x1x1x128xf32, #tpu.memory_space<vmem>>
      %43 = tpu.memref_squeeze %42 : memref<1x1x1x128xf32, #tpu.memory_space<vmem>> -> memref<128xf32, #tpu.memory_space<vmem>>
      %44 = tpu.memref_slice %arg7[%c0_i32_46] : memref<2x!tpu.dma_semaphore, #tpu.memory_space<semaphore_mem>> -> memref<1x!tpu.dma_semaphore, #tpu.memory_space<semaphore_mem>>
      %45 = tpu.memref_squeeze %44 : memref<1x!tpu.dma_semaphore, #tpu.memory_space<semaphore_mem>> -> memref<!tpu.dma_semaphore, #tpu.memory_space<semaphore_mem>>
      tpu.enqueue_dma source(%41 : memref<128xf32, #tpu.memory_space<any>>) target(%43 : memref<128xf32, #tpu.memory_space<vmem>>) target_semaphore(%45 : memref<!tpu.dma_semaphore, #tpu.memory_space<semaphore_mem>>)
    }
    %c128_i32_18 = arith.constant 128 : i32
    %c4_i32 = arith.constant 4 : i32
    %19 = arith.addi %0, %c4_i32 : i32
    %c2048_i32_19 = arith.constant 2048 : i32
    %20 = arith.muli %19, %c2048_i32_19 : i32
    %21 = arith.addi %20, %2 : i32
    %c0_i32_20 = arith.constant 0 : i32
    %c128_i32_21 = arith.constant 128 : i32
    %22 = arith.addi %c0_i32_20, %c128_i32_21 : i32
    %c1_i32_22 = arith.constant 1 : i32
    scf.for %arg8 = %c0_i32_20 to %22 step %c1_i32_22  : i32 {
      %37 = arith.addi %21, %arg8 : i32
      %38 = arith.index_cast %37 : i32 to index
      %39 = memref.load %arg2[%38] : memref<32768xi32, #tpu.memory_space<smem>>
      %c0_i32_44 = arith.constant 0 : i32
      %c4_i32_45 = arith.constant 4 : i32
      %c0_i32_46 = arith.constant 0 : i32
      %c0_i32_47 = arith.constant 0 : i32
      %40 = tpu.memref_slice %arg4[%39, %c0_i32_47] : memref<64x128xf32, #tpu.memory_space<any>> -> memref<1x128xf32, #tpu.memory_space<any>>
      %41 = tpu.memref_squeeze %40 : memref<1x128xf32, #tpu.memory_space<any>> -> memref<128xf32, #tpu.memory_space<any>>
      %c0_i32_48 = arith.constant 0 : i32
      %42 = tpu.memref_slice %arg6[%c0_i32_44, %c4_i32_45, %arg8, %c0_i32_48] : memref<2x8x128x128xf32, #tpu.memory_space<vmem>> -> memref<1x1x1x128xf32, #tpu.memory_space<vmem>>
      %43 = tpu.memref_squeeze %42 : memref<1x1x1x128xf32, #tpu.memory_space<vmem>> -> memref<128xf32, #tpu.memory_space<vmem>>
      %44 = tpu.memref_slice %arg7[%c0_i32_46] : memref<2x!tpu.dma_semaphore, #tpu.memory_space<semaphore_mem>> -> memref<1x!tpu.dma_semaphore, #tpu.memory_space<semaphore_mem>>
      %45 = tpu.memref_squeeze %44 : memref<1x!tpu.dma_semaphore, #tpu.memory_space<semaphore_mem>> -> memref<!tpu.dma_semaphore, #tpu.memory_space<semaphore_mem>>
      tpu.enqueue_dma source(%41 : memref<128xf32, #tpu.memory_space<any>>) target(%43 : memref<128xf32, #tpu.memory_space<vmem>>) target_semaphore(%45 : memref<!tpu.dma_semaphore, #tpu.memory_space<semaphore_mem>>)
    }
    %c128_i32_23 = arith.constant 128 : i32
    %c5_i32 = arith.constant 5 : i32
    %23 = arith.addi %0, %c5_i32 : i32
    %c2048_i32_24 = arith.constant 2048 : i32
    %24 = arith.muli %23, %c2048_i32_24 : i32
    %25 = arith.addi %24, %2 : i32
    %c0_i32_25 = arith.constant 0 : i32
    %c128_i32_26 = arith.constant 128 : i32
    %26 = arith.addi %c0_i32_25, %c128_i32_26 : i32
    %c1_i32_27 = arith.constant 1 : i32
    scf.for %arg8 = %c0_i32_25 to %26 step %c1_i32_27  : i32 {
      %37 = arith.addi %25, %arg8 : i32
      %38 = arith.index_cast %37 : i32 to index
      %39 = memref.load %arg2[%38] : memref<32768xi32, #tpu.memory_space<smem>>
      %c0_i32_44 = arith.constant 0 : i32
      %c5_i32_45 = arith.constant 5 : i32
      %c0_i32_46 = arith.constant 0 : i32
      %c0_i32_47 = arith.constant 0 : i32
      %40 = tpu.memref_slice %arg4[%39, %c0_i32_47] : memref<64x128xf32, #tpu.memory_space<any>> -> memref<1x128xf32, #tpu.memory_space<any>>
      %41 = tpu.memref_squeeze %40 : memref<1x128xf32, #tpu.memory_space<any>> -> memref<128xf32, #tpu.memory_space<any>>
      %c0_i32_48 = arith.constant 0 : i32
      %42 = tpu.memref_slice %arg6[%c0_i32_44, %c5_i32_45, %arg8, %c0_i32_48] : memref<2x8x128x128xf32, #tpu.memory_space<vmem>> -> memref<1x1x1x128xf32, #tpu.memory_space<vmem>>
      %43 = tpu.memref_squeeze %42 : memref<1x1x1x128xf32, #tpu.memory_space<vmem>> -> memref<128xf32, #tpu.memory_space<vmem>>
      %44 = tpu.memref_slice %arg7[%c0_i32_46] : memref<2x!tpu.dma_semaphore, #tpu.memory_space<semaphore_mem>> -> memref<1x!tpu.dma_semaphore, #tpu.memory_space<semaphore_mem>>
      %45 = tpu.memref_squeeze %44 : memref<1x!tpu.dma_semaphore, #tpu.memory_space<semaphore_mem>> -> memref<!tpu.dma_semaphore, #tpu.memory_space<semaphore_mem>>
      tpu.enqueue_dma source(%41 : memref<128xf32, #tpu.memory_space<any>>) target(%43 : memref<128xf32, #tpu.memory_space<vmem>>) target_semaphore(%45 : memref<!tpu.dma_semaphore, #tpu.memory_space<semaphore_mem>>)
    }
    %c128_i32_28 = arith.constant 128 : i32
    %c6_i32 = arith.constant 6 : i32
    %27 = arith.addi %0, %c6_i32 : i32
    %c2048_i32_29 = arith.constant 2048 : i32
    %28 = arith.muli %27, %c2048_i32_29 : i32
    %29 = arith.addi %28, %2 : i32
    %c0_i32_30 = arith.constant 0 : i32
    %c128_i32_31 = arith.constant 128 : i32
    %30 = arith.addi %c0_i32_30, %c128_i32_31 : i32
    %c1_i32_32 = arith.constant 1 : i32
    scf.for %arg8 = %c0_i32_30 to %30 step %c1_i32_32  : i32 {
      %37 = arith.addi %29, %arg8 : i32
      %38 = arith.index_cast %37 : i32 to index
      %39 = memref.load %arg2[%38] : memref<32768xi32, #tpu.memory_space<smem>>
      %c0_i32_44 = arith.constant 0 : i32
      %c6_i32_45 = arith.constant 6 : i32
      %c0_i32_46 = arith.constant 0 : i32
      %c0_i32_47 = arith.constant 0 : i32
      %40 = tpu.memref_slice %arg4[%39, %c0_i32_47] : memref<64x128xf32, #tpu.memory_space<any>> -> memref<1x128xf32, #tpu.memory_space<any>>
      %41 = tpu.memref_squeeze %40 : memref<1x128xf32, #tpu.memory_space<any>> -> memref<128xf32, #tpu.memory_space<any>>
      %c0_i32_48 = arith.constant 0 : i32
      %42 = tpu.memref_slice %arg6[%c0_i32_44, %c6_i32_45, %arg8, %c0_i32_48] : memref<2x8x128x128xf32, #tpu.memory_space<vmem>> -> memref<1x1x1x128xf32, #tpu.memory_space<vmem>>
      %43 = tpu.memref_squeeze %42 : memref<1x1x1x128xf32, #tpu.memory_space<vmem>> -> memref<128xf32, #tpu.memory_space<vmem>>
      %44 = tpu.memref_slice %arg7[%c0_i32_46] : memref<2x!tpu.dma_semaphore, #tpu.memory_space<semaphore_mem>> -> memref<1x!tpu.dma_semaphore, #tpu.memory_space<semaphore_mem>>
      %45 = tpu.memref_squeeze %44 : memref<1x!tpu.dma_semaphore, #tpu.memory_space<semaphore_mem>> -> memref<!tpu.dma_semaphore, #tpu.memory_space<semaphore_mem>>
      tpu.enqueue_dma source(%41 : memref<128xf32, #tpu.memory_space<any>>) target(%43 : memref<128xf32, #tpu.memory_space<vmem>>) target_semaphore(%45 : memref<!tpu.dma_semaphore, #tpu.memory_space<semaphore_mem>>)
    }
    %c128_i32_33 = arith.constant 128 : i32
    %c7_i32 = arith.constant 7 : i32
    %31 = arith.addi %0, %c7_i32 : i32
    %c2048_i32_34 = arith.constant 2048 : i32
    %32 = arith.muli %31, %c2048_i32_34 : i32
    %33 = arith.addi %32, %2 : i32
    %c0_i32_35 = arith.constant 0 : i32
    %c128_i32_36 = arith.constant 128 : i32
    %34 = arith.addi %c0_i32_35, %c128_i32_36 : i32
    %c1_i32_37 = arith.constant 1 : i32
    scf.for %arg8 = %c0_i32_35 to %34 step %c1_i32_37  : i32 {
      %37 = arith.addi %33, %arg8 : i32
      %38 = arith.index_cast %37 : i32 to index
      %39 = memref.load %arg2[%38] : memref<32768xi32, #tpu.memory_space<smem>>
      %c0_i32_44 = arith.constant 0 : i32
      %c7_i32_45 = arith.constant 7 : i32
      %c0_i32_46 = arith.constant 0 : i32
      %c0_i32_47 = arith.constant 0 : i32
      %40 = tpu.memref_slice %arg4[%39, %c0_i32_47] : memref<64x128xf32, #tpu.memory_space<any>> -> memref<1x128xf32, #tpu.memory_space<any>>
      %41 = tpu.memref_squeeze %40 : memref<1x128xf32, #tpu.memory_space<any>> -> memref<128xf32, #tpu.memory_space<any>>
      %c0_i32_48 = arith.constant 0 : i32
      %42 = tpu.memref_slice %arg6[%c0_i32_44, %c7_i32_45, %arg8, %c0_i32_48] : memref<2x8x128x128xf32, #tpu.memory_space<vmem>> -> memref<1x1x1x128xf32, #tpu.memory_space<vmem>>
      %43 = tpu.memref_squeeze %42 : memref<1x1x1x128xf32, #tpu.memory_space<vmem>> -> memref<128xf32, #tpu.memory_space<vmem>>
      %44 = tpu.memref_slice %arg7[%c0_i32_46] : memref<2x!tpu.dma_semaphore, #tpu.memory_space<semaphore_mem>> -> memref<1x!tpu.dma_semaphore, #tpu.memory_space<semaphore_mem>>
      %45 = tpu.memref_squeeze %44 : memref<1x!tpu.dma_semaphore, #tpu.memory_space<semaphore_mem>> -> memref<!tpu.dma_semaphore, #tpu.memory_space<semaphore_mem>>
      tpu.enqueue_dma source(%41 : memref<128xf32, #tpu.memory_space<any>>) target(%43 : memref<128xf32, #tpu.memory_space<vmem>>) target_semaphore(%45 : memref<!tpu.dma_semaphore, #tpu.memory_space<semaphore_mem>>)
    }
    %c128_i32_38 = arith.constant 128 : i32
    %c0 = arith.constant 0 : index
    %c0_39 = arith.constant 0 : index
    %35 = vector.load %arg3[%c0, %c0_39] : memref<8x128xf32, #tpu.memory_space<vmem>>, vector<8x128xf32>
    %c0_i32_40 = arith.constant 0 : i32
    %c8_i32_41 = arith.constant 8 : i32
    %36 = arith.addi %c0_i32_40, %c8_i32_41 : i32
    %c1_i32_42 = arith.constant 1 : i32
    scf.for %arg8 = %c0_i32_40 to %36 step %c1_i32_42  : i32 {
      %c1_i32_44 = arith.constant 1 : i32
      %37 = arith.andi %arg8, %c1_i32_44 : i32
      %c0_i32_45 = arith.constant 0 : i32
      %c0_i32_46 = arith.constant 0 : i32
      %c0_i32_47 = arith.constant 0 : i32
      %38 = tpu.memref_slice %arg6[%37, %c0_i32_45, %c0_i32_46, %c0_i32_47] : memref<2x8x128x128xf32, #tpu.memory_space<vmem>> -> memref<1x8x128x128xf32, #tpu.memory_space<vmem>>
      %39 = tpu.memref_squeeze %38 : memref<1x8x128x128xf32, #tpu.memory_space<vmem>> -> memref<8x128x128xf32, #tpu.memory_space<vmem>>
      %c0_i32_48 = arith.constant 0 : i32
      %c0_i32_49 = arith.constant 0 : i32
      %c0_i32_50 = arith.constant 0 : i32
      %40 = tpu.memref_slice %arg6[%37, %c0_i32_48, %c0_i32_49, %c0_i32_50] : memref<2x8x128x128xf32, #tpu.memory_space<vmem>> -> memref<1x8x128x128xf32, #tpu.memory_space<vmem>>
      %41 = tpu.memref_squeeze %40 : memref<1x8x128x128xf32, #tpu.memory_space<vmem>> -> memref<8x128x128xf32, #tpu.memory_space<vmem>>
      %42 = tpu.memref_slice %arg7[%37] : memref<2x!tpu.dma_semaphore, #tpu.memory_space<semaphore_mem>> -> memref<1x!tpu.dma_semaphore, #tpu.memory_space<semaphore_mem>>
      %43 = tpu.memref_squeeze %42 : memref<1x!tpu.dma_semaphore, #tpu.memory_space<semaphore_mem>> -> memref<!tpu.dma_semaphore, #tpu.memory_space<semaphore_mem>>
      tpu.wait_dma2 semaphore(%43 : memref<!tpu.dma_semaphore, #tpu.memory_space<semaphore_mem>>) src(%39 : memref<8x128x128xf32, #tpu.memory_space<vmem>>) dst(%41 : memref<8x128x128xf32, #tpu.memory_space<vmem>>)
      %c1_i32_51 = arith.constant 1 : i32
      %44 = arith.addi %arg8, %c1_i32_51 : i32
      %c8_i32_52 = arith.constant 8 : i32
      %45 = arith.cmpi slt, %44, %c8_i32_52 : i32
      %46 = arith.extui %45 : i1 to i32
      %c0_i32_53 = arith.constant 0 : i32
      %47 = arith.cmpi ne, %46, %c0_i32_53 : i32
      scf.if %47 {
        %c1_i32_60 = arith.constant 1 : i32
        %62 = arith.addi %arg8, %c1_i32_60 : i32
        %c1_i32_61 = arith.constant 1 : i32
        %63 = arith.subi %c1_i32_61, %37 : i32
        %c128_i32_62 = arith.constant 128 : i32
        %64 = arith.muli %62, %c128_i32_62 : i32
        %65 = arith.addi %1, %64 : i32
        %c0_i32_63 = arith.constant 0 : i32
        %66 = arith.addi %0, %c0_i32_63 : i32
        %c2048_i32_64 = arith.constant 2048 : i32
        %67 = arith.muli %66, %c2048_i32_64 : i32
        %68 = arith.addi %67, %65 : i32
        %c0_i32_65 = arith.constant 0 : i32
        %c128_i32_66 = arith.constant 128 : i32
        %69 = arith.addi %c0_i32_65, %c128_i32_66 : i32
        %c1_i32_67 = arith.constant 1 : i32
        scf.for %arg9 = %c0_i32_65 to %69 step %c1_i32_67  : i32 {
          %98 = arith.addi %68, %arg9 : i32
          %99 = arith.index_cast %98 : i32 to index
          %100 = memref.load %arg2[%99] : memref<32768xi32, #tpu.memory_space<smem>>
          %c0_i32_111 = arith.constant 0 : i32
          %c0_i32_112 = arith.constant 0 : i32
          %101 = tpu.memref_slice %arg4[%100, %c0_i32_112] : memref<64x128xf32, #tpu.memory_space<any>> -> memref<1x128xf32, #tpu.memory_space<any>>
          %102 = tpu.memref_squeeze %101 : memref<1x128xf32, #tpu.memory_space<any>> -> memref<128xf32, #tpu.memory_space<any>>
          %c0_i32_113 = arith.constant 0 : i32
          %103 = tpu.memref_slice %arg6[%63, %c0_i32_111, %arg9, %c0_i32_113] : memref<2x8x128x128xf32, #tpu.memory_space<vmem>> -> memref<1x1x1x128xf32, #tpu.memory_space<vmem>>
          %104 = tpu.memref_squeeze %103 : memref<1x1x1x128xf32, #tpu.memory_space<vmem>> -> memref<128xf32, #tpu.memory_space<vmem>>
          %105 = tpu.memref_slice %arg7[%63] : memref<2x!tpu.dma_semaphore, #tpu.memory_space<semaphore_mem>> -> memref<1x!tpu.dma_semaphore, #tpu.memory_space<semaphore_mem>>
          %106 = tpu.memref_squeeze %105 : memref<1x!tpu.dma_semaphore, #tpu.memory_space<semaphore_mem>> -> memref<!tpu.dma_semaphore, #tpu.memory_space<semaphore_mem>>
          tpu.enqueue_dma source(%102 : memref<128xf32, #tpu.memory_space<any>>) target(%104 : memref<128xf32, #tpu.memory_space<vmem>>) target_semaphore(%106 : memref<!tpu.dma_semaphore, #tpu.memory_space<semaphore_mem>>)
        }
        %c128_i32_68 = arith.constant 128 : i32
        %c1_i32_69 = arith.constant 1 : i32
        %70 = arith.addi %0, %c1_i32_69 : i32
        %c2048_i32_70 = arith.constant 2048 : i32
        %71 = arith.muli %70, %c2048_i32_70 : i32
        %72 = arith.addi %71, %65 : i32
        %c0_i32_71 = arith.constant 0 : i32
        %c128_i32_72 = arith.constant 128 : i32
        %73 = arith.addi %c0_i32_71, %c128_i32_72 : i32
        %c1_i32_73 = arith.constant 1 : i32
        scf.for %arg9 = %c0_i32_71 to %73 step %c1_i32_73  : i32 {
          %98 = arith.addi %72, %arg9 : i32
          %99 = arith.index_cast %98 : i32 to index
          %100 = memref.load %arg2[%99] : memref<32768xi32, #tpu.memory_space<smem>>
          %c1_i32_111 = arith.constant 1 : i32
          %c0_i32_112 = arith.constant 0 : i32
          %101 = tpu.memref_slice %arg4[%100, %c0_i32_112] : memref<64x128xf32, #tpu.memory_space<any>> -> memref<1x128xf32, #tpu.memory_space<any>>
          %102 = tpu.memref_squeeze %101 : memref<1x128xf32, #tpu.memory_space<any>> -> memref<128xf32, #tpu.memory_space<any>>
          %c0_i32_113 = arith.constant 0 : i32
          %103 = tpu.memref_slice %arg6[%63, %c1_i32_111, %arg9, %c0_i32_113] : memref<2x8x128x128xf32, #tpu.memory_space<vmem>> -> memref<1x1x1x128xf32, #tpu.memory_space<vmem>>
          %104 = tpu.memref_squeeze %103 : memref<1x1x1x128xf32, #tpu.memory_space<vmem>> -> memref<128xf32, #tpu.memory_space<vmem>>
          %105 = tpu.memref_slice %arg7[%63] : memref<2x!tpu.dma_semaphore, #tpu.memory_space<semaphore_mem>> -> memref<1x!tpu.dma_semaphore, #tpu.memory_space<semaphore_mem>>
          %106 = tpu.memref_squeeze %105 : memref<1x!tpu.dma_semaphore, #tpu.memory_space<semaphore_mem>> -> memref<!tpu.dma_semaphore, #tpu.memory_space<semaphore_mem>>
          tpu.enqueue_dma source(%102 : memref<128xf32, #tpu.memory_space<any>>) target(%104 : memref<128xf32, #tpu.memory_space<vmem>>) target_semaphore(%106 : memref<!tpu.dma_semaphore, #tpu.memory_space<semaphore_mem>>)
        }
        %c128_i32_74 = arith.constant 128 : i32
        %c2_i32_75 = arith.constant 2 : i32
        %74 = arith.addi %0, %c2_i32_75 : i32
        %c2048_i32_76 = arith.constant 2048 : i32
        %75 = arith.muli %74, %c2048_i32_76 : i32
        %76 = arith.addi %75, %65 : i32
        %c0_i32_77 = arith.constant 0 : i32
        %c128_i32_78 = arith.constant 128 : i32
        %77 = arith.addi %c0_i32_77, %c128_i32_78 : i32
        %c1_i32_79 = arith.constant 1 : i32
        scf.for %arg9 = %c0_i32_77 to %77 step %c1_i32_79  : i32 {
          %98 = arith.addi %76, %arg9 : i32
          %99 = arith.index_cast %98 : i32 to index
          %100 = memref.load %arg2[%99] : memref<32768xi32, #tpu.memory_space<smem>>
          %c2_i32_111 = arith.constant 2 : i32
          %c0_i32_112 = arith.constant 0 : i32
          %101 = tpu.memref_slice %arg4[%100, %c0_i32_112] : memref<64x128xf32, #tpu.memory_space<any>> -> memref<1x128xf32, #tpu.memory_space<any>>
          %102 = tpu.memref_squeeze %101 : memref<1x128xf32, #tpu.memory_space<any>> -> memref<128xf32, #tpu.memory_space<any>>
          %c0_i32_113 = arith.constant 0 : i32
          %103 = tpu.memref_slice %arg6[%63, %c2_i32_111, %arg9, %c0_i32_113] : memref<2x8x128x128xf32, #tpu.memory_space<vmem>> -> memref<1x1x1x128xf32, #tpu.memory_space<vmem>>
          %104 = tpu.memref_squeeze %103 : memref<1x1x1x128xf32, #tpu.memory_space<vmem>> -> memref<128xf32, #tpu.memory_space<vmem>>
          %105 = tpu.memref_slice %arg7[%63] : memref<2x!tpu.dma_semaphore, #tpu.memory_space<semaphore_mem>> -> memref<1x!tpu.dma_semaphore, #tpu.memory_space<semaphore_mem>>
          %106 = tpu.memref_squeeze %105 : memref<1x!tpu.dma_semaphore, #tpu.memory_space<semaphore_mem>> -> memref<!tpu.dma_semaphore, #tpu.memory_space<semaphore_mem>>
          tpu.enqueue_dma source(%102 : memref<128xf32, #tpu.memory_space<any>>) target(%104 : memref<128xf32, #tpu.memory_space<vmem>>) target_semaphore(%106 : memref<!tpu.dma_semaphore, #tpu.memory_space<semaphore_mem>>)
        }
        %c128_i32_80 = arith.constant 128 : i32
        %c3_i32_81 = arith.constant 3 : i32
        %78 = arith.addi %0, %c3_i32_81 : i32
        %c2048_i32_82 = arith.constant 2048 : i32
        %79 = arith.muli %78, %c2048_i32_82 : i32
        %80 = arith.addi %79, %65 : i32
        %c0_i32_83 = arith.constant 0 : i32
        %c128_i32_84 = arith.constant 128 : i32
        %81 = arith.addi %c0_i32_83, %c128_i32_84 : i32
        %c1_i32_85 = arith.constant 1 : i32
        scf.for %arg9 = %c0_i32_83 to %81 step %c1_i32_85  : i32 {
          %98 = arith.addi %80, %arg9 : i32
          %99 = arith.index_cast %98 : i32 to index
          %100 = memref.load %arg2[%99] : memref<32768xi32, #tpu.memory_space<smem>>
          %c3_i32_111 = arith.constant 3 : i32
          %c0_i32_112 = arith.constant 0 : i32
          %101 = tpu.memref_slice %arg4[%100, %c0_i32_112] : memref<64x128xf32, #tpu.memory_space<any>> -> memref<1x128xf32, #tpu.memory_space<any>>
          %102 = tpu.memref_squeeze %101 : memref<1x128xf32, #tpu.memory_space<any>> -> memref<128xf32, #tpu.memory_space<any>>
          %c0_i32_113 = arith.constant 0 : i32
          %103 = tpu.memref_slice %arg6[%63, %c3_i32_111, %arg9, %c0_i32_113] : memref<2x8x128x128xf32, #tpu.memory_space<vmem>> -> memref<1x1x1x128xf32, #tpu.memory_space<vmem>>
          %104 = tpu.memref_squeeze %103 : memref<1x1x1x128xf32, #tpu.memory_space<vmem>> -> memref<128xf32, #tpu.memory_space<vmem>>
          %105 = tpu.memref_slice %arg7[%63] : memref<2x!tpu.dma_semaphore, #tpu.memory_space<semaphore_mem>> -> memref<1x!tpu.dma_semaphore, #tpu.memory_space<semaphore_mem>>
          %106 = tpu.memref_squeeze %105 : memref<1x!tpu.dma_semaphore, #tpu.memory_space<semaphore_mem>> -> memref<!tpu.dma_semaphore, #tpu.memory_space<semaphore_mem>>
          tpu.enqueue_dma source(%102 : memref<128xf32, #tpu.memory_space<any>>) target(%104 : memref<128xf32, #tpu.memory_space<vmem>>) target_semaphore(%106 : memref<!tpu.dma_semaphore, #tpu.memory_space<semaphore_mem>>)
        }
        %c128_i32_86 = arith.constant 128 : i32
        %c4_i32_87 = arith.constant 4 : i32
        %82 = arith.addi %0, %c4_i32_87 : i32
        %c2048_i32_88 = arith.constant 2048 : i32
        %83 = arith.muli %82, %c2048_i32_88 : i32
        %84 = arith.addi %83, %65 : i32
        %c0_i32_89 = arith.constant 0 : i32
        %c128_i32_90 = arith.constant 128 : i32
        %85 = arith.addi %c0_i32_89, %c128_i32_90 : i32
        %c1_i32_91 = arith.constant 1 : i32
        scf.for %arg9 = %c0_i32_89 to %85 step %c1_i32_91  : i32 {
          %98 = arith.addi %84, %arg9 : i32
          %99 = arith.index_cast %98 : i32 to index
          %100 = memref.load %arg2[%99] : memref<32768xi32, #tpu.memory_space<smem>>
          %c4_i32_111 = arith.constant 4 : i32
          %c0_i32_112 = arith.constant 0 : i32
          %101 = tpu.memref_slice %arg4[%100, %c0_i32_112] : memref<64x128xf32, #tpu.memory_space<any>> -> memref<1x128xf32, #tpu.memory_space<any>>
          %102 = tpu.memref_squeeze %101 : memref<1x128xf32, #tpu.memory_space<any>> -> memref<128xf32, #tpu.memory_space<any>>
          %c0_i32_113 = arith.constant 0 : i32
          %103 = tpu.memref_slice %arg6[%63, %c4_i32_111, %arg9, %c0_i32_113] : memref<2x8x128x128xf32, #tpu.memory_space<vmem>> -> memref<1x1x1x128xf32, #tpu.memory_space<vmem>>
          %104 = tpu.memref_squeeze %103 : memref<1x1x1x128xf32, #tpu.memory_space<vmem>> -> memref<128xf32, #tpu.memory_space<vmem>>
          %105 = tpu.memref_slice %arg7[%63] : memref<2x!tpu.dma_semaphore, #tpu.memory_space<semaphore_mem>> -> memref<1x!tpu.dma_semaphore, #tpu.memory_space<semaphore_mem>>
          %106 = tpu.memref_squeeze %105 : memref<1x!tpu.dma_semaphore, #tpu.memory_space<semaphore_mem>> -> memref<!tpu.dma_semaphore, #tpu.memory_space<semaphore_mem>>
          tpu.enqueue_dma source(%102 : memref<128xf32, #tpu.memory_space<any>>) target(%104 : memref<128xf32, #tpu.memory_space<vmem>>) target_semaphore(%106 : memref<!tpu.dma_semaphore, #tpu.memory_space<semaphore_mem>>)
        }
        %c128_i32_92 = arith.constant 128 : i32
        %c5_i32_93 = arith.constant 5 : i32
        %86 = arith.addi %0, %c5_i32_93 : i32
        %c2048_i32_94 = arith.constant 2048 : i32
        %87 = arith.muli %86, %c2048_i32_94 : i32
        %88 = arith.addi %87, %65 : i32
        %c0_i32_95 = arith.constant 0 : i32
        %c128_i32_96 = arith.constant 128 : i32
        %89 = arith.addi %c0_i32_95, %c128_i32_96 : i32
        %c1_i32_97 = arith.constant 1 : i32
        scf.for %arg9 = %c0_i32_95 to %89 step %c1_i32_97  : i32 {
          %98 = arith.addi %88, %arg9 : i32
          %99 = arith.index_cast %98 : i32 to index
          %100 = memref.load %arg2[%99] : memref<32768xi32, #tpu.memory_space<smem>>
          %c5_i32_111 = arith.constant 5 : i32
          %c0_i32_112 = arith.constant 0 : i32
          %101 = tpu.memref_slice %arg4[%100, %c0_i32_112] : memref<64x128xf32, #tpu.memory_space<any>> -> memref<1x128xf32, #tpu.memory_space<any>>
          %102 = tpu.memref_squeeze %101 : memref<1x128xf32, #tpu.memory_space<any>> -> memref<128xf32, #tpu.memory_space<any>>
          %c0_i32_113 = arith.constant 0 : i32
          %103 = tpu.memref_slice %arg6[%63, %c5_i32_111, %arg9, %c0_i32_113] : memref<2x8x128x128xf32, #tpu.memory_space<vmem>> -> memref<1x1x1x128xf32, #tpu.memory_space<vmem>>
          %104 = tpu.memref_squeeze %103 : memref<1x1x1x128xf32, #tpu.memory_space<vmem>> -> memref<128xf32, #tpu.memory_space<vmem>>
          %105 = tpu.memref_slice %arg7[%63] : memref<2x!tpu.dma_semaphore, #tpu.memory_space<semaphore_mem>> -> memref<1x!tpu.dma_semaphore, #tpu.memory_space<semaphore_mem>>
          %106 = tpu.memref_squeeze %105 : memref<1x!tpu.dma_semaphore, #tpu.memory_space<semaphore_mem>> -> memref<!tpu.dma_semaphore, #tpu.memory_space<semaphore_mem>>
          tpu.enqueue_dma source(%102 : memref<128xf32, #tpu.memory_space<any>>) target(%104 : memref<128xf32, #tpu.memory_space<vmem>>) target_semaphore(%106 : memref<!tpu.dma_semaphore, #tpu.memory_space<semaphore_mem>>)
        }
        %c128_i32_98 = arith.constant 128 : i32
        %c6_i32_99 = arith.constant 6 : i32
        %90 = arith.addi %0, %c6_i32_99 : i32
        %c2048_i32_100 = arith.constant 2048 : i32
        %91 = arith.muli %90, %c2048_i32_100 : i32
        %92 = arith.addi %91, %65 : i32
        %c0_i32_101 = arith.constant 0 : i32
        %c128_i32_102 = arith.constant 128 : i32
        %93 = arith.addi %c0_i32_101, %c128_i32_102 : i32
        %c1_i32_103 = arith.constant 1 : i32
        scf.for %arg9 = %c0_i32_101 to %93 step %c1_i32_103  : i32 {
          %98 = arith.addi %92, %arg9 : i32
          %99 = arith.index_cast %98 : i32 to index
          %100 = memref.load %arg2[%99] : memref<32768xi32, #tpu.memory_space<smem>>
          %c6_i32_111 = arith.constant 6 : i32
          %c0_i32_112 = arith.constant 0 : i32
          %101 = tpu.memref_slice %arg4[%100, %c0_i32_112] : memref<64x128xf32, #tpu.memory_space<any>> -> memref<1x128xf32, #tpu.memory_space<any>>
          %102 = tpu.memref_squeeze %101 : memref<1x128xf32, #tpu.memory_space<any>> -> memref<128xf32, #tpu.memory_space<any>>
          %c0_i32_113 = arith.constant 0 : i32
          %103 = tpu.memref_slice %arg6[%63, %c6_i32_111, %arg9, %c0_i32_113] : memref<2x8x128x128xf32, #tpu.memory_space<vmem>> -> memref<1x1x1x128xf32, #tpu.memory_space<vmem>>
          %104 = tpu.memref_squeeze %103 : memref<1x1x1x128xf32, #tpu.memory_space<vmem>> -> memref<128xf32, #tpu.memory_space<vmem>>
          %105 = tpu.memref_slice %arg7[%63] : memref<2x!tpu.dma_semaphore, #tpu.memory_space<semaphore_mem>> -> memref<1x!tpu.dma_semaphore, #tpu.memory_space<semaphore_mem>>
          %106 = tpu.memref_squeeze %105 : memref<1x!tpu.dma_semaphore, #tpu.memory_space<semaphore_mem>> -> memref<!tpu.dma_semaphore, #tpu.memory_space<semaphore_mem>>
          tpu.enqueue_dma source(%102 : memref<128xf32, #tpu.memory_space<any>>) target(%104 : memref<128xf32, #tpu.memory_space<vmem>>) target_semaphore(%106 : memref<!tpu.dma_semaphore, #tpu.memory_space<semaphore_mem>>)
        }
        %c128_i32_104 = arith.constant 128 : i32
        %c7_i32_105 = arith.constant 7 : i32
        %94 = arith.addi %0, %c7_i32_105 : i32
        %c2048_i32_106 = arith.constant 2048 : i32
        %95 = arith.muli %94, %c2048_i32_106 : i32
        %96 = arith.addi %95, %65 : i32
        %c0_i32_107 = arith.constant 0 : i32
        %c128_i32_108 = arith.constant 128 : i32
        %97 = arith.addi %c0_i32_107, %c128_i32_108 : i32
        %c1_i32_109 = arith.constant 1 : i32
        scf.for %arg9 = %c0_i32_107 to %97 step %c1_i32_109  : i32 {
          %98 = arith.addi %96, %arg9 : i32
          %99 = arith.index_cast %98 : i32 to index
          %100 = memref.load %arg2[%99] : memref<32768xi32, #tpu.memory_space<smem>>
          %c7_i32_111 = arith.constant 7 : i32
          %c0_i32_112 = arith.constant 0 : i32
          %101 = tpu.memref_slice %arg4[%100, %c0_i32_112] : memref<64x128xf32, #tpu.memory_space<any>> -> memref<1x128xf32, #tpu.memory_space<any>>
          %102 = tpu.memref_squeeze %101 : memref<1x128xf32, #tpu.memory_space<any>> -> memref<128xf32, #tpu.memory_space<any>>
          %c0_i32_113 = arith.constant 0 : i32
          %103 = tpu.memref_slice %arg6[%63, %c7_i32_111, %arg9, %c0_i32_113] : memref<2x8x128x128xf32, #tpu.memory_space<vmem>> -> memref<1x1x1x128xf32, #tpu.memory_space<vmem>>
          %104 = tpu.memref_squeeze %103 : memref<1x1x1x128xf32, #tpu.memory_space<vmem>> -> memref<128xf32, #tpu.memory_space<vmem>>
          %105 = tpu.memref_slice %arg7[%63] : memref<2x!tpu.dma_semaphore, #tpu.memory_space<semaphore_mem>> -> memref<1x!tpu.dma_semaphore, #tpu.memory_space<semaphore_mem>>
          %106 = tpu.memref_squeeze %105 : memref<1x!tpu.dma_semaphore, #tpu.memory_space<semaphore_mem>> -> memref<!tpu.dma_semaphore, #tpu.memory_space<semaphore_mem>>
          tpu.enqueue_dma source(%102 : memref<128xf32, #tpu.memory_space<any>>) target(%104 : memref<128xf32, #tpu.memory_space<vmem>>) target_semaphore(%106 : memref<!tpu.dma_semaphore, #tpu.memory_space<semaphore_mem>>)
        }
        %c128_i32_110 = arith.constant 128 : i32
      } else {
      }
      %48 = arith.index_cast %37 : i32 to index
      %c0_54 = arith.constant 0 : index
      %c0_55 = arith.constant 0 : index
      %c0_56 = arith.constant 0 : index
      %49 = vector.load %arg6[%48, %c0_54, %c0_55, %c0_56] : memref<2x8x128x128xf32, #tpu.memory_space<vmem>>, vector<1x8x128x128xf32>
      %50 = vector.shape_cast %49 : vector<1x8x128x128xf32> to vector<8x128x128xf32>
      %c128_i32_57 = arith.constant 128 : i32
      %51 = arith.muli %arg8, %c128_i32_57 : i32
      %52 = tpu.assume_multiple %51, 128 : i32
      %53 = vector.shape_cast %35 : vector<8x128xf32> to vector<8x1x128xf32>
      %54 = vector.broadcast %53 : vector<8x1x128xf32> to vector<8x128x128xf32>
      %55 = arith.subf %54, %50 : vector<8x128x128xf32>
      %56 = math.absf %55 : vector<8x128x128xf32>
      %cst = arith.constant dense<0.000000e+00> : vector<8x128xf32>
      %57 = vector.multi_reduction <add>, %56, %cst [2] : vector<8x128x128xf32> to vector<8x128xf32>
      %cst_58 = arith.constant 1.200000e+01 : f32
      %58 = vector.broadcast %cst_58 : f32 to vector<8x128xf32>
      %59 = arith.subf %58, %57 : vector<8x128xf32>
      %c0_59 = arith.constant 0 : index
      %60 = arith.index_cast %52 : i32 to index
      %61 = vector.load %arg5[%c0_59, %60] : memref<8x1024xf32, #tpu.memory_space<vmem>>, vector<8x128xf32>
      tpu.vector_store %arg5[%c0_59, %60], %59 {strides = array<i32>} : memref<8x1024xf32, #tpu.memory_space<vmem>>, vector<8x128xf32>,
    }
    %c8_i32_43 = arith.constant 8 : i32
    return
  }
  func.func @transform_0(%arg0: i32, %arg1: i32, %arg2: memref<32768xi32, #tpu.memory_space<smem>>) -> (i32, i32) {
    %c0_i32 = arith.constant 0 : i32
    %c0_i32_0 = arith.constant 0 : i32
    return %arg1, %c0_i32 : i32, i32
  }
  func.func @transform_2(%arg0: i32, %arg1: i32, %arg2: memref<32768xi32, #tpu.memory_space<smem>>) -> (i32, i32) {
    %c0_i32 = arith.constant 0 : i32
    return %arg1, %arg0 : i32, i32
  }
}

</mosaic_0001>

<llo_original>
// kernel: tpu_custom_call.1
$region0: #{tpu_custom_call.1}
  #allocation0 [shape = 'u32[]', space=smem, size = 0x4, offset = 0x4, fixed_abs, tag = 'smem constant byte address 0x4 - core index']
  #allocation1 [shape = 'u32[144,128]{1,0:T(1,128)}', space=vmem, size = 0x12000, scoped, tag = 'internal scratch']
  #allocation2 [shape = 'f32[2,8,128,128]{3,2,1,0:T(8,128)}', space=vmem, size = 0x100000, scoped, tag = 'scratch operand']
  #allocation3 [shape = 's32[2]{0}', space=sflag, size = 0x8, scoped, tag = 'scratch operand']
  #allocation4 [shape = 's32[1]{0}', space=sflag, size = 0x4, scoped, tag = 'scoped memory for tpu_custom_call.1']
  #allocation5 [shape = 'u8[131072]{0}', space=smem, size = 0x20000, scoped, tag = 'prefetched SMEM operand 0']
  #allocation10 [shape = 's32[]', space=sflag, size = 0x4, offset = 0, fixed_abs, tag = 'sflag constant byte address 0x0 - dummy sync flag']
  #allocation11 [shape = 's32[]', space=sflag, size = 0x4, offset = 0, fixed_abs, tag = 'sflag constant byte address 0x0 - dummy sync flag']
  #allocation12 [shape = 'u32[]', space=smem, size = 0x4, offset = 0x44, fixed_abs, tag = 'smem constant byte address 0x44 - assertion arg 0']
  #allocation13 [shape = 'u32[]', space=smem, size = 0x4, offset = 0x48, fixed_abs, tag = 'smem constant byte address 0x48 - assertion arg 1']
  #allocation14 [shape = 's32[]', space=sflag, size = 0x4, offset = 0, fixed_abs, tag = 'sflag constant byte address 0x0 - dummy sync flag']
  #allocation15 [shape = 's32[]', space=sflag, size = 0x4, offset = 0, fixed_abs, tag = 'sflag constant byte address 0x0 - dummy sync flag']
  #allocation16 [shape = 's32[]', space=sflag, size = 0x4, offset = 0, fixed_abs, tag = 'sflag constant byte address 0x0 - dummy sync flag']
  #allocation17 [shape = 's32[]', space=sflag, size = 0x4, offset = 0, fixed_abs, tag = 'sflag constant byte address 0x0 - dummy sync flag']
  #allocation18 [shape = 's32[]', space=sflag, size = 0x4, offset = 0, fixed_abs, tag = 'sflag constant byte address 0x0 - dummy sync flag']
  #allocation19 [shape = 's32[]', space=sflag, size = 0x4, offset = 0, fixed_abs, tag = 'sflag constant byte address 0x0 - dummy sync flag']
  #allocation20 [shape = 's32[]', space=sflag, size = 0x4, offset = 0, fixed_abs, tag = 'sflag constant byte address 0x0 - dummy sync flag']
  #allocation21 [shape = 's32[]', space=sflag, size = 0x4, offset = 0, fixed_abs, tag = 'sflag constant byte address 0x0 - dummy sync flag']
  #allocation22 [shape = 's32[]', space=sflag, size = 0x4, offset = 0, fixed_abs, tag = 'sflag constant byte address 0x0 - dummy sync flag']
  #allocation23 [shape = 's32[]', space=sflag, size = 0x4, offset = 0, fixed_abs, tag = 'sflag constant byte address 0x0 - dummy sync flag']
  #allocation24 [shape = 's32[]', space=sflag, size = 0x4, offset = 0, fixed_abs, tag = 'sflag constant byte address 0x0 - dummy sync flag']
  #allocation25 [shape = 's32[]', space=sflag, size = 0x4, offset = 0, fixed_abs, tag = 'sflag constant byte address 0x0 - dummy sync flag']
  #allocation26 [shape = 's32[]', space=sflag, size = 0x4, offset = 0, fixed_abs, tag = 'sflag constant byte address 0x0 - dummy sync flag']
  #allocation27 [shape = 's32[]', space=sflag, size = 0x4, offset = 0, fixed_abs, tag = 'sflag constant byte address 0x0 - dummy sync flag']
  #allocation28 [shape = 's32[]', space=sflag, size = 0x4, offset = 0, fixed_abs, tag = 'sflag constant byte address 0x0 - dummy sync flag']
  #allocation29 [shape = 's32[]', space=sflag, size = 0x4, offset = 0, fixed_abs, tag = 'sflag constant byte address 0x0 - dummy sync flag']
  #allocation30 [shape = 's32[]', space=sflag, size = 0x4, offset = 0, fixed_abs, tag = 'sflag constant byte address 0x0 - dummy sync flag']
  #allocation31 [shape = 's32[]', space=sflag, size = 0x4, offset = 0, fixed_abs, tag = 'sflag constant byte address 0x0 - dummy sync flag']
  #allocation32 [shape = 's32[]', space=sflag, size = 0x4, offset = 0, fixed_abs, tag = 'sflag constant byte address 0x0 - dummy sync flag']
  #allocation33 [shape = 's32[]', space=sflag, size = 0x4, offset = 0, fixed_abs, tag = 'sflag constant byte address 0x0 - dummy sync flag']
  #allocation34 [shape = 's32[]', space=sflag, size = 0x4, offset = 0, fixed_abs, tag = 'sflag constant byte address 0x0 - dummy sync flag']
  #allocation35 [shape = 's32[]', space=sflag, size = 0x4, offset = 0, fixed_abs, tag = 'sflag constant byte address 0x0 - dummy sync flag']
  #allocation36 [shape = 's32[]', space=sflag, size = 0x4, offset = 0, fixed_abs, tag = 'sflag constant byte address 0x0 - dummy sync flag']
  #allocation37 [shape = 's32[]', space=sflag, size = 0x4, offset = 0, fixed_abs, tag = 'sflag constant byte address 0x0 - dummy sync flag']
  #allocation38 [shape = 's32[]', space=sflag, size = 0x4, offset = 0, fixed_abs, tag = 'sflag constant byte address 0x0 - dummy sync flag']
  #allocation39 [shape = 's32[]', space=sflag, size = 0x4, offset = 0, fixed_abs, tag = 'sflag constant byte address 0x0 - dummy sync flag']
  #allocation40 [shape = 's32[]', space=sflag, size = 0x4, offset = 0, fixed_abs, tag = 'sflag constant byte address 0x0 - dummy sync flag']
  #allocation41 [shape = 's32[]', space=sflag, size = 0x4, offset = 0, fixed_abs, tag = 'sflag constant byte address 0x0 - dummy sync flag']
  #allocation42 [shape = 's32[]', space=sflag, size = 0x4, offset = 0, fixed_abs, tag = 'sflag constant byte address 0x0 - dummy sync flag']
  #allocation43 [shape = 's32[]', space=sflag, size = 0x4, offset = 0, fixed_abs, tag = 'sflag constant byte address 0x0 - dummy sync flag']
  %s0 = inlined_call_operand.hbm [shape: s32[32768], index: 0, kind: input, shape index: {}]
  %s1 = inlined_call_operand.hbm [shape: f32[16,128], index: 1, kind: input, shape index: {}]
  %s2 = inlined_call_operand.hbm [shape: f32[64,128], index: 2, kind: input, shape index: {}]
  %s3 = inlined_call_operand.hbm [shape: f32[16,2048], index: 3, kind: output, shape index: {}]
  %s4 = sld [smem:[#allocation0]]
  $region228: #{tpu_custom_call.1} parent=0
    _
  %s6 = ssub.s32 1, %s4
  %s7 = scalar_select 0, %s6, %s4
  %9 = dma.hbm_to_smem %s0, 4096, [#allocation5], [#allocation4]
  %10 = dma.done [#allocation4], 4096
  %11 = sfence
  $region1: #{tpu_custom_call.1} parent=0
    #allocation6 [shape = 'u8[8192]{0}', space=vmem, size = 0x2000, scoped, tag = 'input window, operand 1']
    #allocation7 [shape = 's32[2]{0}', space=sflag, size = 0x8, scoped, tag = 'scoped memory for tpu_custom_call.1']
    #allocation8 [shape = 's32[2]{0}', space=sflag, size = 0x8, scoped, tag = 'scoped memory for tpu_custom_call.1']
    #allocation9 [shape = 'u8[65536]{0}', space=vmem, size = 0x10000, scoped, tag = 'output window, operand 0']
    %12 = vsyncpa [#allocation7], 0
    %s13 = scalar_lea.sflag [#allocation7], 1
    %14 = vsyncpa %s13, 0
    %15 = vsyncpa [#allocation8], 0
    %s16 = scalar_lea.sflag [#allocation8], 1
    %17 = vsyncpa %s16, 0
    loop: start=0, step=1, limit=6
    $region2: #{tpu_custom_call.1} parent=1 // loop_pre_header
      _
    $region3: #{tpu_custom_call.1} parent=1 // loop_header
      %s19 = sphi 0, %s23
      %p20 = scmp.ge.s32.totalorder %s19, 6
      %s26 = sphi 0, %s38
      %s27 = sphi 0, %s34
      %s28 = sphi 0, %s26
      %s29 = sphi 0, %s27
      %s30 = sphi 0, %s28
      %s31 = sphi 0, %s29
      %s41 = sphi 0, %s43
      %s44 = sphi 0, %s41
      %s45 = sphi 0, %s44
      %s61 = sphi 0, %s45
      %s69 = sphi 0, %s71
      %s72 = sphi 0, %s69
      %s73 = sphi 0, %s72
      %s89 = sphi 0, %s73
    $region4: #{tpu_custom_call.1} parent=1 // loop_header_branch
      %22 = sbr.rel (%p20) target = $region8
    $region5: #{tpu_custom_call.1} parent=1 // loop_body
      %s24 = ssub.s32 %s19, 1
      %s25 = ssub.s32 %s19, 2
      %s32 = sadd.s32 1, %s27
      %p33 = scmp.ge.s32.totalorder %s32, 2
      %s34 = scalar_select %p33, 0, %s32
      %s35 = sadd.s32 1, %s26
      %s36 = scalar_select %p33, %s35, %s26
      %p37 = scmp.ge.s32.totalorder %s36, 2
      %s38 = scalar_select %p37, 0, %s36
      %s39 = ssub.s32 %s27, %s34
      %p40 = scmp.eq.s32.totalorder %s39, 0
      %s42 = sadd.s32 %s41, 1
      %s43 = scalar_select %p40, %s41, %s42
      %p46 = pneg %p40
      %p47 = scmp.eq.s32.totalorder %s19, 3
      %p48 = por %p46, %p47
      %p49 = scmp.ne.s32.totalorder %s41, %s44
      %p50 = scmp.eq.s32.totalorder %s19, 0
      %p51 = por %p49, %p50
      %p52 = scmp.ne.s32.totalorder %s41, %s44
      %p53 = scmp.eq.s32.totalorder %s24, 3
      %p54 = por %p52, %p53
      %p55 = scmp.ne.s32.totalorder %s44, %s45
      %p56 = scmp.eq.s32.totalorder %s24, 0
      %p57 = por %p55, %p56
      %p58 = scmp.ne.s32.totalorder %s44, %s45
      %p59 = scmp.eq.s32.totalorder %s25, 3
      %p60 = por %p58, %p59
      %p62 = scmp.ne.s32.totalorder %s45, %s61
      %p63 = scmp.eq.s32.totalorder %s25, 0
      %p64 = por %p62, %p63
      %s65 = ssub.s32 %s27, %s34
      %s66 = ssub.s32 %s26, %s38
      %s67 = sor.u32 %s65, %s66
      %p68 = scmp.eq.s32.totalorder %s67, 0
      %s70 = sadd.s32 %s69, 1
      %s71 = scalar_select %p68, %s69, %s70
      %p74 = pneg %p68
      %p75 = scmp.eq.s32.totalorder %s19, 3
      %p76 = por %p74, %p75
      %p77 = scmp.ne.s32.totalorder %s69, %s72
      %p78 = scmp.eq.s32.totalorder %s19, 0
      %p79 = por %p77, %p78
      %p80 = scmp.ne.s32.totalorder %s69, %s72
      %p81 = scmp.eq.s32.totalorder %s24, 3
      %p82 = por %p80, %p81
      %p83 = scmp.ne.s32.totalorder %s72, %s73
      %p84 = scmp.eq.s32.totalorder %s24, 0
      %p85 = por %p83, %p84
      %p86 = scmp.ne.s32.totalorder %s72, %s73
      %p87 = scmp.eq.s32.totalorder %s25, 3
      %p88 = por %p86, %p87
      %p90 = scmp.ne.s32.totalorder %s73, %s89
      %p91 = scmp.eq.s32.totalorder %s25, 0
      %p92 = por %p90, %p91
      %p93 = scmp.le.s32.totalorder 1, %s19
      %p94 = scmp.lt.s32.totalorder %s19, 5
      %p95 = pnand %p93, %p94
      %p96 = pneg %p95
      // Predicated region
      $region9: #{tpu_custom_call.1} parent=5 // pred_check
        _
      $region10: #{tpu_custom_call.1} parent=5 // pred_check_branch
        %98 = sbr.rel (%p95) target = $region12
      $region11: #{tpu_custom_call.1} parent=5 // pred_region
        %s99 = ssub.s32 %s19, 1
      $region12: #{tpu_custom_call.1} parent=5 // pred_fallthru
        _
      %p100 = scmp.lt.s32.totalorder %s19, 4
      // Predicated region
      $region13: #{tpu_custom_call.1} parent=5 // pred_check
        %p101 = pneg %p100
      $region14: #{tpu_custom_call.1} parent=5 // pred_check_branch
        %103 = sbr.rel (%p101) target = $region16
      $region15: #{tpu_custom_call.1} parent=5 // pred_region
        // Predicated region
        $region17: #{tpu_custom_call.1} parent=15 // pred_check
          %p104 = pneg %p51
        $region18: #{tpu_custom_call.1} parent=15 // pred_check_branch
          %106 = sbr.rel (%p104) target = $region20
        $region19: #{tpu_custom_call.1} parent=15 // pred_region
          %s107 = sand.u32 %s41, 1
          %s108 = scalar_lea.sflag [#allocation7], %s107
          %s109 = sand.u32 %s41, 1
          %s110 = smul.addr %s109, 8
          %s111 = scalar_lea.vmem [#allocation6], %s110
          %s113 = ssub.s32 128, 128
          %114 = vsyncadd %s108, %s113
          %s115 = smul.addr %s27, 128
          %s116 = scalar_lea.hbm %s1, %s115
          %s118 = sshll.u32 %s111, 4
          %s119 = int_to_ptr.vmem [resolvable:$true] %s118
          %121 = dma.hbm_to_vmem [thread:$0]  %s116, 128, %s119, %s108
        $region20: #{tpu_custom_call.1} parent=15 // pred_fallthru
          _
      $region16: #{tpu_custom_call.1} parent=5 // pred_fallthru
        _
      %p122 = scmp.le.s32.totalorder 1, %s19
      %p123 = scmp.lt.s32.totalorder %s19, 5
      %p124 = pnand %p122, %p123
      %p125 = pneg %p124
      // Predicated region
      $region21: #{tpu_custom_call.1} parent=5 // pred_check
        _
      $region22: #{tpu_custom_call.1} parent=5 // pred_check_branch
        %127 = sbr.rel (%p124) target = $region24
      $region23: #{tpu_custom_call.1} parent=5 // pred_region
        %s128 = ssub.s32 %s19, 1
        %s129 = sand.u32 %s44, 1
        %s130 = scalar_lea.sflag [#allocation7], %s129
        %s131 = sand.u32 %s44, 1
        %s132 = smul.addr %s131, 8
        %s133 = scalar_lea.vmem [#allocation6], %s132
        // Predicated region
        $region25: #{tpu_custom_call.1} parent=23 // pred_check
          %p134 = pneg %p57
        $region26: #{tpu_custom_call.1} parent=23 // pred_check_branch
          %136 = sbr.rel (%p134) target = $region28
        $region27: #{tpu_custom_call.1} parent=23 // pred_region
          %137 = dma.done %s130, 128
        $region28: #{tpu_custom_call.1} parent=23 // pred_fallthru
          _
        %s138 = sand.u32 %s44, 1
        %s139 = scalar_lea.sflag [#allocation7], %s138
        %s140 = sand.u32 %s44, 1
        %s141 = smul.addr %s140, 8
        %s142 = scalar_lea.vmem [#allocation6], %s141
        %p143 = pneg %p57
        %p144 = pneg %p54
        %p145 = pneg %p85
        %p146 = pneg %p82
        %s147 = sand.u32 %s72, 1
        %s148 = scalar_lea.sflag [#allocation8], %s147
        %s149 = sand.u32 %s72, 1
        %s150 = smul.addr %s149, 64
        %s151 = scalar_lea.vmem [#allocation9], %s150
        %s152 = smul.u32 8, %s28
        %s153 = smul.u32 %s29, 8
        %s154 = smul.u32 %s28, 1024
        %s155 = smul.u32 %s29, 16384
        %s156 = sadd.s32 %s155, %s154
        loop: start=0, step=1, limit=128
        $region29: #{tpu_custom_call.1} parent=23 // loop_pre_header
          _
        $region30: #{tpu_custom_call.1} parent=23 // loop_header
          %s158 = sphi 0, %s162
          %p159 = scmp.ge.s32.totalorder %s158, 128
        $region31: #{tpu_custom_call.1} parent=23 // loop_header_branch
          %161 = sbr.rel (%p159) target = $region35
        $region32: #{tpu_custom_call.1} parent=23 // loop_body
          %s163 = sadd.s32 %s156, %s158
          %s164 = sld [smem:[#allocation5 + %s163]]
          %s165 = smul.addr %s164, 16
          %s166 = scalar_lea.hbm %s2, %s165
          %s167 = scalar_lea.vmem [#allocation2], %s158
          // Predicated region
          $region36: #{tpu_custom_call.1} parent=32 // pred_check
            _
          $region37: #{tpu_custom_call.1} parent=32 // pred_check_branch
            %169 = sbr.rel target = $region39
          $region38: #{tpu_custom_call.1} parent=32 // pred_region
            %170 = sst [smem:[#allocation12]] [#allocation11]
            %171 = sst [smem:[#allocation13]] [#allocation10]
          $region39: #{tpu_custom_call.1} parent=32 // pred_fallthru
            _
          %173 = shalt.err (0)
          %s175 = sshll.u32 %s167, 4
          %s176 = int_to_ptr.vmem [resolvable:$true] %s175
          %178 = dma.hbm_to_vmem [thread:$0]  %s166, 16, %s176, [#allocation3]
        $region33: #{tpu_custom_call.1} parent=23 // loop_footer
          %s162 = sadd.s32 1, %s158
        $region34: #{tpu_custom_call.1} parent=23 // loop_footer_branch
          %157 = sbr.rel target = $region30
        $region35: #{tpu_custom_call.1} parent=23 // loop_exit
          _
        %s179 = sadd.s32 %s153, 1
        %s180 = smul.u32 %s179, 2048
        %s181 = sadd.s32 %s180, %s154
        loop: start=0, step=1, limit=128
        $region40: #{tpu_custom_call.1} parent=23 // loop_pre_header
          _
        $region41: #{tpu_custom_call.1} parent=23 // loop_header
          %s183 = sphi 0, %s187
          %p184 = scmp.ge.s32.totalorder %s183, 128
        $region42: #{tpu_custom_call.1} parent=23 // loop_header_branch
          %186 = sbr.rel (%p184) target = $region46
        $region43: #{tpu_custom_call.1} parent=23 // loop_body
          %s188 = sadd.s32 %s181, %s183
          %s189 = sld [smem:[#allocation5 + %s188]]
          %s190 = smul.addr %s189, 16
          %s191 = scalar_lea.hbm %s2, %s190
          %s192 = sadd.s32 %s183, 128
          %s193 = scalar_lea.vmem [#allocation2], %s192
          // Predicated region
          $region47: #{tpu_custom_call.1} parent=43 // pred_check
            _
          $region48: #{tpu_custom_call.1} parent=43 // pred_check_branch
            %195 = sbr.rel target = $region50
          $region49: #{tpu_custom_call.1} parent=43 // pred_region
            %196 = sst [smem:[#allocation12]] [#allocation15]
            %197 = sst [smem:[#allocation13]] [#allocation14]
          $region50: #{tpu_custom_call.1} parent=43 // pred_fallthru
            _
          %199 = shalt.err (0)
          %s201 = sshll.u32 %s193, 4
          %s202 = int_to_ptr.vmem [resolvable:$true] %s201
          %204 = dma.hbm_to_vmem [thread:$0]  %s191, 16, %s202, [#allocation3]
        $region44: #{tpu_custom_call.1} parent=23 // loop_footer
          %s187 = sadd.s32 1, %s183
        $region45: #{tpu_custom_call.1} parent=23 // loop_footer_branch
          %182 = sbr.rel target = $region41
        $region46: #{tpu_custom_call.1} parent=23 // loop_exit
          _
        %s205 = sadd.s32 %s153, 2
        %s206 = smul.u32 %s205, 2048
        %s207 = sadd.s32 %s206, %s154
        loop: start=0, step=1, limit=128
        $region51: #{tpu_custom_call.1} parent=23 // loop_pre_header
          _
        $region52: #{tpu_custom_call.1} parent=23 // loop_header
          %s209 = sphi 0, %s213
          %p210 = scmp.ge.s32.totalorder %s209, 128
        $region53: #{tpu_custom_call.1} parent=23 // loop_header_branch
          %212 = sbr.rel (%p210) target = $region57
        $region54: #{tpu_custom_call.1} parent=23 // loop_body
          %s214 = sadd.s32 %s207, %s209
          %s215 = sld [smem:[#allocation5 + %s214]]
          %s216 = smul.addr %s215, 16
          %s217 = scalar_lea.hbm %s2, %s216
          %s218 = sadd.s32 %s209, 256
          %s219 = scalar_lea.vmem [#allocation2], %s218
          // Predicated region
          $region58: #{tpu_custom_call.1} parent=54 // pred_check
            _
          $region59: #{tpu_custom_call.1} parent=54 // pred_check_branch
            %221 = sbr.rel target = $region61
          $region60: #{tpu_custom_call.1} parent=54 // pred_region
            %222 = sst [smem:[#allocation12]] [#allocation17]
            %223 = sst [smem:[#allocation13]] [#allocation16]
          $region61: #{tpu_custom_call.1} parent=54 // pred_fallthru
            _
          %225 = shalt.err (0)
          %s227 = sshll.u32 %s219, 4
          %s228 = int_to_ptr.vmem [resolvable:$true] %s227
          %230 = dma.hbm_to_vmem [thread:$0]  %s217, 16, %s228, [#allocation3]
        $region55: #{tpu_custom_call.1} parent=23 // loop_footer
          %s213 = sadd.s32 1, %s209
        $region56: #{tpu_custom_call.1} parent=23 // loop_footer_branch
          %208 = sbr.rel target = $region52
        $region57: #{tpu_custom_call.1} parent=23 // loop_exit
          _
        %s231 = sadd.s32 %s153, 3
        %s232 = smul.u32 %s231, 2048
        %s233 = sadd.s32 %s232, %s154
        loop: start=0, step=1, limit=128
        $region62: #{tpu_custom_call.1} parent=23 // loop_pre_header
          _
        $region63: #{tpu_custom_call.1} parent=23 // loop_header
          %s235 = sphi 0, %s239
          %p236 = scmp.ge.s32.totalorder %s235, 128
        $region64: #{tpu_custom_call.1} parent=23 // loop_header_branch
          %238 = sbr.rel (%p236) target = $region68
        $region65: #{tpu_custom_call.1} parent=23 // loop_body
          %s240 = sadd.s32 %s233, %s235
          %s241 = sld [smem:[#allocation5 + %s240]]
          %s242 = smul.addr %s241, 16
          %s243 = scalar_lea.hbm %s2, %s242
          %s244 = sadd.s32 %s235, 384
          %s245 = scalar_lea.vmem [#allocation2], %s244
          // Predicated region
          $region69: #{tpu_custom_call.1} parent=65 // pred_check
            _
          $region70: #{tpu_custom_call.1} parent=65 // pred_check_branch
            %247 = sbr.rel target = $region72
          $region71: #{tpu_custom_call.1} parent=65 // pred_region
            %248 = sst [smem:[#allocation12]] [#allocation19]
            %249 = sst [smem:[#allocation13]] [#allocation18]
          $region72: #{tpu_custom_call.1} parent=65 // pred_fallthru
            _
          %251 = shalt.err (0)
          %s253 = sshll.u32 %s245, 4
          %s254 = int_to_ptr.vmem [resolvable:$true] %s253
          %256 = dma.hbm_to_vmem [thread:$0]  %s243, 16, %s254, [#allocation3]
        $region66: #{tpu_custom_call.1} parent=23 // loop_footer
          %s239 = sadd.s32 1, %s235
        $region67: #{tpu_custom_call.1} parent=23 // loop_footer_branch
          %234 = sbr.rel target = $region63
        $region68: #{tpu_custom_call.1} parent=23 // loop_exit
          _
        %s257 = sadd.s32 %s153, 4
        %s258 = smul.u32 %s257, 2048
        %s259 = sadd.s32 %s258, %s154
        loop: start=0, step=1, limit=128
        $region73: #{tpu_custom_call.1} parent=23 // loop_pre_header
          _
        $region74: #{tpu_custom_call.1} parent=23 // loop_header
          %s261 = sphi 0, %s265
          %p262 = scmp.ge.s32.totalorder %s261, 128
        $region75: #{tpu_custom_call.1} parent=23 // loop_header_branch
          %264 = sbr.rel (%p262) target = $region79
        $region76: #{tpu_custom_call.1} parent=23 // loop_body
          %s266 = sadd.s32 %s259, %s261
          %s267 = sld [smem:[#allocation5 + %s266]]
          %s268 = smul.addr %s267, 16
          %s269 = scalar_lea.hbm %s2, %s268
          %s270 = sadd.s32 %s261, 512
          %s271 = scalar_lea.vmem [#allocation2], %s270
          // Predicated region
          $region80: #{tpu_custom_call.1} parent=76 // pred_check
            _
          $region81: #{tpu_custom_call.1} parent=76 // pred_check_branch
            %273 = sbr.rel target = $region83
          $region82: #{tpu_custom_call.1} parent=76 // pred_region
            %274 = sst [smem:[#allocation12]] [#allocation21]
            %275 = sst [smem:[#allocation13]] [#allocation20]
          $region83: #{tpu_custom_call.1} parent=76 // pred_fallthru
            _
          %277 = shalt.err (0)
          %s279 = sshll.u32 %s271, 4
          %s280 = int_to_ptr.vmem [resolvable:$true] %s279
          %282 = dma.hbm_to_vmem [thread:$0]  %s269, 16, %s280, [#allocation3]
        $region77: #{tpu_custom_call.1} parent=23 // loop_footer
          %s265 = sadd.s32 1, %s261
        $region78: #{tpu_custom_call.1} parent=23 // loop_footer_branch
          %260 = sbr.rel target = $region74
        $region79: #{tpu_custom_call.1} parent=23 // loop_exit
          _
        %s283 = sadd.s32 %s153, 5
        %s284 = smul.u32 %s283, 2048
        %s285 = sadd.s32 %s284, %s154
        loop: start=0, step=1, limit=128
        $region84: #{tpu_custom_call.1} parent=23 // loop_pre_header
          _
        $region85: #{tpu_custom_call.1} parent=23 // loop_header
          %s287 = sphi 0, %s291
          %p288 = scmp.ge.s32.totalorder %s287, 128
        $region86: #{tpu_custom_call.1} parent=23 // loop_header_branch
          %290 = sbr.rel (%p288) target = $region90
        $region87: #{tpu_custom_call.1} parent=23 // loop_body
          %s292 = sadd.s32 %s285, %s287
          %s293 = sld [smem:[#allocation5 + %s292]]
          %s294 = smul.addr %s293, 16
          %s295 = scalar_lea.hbm %s2, %s294
          %s296 = sadd.s32 %s287, 640
          %s297 = scalar_lea.vmem [#allocation2], %s296
          // Predicated region
          $region91: #{tpu_custom_call.1} parent=87 // pred_check
            _
          $region92: #{tpu_custom_call.1} parent=87 // pred_check_branch
            %299 = sbr.rel target = $region94
          $region93: #{tpu_custom_call.1} parent=87 // pred_region
            %300 = sst [smem:[#allocation12]] [#allocation23]
            %301 = sst [smem:[#allocation13]] [#allocation22]
          $region94: #{tpu_custom_call.1} parent=87 // pred_fallthru
            _
          %303 = shalt.err (0)
          %s305 = sshll.u32 %s297, 4
          %s306 = int_to_ptr.vmem [resolvable:$true] %s305
          %308 = dma.hbm_to_vmem [thread:$0]  %s295, 16, %s306, [#allocation3]
        $region88: #{tpu_custom_call.1} parent=23 // loop_footer
          %s291 = sadd.s32 1, %s287
        $region89: #{tpu_custom_call.1} parent=23 // loop_footer_branch
          %286 = sbr.rel target = $region85
        $region90: #{tpu_custom_call.1} parent=23 // loop_exit
          _
        %s309 = sadd.s32 %s153, 6
        %s310 = smul.u32 %s309, 2048
        %s311 = sadd.s32 %s310, %s154
        loop: start=0, step=1, limit=128
        $region95: #{tpu_custom_call.1} parent=23 // loop_pre_header
          _
        $region96: #{tpu_custom_call.1} parent=23 // loop_header
          %s313 = sphi 0, %s317
          %p314 = scmp.ge.s32.totalorder %s313, 128
        $region97: #{tpu_custom_call.1} parent=23 // loop_header_branch
          %316 = sbr.rel (%p314) target = $region101
        $region98: #{tpu_custom_call.1} parent=23 // loop_body
          %s318 = sadd.s32 %s311, %s313
          %s319 = sld [smem:[#allocation5 + %s318]]
          %s320 = smul.addr %s319, 16
          %s321 = scalar_lea.hbm %s2, %s320
          %s322 = sadd.s32 %s313, 768
          %s323 = scalar_lea.vmem [#allocation2], %s322
          // Predicated region
          $region102: #{tpu_custom_call.1} parent=98 // pred_check
            _
          $region103: #{tpu_custom_call.1} parent=98 // pred_check_branch
            %325 = sbr.rel target = $region105
          $region104: #{tpu_custom_call.1} parent=98 // pred_region
            %326 = sst [smem:[#allocation12]] [#allocation25]
            %327 = sst [smem:[#allocation13]] [#allocation24]
          $region105: #{tpu_custom_call.1} parent=98 // pred_fallthru
            _
          %329 = shalt.err (0)
          %s331 = sshll.u32 %s323, 4
          %s332 = int_to_ptr.vmem [resolvable:$true] %s331
          %334 = dma.hbm_to_vmem [thread:$0]  %s321, 16, %s332, [#allocation3]
        $region99: #{tpu_custom_call.1} parent=23 // loop_footer
          %s317 = sadd.s32 1, %s313
        $region100: #{tpu_custom_call.1} parent=23 // loop_footer_branch
          %312 = sbr.rel target = $region96
        $region101: #{tpu_custom_call.1} parent=23 // loop_exit
          _
        %s335 = sadd.s32 %s153, 7
        %s336 = smul.u32 %s335, 2048
        %s337 = sadd.s32 %s336, %s154
        loop: start=0, step=1, limit=128
        $region106: #{tpu_custom_call.1} parent=23 // loop_pre_header
          _
        $region107: #{tpu_custom_call.1} parent=23 // loop_header
          %s339 = sphi 0, %s343
          %p340 = scmp.ge.s32.totalorder %s339, 128
        $region108: #{tpu_custom_call.1} parent=23 // loop_header_branch
          %342 = sbr.rel (%p340) target = $region112
        $region109: #{tpu_custom_call.1} parent=23 // loop_body
          %s344 = sadd.s32 %s337, %s339
          %s345 = sld [smem:[#allocation5 + %s344]]
          %s346 = smul.addr %s345, 16
          %s347 = scalar_lea.hbm %s2, %s346
          %s348 = sadd.s32 %s339, 896
          %s349 = scalar_lea.vmem [#allocation2], %s348
          // Predicated region
          $region113: #{tpu_custom_call.1} parent=109 // pred_check
            _
          $region114: #{tpu_custom_call.1} parent=109 // pred_check_branch
            %351 = sbr.rel target = $region116
          $region115: #{tpu_custom_call.1} parent=109 // pred_region
            %352 = sst [smem:[#allocation12]] [#allocation27]
            %353 = sst [smem:[#allocation13]] [#allocation26]
          $region116: #{tpu_custom_call.1} parent=109 // pred_fallthru
            _
          %355 = shalt.err (0)
          %s357 = sshll.u32 %s349, 4
          %s358 = int_to_ptr.vmem [resolvable:$true] %s357
          %360 = dma.hbm_to_vmem [thread:$0]  %s347, 16, %s358, [#allocation3]
        $region110: #{tpu_custom_call.1} parent=23 // loop_footer
          %s343 = sadd.s32 1, %s339
        $region111: #{tpu_custom_call.1} parent=23 // loop_footer_branch
          %338 = sbr.rel target = $region107
        $region112: #{tpu_custom_call.1} parent=23 // loop_exit
          _
        %v361 = vld [vmem:[%s133] sm:$0xff]
        loop: start=0, step=1, limit=8
        $region117: #{tpu_custom_call.1} parent=23 // loop_pre_header
          _
        $region118: #{tpu_custom_call.1} parent=23 // loop_header
          %s363 = sphi 0, %s367
          %p364 = scmp.ge.s32.totalorder %s363, 8
        $region119: #{tpu_custom_call.1} parent=23 // loop_header_branch
          %366 = sbr.rel (%p364) target = $region123
        $region120: #{tpu_custom_call.1} parent=23 // loop_body
          %s368 = sand.u32 %s363, 1
          %s369 = smul.u32 %s368, 1024
          %s370 = scalar_lea.vmem [#allocation2], %s369
          %s371 = scalar_lea.sflag [#allocation3], %s368
          %s372 = smul.u32 8, 128
          %s373 = smul.u32 %s372, 1
          %s374 = sshll.u32 %s373, 4
          %375 = dma.done %s371, %s374
          %s376 = sadd.s32 %s363, 1
          %p377 = scmp.lt.s32.totalorder %s376, 8
          // Predicated region
          $region124: #{tpu_custom_call.1} parent=120 // pred_check
            %p378 = pneg %p377
          $region125: #{tpu_custom_call.1} parent=120 // pred_check_branch
            %380 = sbr.rel (%p378) target = $region127
          $region126: #{tpu_custom_call.1} parent=120 // pred_region
            %s381 = ssub.s32 1, %s368
            %s382 = smul.u32 %s376, 128
            %s383 = sadd.s32 %s154, %s382
            %s384 = sadd.s32 %s155, %s383
            loop: start=0, step=1, limit=128
            $region128: #{tpu_custom_call.1} parent=126 // loop_pre_header
              _
            $region129: #{tpu_custom_call.1} parent=126 // loop_header
              %s386 = sphi 0, %s390
              %p387 = scmp.ge.s32.totalorder %s386, 128
            $region130: #{tpu_custom_call.1} parent=126 // loop_header_branch
              %389 = sbr.rel (%p387) target = $region134
            $region131: #{tpu_custom_call.1} parent=126 // loop_body
              %s391 = sadd.s32 %s384, %s386
              %s392 = sld [smem:[#allocation5 + %s391]]
              %s393 = smul.addr %s392, 16
              %s394 = scalar_lea.hbm %s2, %s393
              %s395 = smul.u32 %s381, 1024
              %s396 = sadd.s32 %s386, %s395
              %s397 = scalar_lea.vmem [#allocation2], %s396
              %s398 = scalar_lea.sflag [#allocation3], %s381
              // Predicated region
              $region135: #{tpu_custom_call.1} parent=131 // pred_check
                _
              $region136: #{tpu_custom_call.1} parent=131 // pred_check_branch
                %400 = sbr.rel target = $region138
              $region137: #{tpu_custom_call.1} parent=131 // pred_region
                %401 = sst [smem:[#allocation12]] [#allocation29]
                %402 = sst [smem:[#allocation13]] [#allocation28]
              $region138: #{tpu_custom_call.1} parent=131 // pred_fallthru
                _
              %404 = shalt.err (0)
              %s406 = sshll.u32 %s397, 4
              %s407 = int_to_ptr.vmem [resolvable:$true] %s406
              %409 = dma.hbm_to_vmem [thread:$0]  %s394, 16, %s407, %s398
            $region132: #{tpu_custom_call.1} parent=126 // loop_footer
              %s390 = sadd.s32 1, %s386
            $region133: #{tpu_custom_call.1} parent=126 // loop_footer_branch
              %385 = sbr.rel target = $region129
            $region134: #{tpu_custom_call.1} parent=126 // loop_exit
              _
            %s410 = sadd.s32 %s180, %s383
            loop: start=0, step=1, limit=128
            $region139: #{tpu_custom_call.1} parent=126 // loop_pre_header
              _
            $region140: #{tpu_custom_call.1} parent=126 // loop_header
              %s412 = sphi 0, %s416
              %p413 = scmp.ge.s32.totalorder %s412, 128
            $region141: #{tpu_custom_call.1} parent=126 // loop_header_branch
              %415 = sbr.rel (%p413) target = $region145
            $region142: #{tpu_custom_call.1} parent=126 // loop_body
              %s417 = sadd.s32 %s410, %s412
              %s418 = sld [smem:[#allocation5 + %s417]]
              %s419 = smul.addr %s418, 16
              %s420 = scalar_lea.hbm %s2, %s419
              %s421 = sadd.s32 %s412, 128
              %s422 = smul.u32 %s381, 1024
              %s423 = sadd.s32 %s421, %s422
              %s424 = scalar_lea.vmem [#allocation2], %s423
              %s425 = scalar_lea.sflag [#allocation3], %s381
              // Predicated region
              $region146: #{tpu_custom_call.1} parent=142 // pred_check
                _
              $region147: #{tpu_custom_call.1} parent=142 // pred_check_branch
                %427 = sbr.rel target = $region149
              $region148: #{tpu_custom_call.1} parent=142 // pred_region
                %428 = sst [smem:[#allocation12]] [#allocation31]
                %429 = sst [smem:[#allocation13]] [#allocation30]
              $region149: #{tpu_custom_call.1} parent=142 // pred_fallthru
                _
              %431 = shalt.err (0)
              %s433 = sshll.u32 %s424, 4
              %s434 = int_to_ptr.vmem [resolvable:$true] %s433
              %436 = dma.hbm_to_vmem [thread:$0]  %s420, 16, %s434, %s425
            $region143: #{tpu_custom_call.1} parent=126 // loop_footer
              %s416 = sadd.s32 1, %s412
            $region144: #{tpu_custom_call.1} parent=126 // loop_footer_branch
              %411 = sbr.rel target = $region140
            $region145: #{tpu_custom_call.1} parent=126 // loop_exit
              _
            %s437 = sadd.s32 %s206, %s383
            loop: start=0, step=1, limit=128
            $region150: #{tpu_custom_call.1} parent=126 // loop_pre_header
              _
            $region151: #{tpu_custom_call.1} parent=126 // loop_header
              %s439 = sphi 0, %s443
              %p440 = scmp.ge.s32.totalorder %s439, 128
            $region152: #{tpu_custom_call.1} parent=126 // loop_header_branch
              %442 = sbr.rel (%p440) target = $region156
            $region153: #{tpu_custom_call.1} parent=126 // loop_body
              %s444 = sadd.s32 %s437, %s439
              %s445 = sld [smem:[#allocation5 + %s444]]
              %s446 = smul.addr %s445, 16
              %s447 = scalar_lea.hbm %s2, %s446
              %s448 = sadd.s32 %s439, 256
              %s449 = smul.u32 %s381, 1024
              %s450 = sadd.s32 %s448, %s449
              %s451 = scalar_lea.vmem [#allocation2], %s450
              %s452 = scalar_lea.sflag [#allocation3], %s381
              // Predicated region
              $region157: #{tpu_custom_call.1} parent=153 // pred_check
                _
              $region158: #{tpu_custom_call.1} parent=153 // pred_check_branch
                %454 = sbr.rel target = $region160
              $region159: #{tpu_custom_call.1} parent=153 // pred_region
                %455 = sst [smem:[#allocation12]] [#allocation33]
                %456 = sst [smem:[#allocation13]] [#allocation32]
              $region160: #{tpu_custom_call.1} parent=153 // pred_fallthru
                _
              %458 = shalt.err (0)
              %s460 = sshll.u32 %s451, 4
              %s461 = int_to_ptr.vmem [resolvable:$true] %s460
              %463 = dma.hbm_to_vmem [thread:$0]  %s447, 16, %s461, %s452
            $region154: #{tpu_custom_call.1} parent=126 // loop_footer
              %s443 = sadd.s32 1, %s439
            $region155: #{tpu_custom_call.1} parent=126 // loop_footer_branch
              %438 = sbr.rel target = $region151
            $region156: #{tpu_custom_call.1} parent=126 // loop_exit
              _
            %s464 = sadd.s32 %s232, %s383
            loop: start=0, step=1, limit=128
            $region161: #{tpu_custom_call.1} parent=126 // loop_pre_header
              _
            $region162: #{tpu_custom_call.1} parent=126 // loop_header
              %s466 = sphi 0, %s470
              %p467 = scmp.ge.s32.totalorder %s466, 128
            $region163: #{tpu_custom_call.1} parent=126 // loop_header_branch
              %469 = sbr.rel (%p467) target = $region167
            $region164: #{tpu_custom_call.1} parent=126 // loop_body
              %s471 = sadd.s32 %s464, %s466
              %s472 = sld [smem:[#allocation5 + %s471]]
              %s473 = smul.addr %s472, 16
              %s474 = scalar_lea.hbm %s2, %s473
              %s475 = sadd.s32 %s466, 384
              %s476 = smul.u32 %s381, 1024
              %s477 = sadd.s32 %s475, %s476
              %s478 = scalar_lea.vmem [#allocation2], %s477
              %s479 = scalar_lea.sflag [#allocation3], %s381
              // Predicated region
              $region168: #{tpu_custom_call.1} parent=164 // pred_check
                _
              $region169: #{tpu_custom_call.1} parent=164 // pred_check_branch
                %481 = sbr.rel target = $region171
              $region170: #{tpu_custom_call.1} parent=164 // pred_region
                %482 = sst [smem:[#allocation12]] [#allocation35]
                %483 = sst [smem:[#allocation13]] [#allocation34]
              $region171: #{tpu_custom_call.1} parent=164 // pred_fallthru
                _
              %485 = shalt.err (0)
              %s487 = sshll.u32 %s478, 4
              %s488 = int_to_ptr.vmem [resolvable:$true] %s487
              %490 = dma.hbm_to_vmem [thread:$0]  %s474, 16, %s488, %s479
            $region165: #{tpu_custom_call.1} parent=126 // loop_footer
              %s470 = sadd.s32 1, %s466
            $region166: #{tpu_custom_call.1} parent=126 // loop_footer_branch
              %465 = sbr.rel target = $region162
            $region167: #{tpu_custom_call.1} parent=126 // loop_exit
              _
            %s491 = sadd.s32 %s258, %s383
            loop: start=0, step=1, limit=128
            $region172: #{tpu_custom_call.1} parent=126 // loop_pre_header
              _
            $region173: #{tpu_custom_call.1} parent=126 // loop_header
              %s493 = sphi 0, %s497
              %p494 = scmp.ge.s32.totalorder %s493, 128
            $region174: #{tpu_custom_call.1} parent=126 // loop_header_branch
              %496 = sbr.rel (%p494) target = $region178
            $region175: #{tpu_custom_call.1} parent=126 // loop_body
              %s498 = sadd.s32 %s491, %s493
              %s499 = sld [smem:[#allocation5 + %s498]]
              %s500 = smul.addr %s499, 16
              %s501 = scalar_lea.hbm %s2, %s500
              %s502 = sadd.s32 %s493, 512
              %s503 = smul.u32 %s381, 1024
              %s504 = sadd.s32 %s502, %s503
              %s505 = scalar_lea.vmem [#allocation2], %s504
              %s506 = scalar_lea.sflag [#allocation3], %s381
              // Predicated region
              $region179: #{tpu_custom_call.1} parent=175 // pred_check
                _
              $region180: #{tpu_custom_call.1} parent=175 // pred_check_branch
                %508 = sbr.rel target = $region182
              $region181: #{tpu_custom_call.1} parent=175 // pred_region
                %509 = sst [smem:[#allocation12]] [#allocation37]
                %510 = sst [smem:[#allocation13]] [#allocation36]
              $region182: #{tpu_custom_call.1} parent=175 // pred_fallthru
                _
              %512 = shalt.err (0)
              %s514 = sshll.u32 %s505, 4
              %s515 = int_to_ptr.vmem [resolvable:$true] %s514
              %517 = dma.hbm_to_vmem [thread:$0]  %s501, 16, %s515, %s506
            $region176: #{tpu_custom_call.1} parent=126 // loop_footer
              %s497 = sadd.s32 1, %s493
            $region177: #{tpu_custom_call.1} parent=126 // loop_footer_branch
              %492 = sbr.rel target = $region173
            $region178: #{tpu_custom_call.1} parent=126 // loop_exit
              _
            %s518 = sadd.s32 %s284, %s383
            loop: start=0, step=1, limit=128
            $region183: #{tpu_custom_call.1} parent=126 // loop_pre_header
              _
            $region184: #{tpu_custom_call.1} parent=126 // loop_header
              %s520 = sphi 0, %s524
              %p521 = scmp.ge.s32.totalorder %s520, 128
            $region185: #{tpu_custom_call.1} parent=126 // loop_header_branch
              %523 = sbr.rel (%p521) target = $region189
            $region186: #{tpu_custom_call.1} parent=126 // loop_body
              %s525 = sadd.s32 %s518, %s520
              %s526 = sld [smem:[#allocation5 + %s525]]
              %s527 = smul.addr %s526, 16
              %s528 = scalar_lea.hbm %s2, %s527
              %s529 = sadd.s32 %s520, 640
              %s530 = smul.u32 %s381, 1024
              %s531 = sadd.s32 %s529, %s530
              %s532 = scalar_lea.vmem [#allocation2], %s531
              %s533 = scalar_lea.sflag [#allocation3], %s381
              // Predicated region
              $region190: #{tpu_custom_call.1} parent=186 // pred_check
                _
              $region191: #{tpu_custom_call.1} parent=186 // pred_check_branch
                %535 = sbr.rel target = $region193
              $region192: #{tpu_custom_call.1} parent=186 // pred_region
                %536 = sst [smem:[#allocation12]] [#allocation39]
                %537 = sst [smem:[#allocation13]] [#allocation38]
              $region193: #{tpu_custom_call.1} parent=186 // pred_fallthru
                _
              %539 = shalt.err (0)
              %s541 = sshll.u32 %s532, 4
              %s542 = int_to_ptr.vmem [resolvable:$true] %s541
              %544 = dma.hbm_to_vmem [thread:$0]  %s528, 16, %s542, %s533
            $region187: #{tpu_custom_call.1} parent=126 // loop_footer
              %s524 = sadd.s32 1, %s520
            $region188: #{tpu_custom_call.1} parent=126 // loop_footer_branch
              %519 = sbr.rel target = $region184
            $region189: #{tpu_custom_call.1} parent=126 // loop_exit
              _
            %s545 = sadd.s32 %s310, %s383
            loop: start=0, step=1, limit=128
            $region194: #{tpu_custom_call.1} parent=126 // loop_pre_header
              _
            $region195: #{tpu_custom_call.1} parent=126 // loop_header
              %s547 = sphi 0, %s551
              %p548 = scmp.ge.s32.totalorder %s547, 128
            $region196: #{tpu_custom_call.1} parent=126 // loop_header_branch
              %550 = sbr.rel (%p548) target = $region200
            $region197: #{tpu_custom_call.1} parent=126 // loop_body
              %s552 = sadd.s32 %s545, %s547
              %s553 = sld [smem:[#allocation5 + %s552]]
              %s554 = smul.addr %s553, 16
              %s555 = scalar_lea.hbm %s2, %s554
              %s556 = sadd.s32 %s547, 768
              %s557 = smul.u32 %s381, 1024
              %s558 = sadd.s32 %s556, %s557
              %s559 = scalar_lea.vmem [#allocation2], %s558
              %s560 = scalar_lea.sflag [#allocation3], %s381
              // Predicated region
              $region201: #{tpu_custom_call.1} parent=197 // pred_check
                _
              $region202: #{tpu_custom_call.1} parent=197 // pred_check_branch
                %562 = sbr.rel target = $region204
              $region203: #{tpu_custom_call.1} parent=197 // pred_region
                %563 = sst [smem:[#allocation12]] [#allocation41]
                %564 = sst [smem:[#allocation13]] [#allocation40]
              $region204: #{tpu_custom_call.1} parent=197 // pred_fallthru
                _
              %566 = shalt.err (0)
              %s568 = sshll.u32 %s559, 4
              %s569 = int_to_ptr.vmem [resolvable:$true] %s568
              %571 = dma.hbm_to_vmem [thread:$0]  %s555, 16, %s569, %s560
            $region198: #{tpu_custom_call.1} parent=126 // loop_footer
              %s551 = sadd.s32 1, %s547
            $region199: #{tpu_custom_call.1} parent=126 // loop_footer_branch
              %546 = sbr.rel target = $region195
            $region200: #{tpu_custom_call.1} parent=126 // loop_exit
              _
            %s572 = sadd.s32 %s336, %s383
            loop: start=0, step=1, limit=128
            $region205: #{tpu_custom_call.1} parent=126 // loop_pre_header
              _
            $region206: #{tpu_custom_call.1} parent=126 // loop_header
              %s574 = sphi 0, %s578
              %p575 = scmp.ge.s32.totalorder %s574, 128
            $region207: #{tpu_custom_call.1} parent=126 // loop_header_branch
              %577 = sbr.rel (%p575) target = $region211
            $region208: #{tpu_custom_call.1} parent=126 // loop_body
              %s579 = sadd.s32 %s572, %s574
              %s580 = sld [smem:[#allocation5 + %s579]]
              %s581 = smul.addr %s580, 16
              %s582 = scalar_lea.hbm %s2, %s581
              %s583 = sadd.s32 %s574, 896
              %s584 = smul.u32 %s381, 1024
              %s585 = sadd.s32 %s583, %s584
              %s586 = scalar_lea.vmem [#allocation2], %s585
              %s587 = scalar_lea.sflag [#allocation3], %s381
              // Predicated region
              $region212: #{tpu_custom_call.1} parent=208 // pred_check
                _
              $region213: #{tpu_custom_call.1} parent=208 // pred_check_branch
                %589 = sbr.rel target = $region215
              $region214: #{tpu_custom_call.1} parent=208 // pred_region
                %590 = sst [smem:[#allocation12]] [#allocation43]
                %591 = sst [smem:[#allocation13]] [#allocation42]
              $region215: #{tpu_custom_call.1} parent=208 // pred_fallthru
                _
              %593 = shalt.err (0)
              %s595 = sshll.u32 %s586, 4
              %s596 = int_to_ptr.vmem [resolvable:$true] %s595
              %598 = dma.hbm_to_vmem [thread:$0]  %s582, 16, %s596, %s587
            $region209: #{tpu_custom_call.1} parent=126 // loop_footer
              %s578 = sadd.s32 1, %s574
            $region210: #{tpu_custom_call.1} parent=126 // loop_footer_branch
              %573 = sbr.rel target = $region206
            $region211: #{tpu_custom_call.1} parent=126 // loop_exit
              _
          $region127: #{tpu_custom_call.1} parent=120 // pred_fallthru
            _
          %v599 = vld [vmem:[%s370] sm:$0xff]
          %v600 = vld [vmem:[%s370 + $0x8] sm:$0xff]
          %v601 = vld [vmem:[%s370 + $0x10] sm:$0xff]
          %v602 = vld [vmem:[%s370 + $0x18] sm:$0xff]
          %v603 = vld [vmem:[%s370 + $0x20] sm:$0xff]
          %v604 = vld [vmem:[%s370 + $0x28] sm:$0xff]
          %v605 = vld [vmem:[%s370 + $0x30] sm:$0xff]
          %v606 = vld [vmem:[%s370 + $0x38] sm:$0xff]
          %v607 = vld [vmem:[%s370 + $0x40] sm:$0xff]
          %v608 = vld [vmem:[%s370 + $0x48] sm:$0xff]
          %v609 = vld [vmem:[%s370 + $0x50] sm:$0xff]
          %v610 = vld [vmem:[%s370 + $0x58] sm:$0xff]
          %v611 = vld [vmem:[%s370 + $0x60] sm:$0xff]
          %v612 = vld [vmem:[%s370 + $0x68] sm:$0xff]
          %v613 = vld [vmem:[%s370 + $0x70] sm:$0xff]
          %v614 = vld [vmem:[%s370 + $0x78] sm:$0xff]
          %v615 = vld [vmem:[%s370 + $0x80] sm:$0xff]
          %v616 = vld [vmem:[%s370 + $0x88] sm:$0xff]
          %v617 = vld [vmem:[%s370 + $0x90] sm:$0xff]
          %v618 = vld [vmem:[%s370 + $0x98] sm:$0xff]
          %v619 = vld [vmem:[%s370 + $0xa0] sm:$0xff]
          %v620 = vld [vmem:[%s370 + $0xa8] sm:$0xff]
          %v621 = vld [vmem:[%s370 + $0xb0] sm:$0xff]
          %v622 = vld [vmem:[%s370 + $0xb8] sm:$0xff]
          %v623 = vld [vmem:[%s370 + $0xc0] sm:$0xff]
          %v624 = vld [vmem:[%s370 + $0xc8] sm:$0xff]
          %v625 = vld [vmem:[%s370 + $0xd0] sm:$0xff]
          %v626 = vld [vmem:[%s370 + $0xd8] sm:$0xff]
          %v627 = vld [vmem:[%s370 + $0xe0] sm:$0xff]
          %v628 = vld [vmem:[%s370 + $0xe8] sm:$0xff]
          %v629 = vld [vmem:[%s370 + $0xf0] sm:$0xff]
          %v630 = vld [vmem:[%s370 + $0xf8] sm:$0xff]
          %v631 = vld [vmem:[%s370 + $0x100] sm:$0xff]
          %v632 = vld [vmem:[%s370 + $0x108] sm:$0xff]
          %v633 = vld [vmem:[%s370 + $0x110] sm:$0xff]
          %v634 = vld [vmem:[%s370 + $0x118] sm:$0xff]
          %v635 = vld [vmem:[%s370 + $0x120] sm:$0xff]
          %v636 = vld [vmem:[%s370 + $0x128] sm:$0xff]
          %v637 = vld [vmem:[%s370 + $0x130] sm:$0xff]
          %v638 = vld [vmem:[%s370 + $0x138] sm:$0xff]
          %v639 = vld [vmem:[%s370 + $0x140] sm:$0xff]
          %v640 = vld [vmem:[%s370 + $0x148] sm:$0xff]
          %v641 = vld [vmem:[%s370 + $0x150] sm:$0xff]
          %v642 = vld [vmem:[%s370 + $0x158] sm:$0xff]
          %v643 = vld [vmem:[%s370 + $0x160] sm:$0xff]
          %v644 = vld [vmem:[%s370 + $0x168] sm:$0xff]
          %v645 = vld [vmem:[%s370 + $0x170] sm:$0xff]
          %v646 = vld [vmem:[%s370 + $0x178] sm:$0xff]
          %v647 = vld [vmem:[%s370 + $0x180] sm:$0xff]
          %v648 = vld [vmem:[%s370 + $0x188] sm:$0xff]
          %v649 = vld [vmem:[%s370 + $0x190] sm:$0xff]
          %v650 = vld [vmem:[%s370 + $0x198] sm:$0xff]
          %v651 = vld [vmem:[%s370 + $0x1a0] sm:$0xff]
          %v652 = vld [vmem:[%s370 + $0x1a8] sm:$0xff]
          %v653 = vld [vmem:[%s370 + $0x1b0] sm:$0xff]
          %v654 = vld [vmem:[%s370 + $0x1b8] sm:$0xff]
          %v655 = vld [vmem:[%s370 + $0x1c0] sm:$0xff]
          %v656 = vld [vmem:[%s370 + $0x1c8] sm:$0xff]
          %v657 = vld [vmem:[%s370 + $0x1d0] sm:$0xff]
          %v658 = vld [vmem:[%s370 + $0x1d8] sm:$0xff]
          %v659 = vld [vmem:[%s370 + $0x1e0] sm:$0xff]
          %v660 = vld [vmem:[%s370 + $0x1e8] sm:$0xff]
          %v661 = vld [vmem:[%s370 + $0x1f0] sm:$0xff]
          %v662 = vld [vmem:[%s370 + $0x1f8] sm:$0xff]
          %v663 = vld [vmem:[%s370 + $0x200] sm:$0xff]
          %v664 = vld [vmem:[%s370 + $0x208] sm:$0xff]
          %v665 = vld [vmem:[%s370 + $0x210] sm:$0xff]
          %v666 = vld [vmem:[%s370 + $0x218] sm:$0xff]
          %v667 = vld [vmem:[%s370 + $0x220] sm:$0xff]
          %v668 = vld [vmem:[%s370 + $0x228] sm:$0xff]
          %v669 = vld [vmem:[%s370 + $0x230] sm:$0xff]
          %v670 = vld [vmem:[%s370 + $0x238] sm:$0xff]
          %v671 = vld [vmem:[%s370 + $0x240] sm:$0xff]
          %v672 = vld [vmem:[%s370 + $0x248] sm:$0xff]
          %v673 = vld [vmem:[%s370 + $0x250] sm:$0xff]
          %v674 = vld [vmem:[%s370 + $0x258] sm:$0xff]
          %v675 = vld [vmem:[%s370 + $0x260] sm:$0xff]
          %v676 = vld [vmem:[%s370 + $0x268] sm:$0xff]
          %v677 = vld [vmem:[%s370 + $0x270] sm:$0xff]
          %v678 = vld [vmem:[%s370 + $0x278] sm:$0xff]
          %v679 = vld [vmem:[%s370 + $0x280] sm:$0xff]
          %v680 = vld [vmem:[%s370 + $0x288] sm:$0xff]
          %v681 = vld [vmem:[%s370 + $0x290] sm:$0xff]
          %v682 = vld [vmem:[%s370 + $0x298] sm:$0xff]
          %v683 = vld [vmem:[%s370 + $0x2a0] sm:$0xff]
          %v684 = vld [vmem:[%s370 + $0x2a8] sm:$0xff]
          %v685 = vld [vmem:[%s370 + $0x2b0] sm:$0xff]
          %v686 = vld [vmem:[%s370 + $0x2b8] sm:$0xff]
          %v687 = vld [vmem:[%s370 + $0x2c0] sm:$0xff]
          %v688 = vld [vmem:[%s370 + $0x2c8] sm:$0xff]
          %v689 = vld [vmem:[%s370 + $0x2d0] sm:$0xff]
          %v690 = vld [vmem:[%s370 + $0x2d8] sm:$0xff]
          %v691 = vld [vmem:[%s370 + $0x2e0] sm:$0xff]
          %v692 = vld [vmem:[%s370 + $0x2e8] sm:$0xff]
          %v693 = vld [vmem:[%s370 + $0x2f0] sm:$0xff]
          %v694 = vld [vmem:[%s370 + $0x2f8] sm:$0xff]
          %v695 = vld [vmem:[%s370 + $0x300] sm:$0xff]
          %v696 = vld [vmem:[%s370 + $0x308] sm:$0xff]
          %v697 = vld [vmem:[%s370 + $0x310] sm:$0xff]
          %v698 = vld [vmem:[%s370 + $0x318] sm:$0xff]
          %v699 = vld [vmem:[%s370 + $0x320] sm:$0xff]
          %v700 = vld [vmem:[%s370 + $0x328] sm:$0xff]
          %v701 = vld [vmem:[%s370 + $0x330] sm:$0xff]
          %v702 = vld [vmem:[%s370 + $0x338] sm:$0xff]
          %v703 = vld [vmem:[%s370 + $0x340] sm:$0xff]
          %v704 = vld [vmem:[%s370 + $0x348] sm:$0xff]
          %v705 = vld [vmem:[%s370 + $0x350] sm:$0xff]
          %v706 = vld [vmem:[%s370 + $0x358] sm:$0xff]
          %v707 = vld [vmem:[%s370 + $0x360] sm:$0xff]
          %v708 = vld [vmem:[%s370 + $0x368] sm:$0xff]
          %v709 = vld [vmem:[%s370 + $0x370] sm:$0xff]
          %v710 = vld [vmem:[%s370 + $0x378] sm:$0xff]
          %v711 = vld [vmem:[%s370 + $0x380] sm:$0xff]
          %v712 = vld [vmem:[%s370 + $0x388] sm:$0xff]
          %v713 = vld [vmem:[%s370 + $0x390] sm:$0xff]
          %v714 = vld [vmem:[%s370 + $0x398] sm:$0xff]
          %v715 = vld [vmem:[%s370 + $0x3a0] sm:$0xff]
          %v716 = vld [vmem:[%s370 + $0x3a8] sm:$0xff]
          %v717 = vld [vmem:[%s370 + $0x3b0] sm:$0xff]
          %v718 = vld [vmem:[%s370 + $0x3b8] sm:$0xff]
          %v719 = vld [vmem:[%s370 + $0x3c0] sm:$0xff]
          %v720 = vld [vmem:[%s370 + $0x3c8] sm:$0xff]
          %v721 = vld [vmem:[%s370 + $0x3d0] sm:$0xff]
          %v722 = vld [vmem:[%s370 + $0x3d8] sm:$0xff]
          %v723 = vld [vmem:[%s370 + $0x3e0] sm:$0xff]
          %v724 = vld [vmem:[%s370 + $0x3e8] sm:$0xff]
          %v725 = vld [vmem:[%s370 + $0x3f0] sm:$0xff]
          %v726 = vld [vmem:[%s370 + $0x3f8] sm:$0xff]
          %s727 = smul.u32 %s363, 128
          %v729 = vcombine.high %v361, %v361
          %v731 = vunpack.c.l.s4 1966171168
          %v732 = vunpack.c.0.s8 %v731
          %v733 = vlaneseq
          %v734 = vshrl.u32 %v733, 7
          %v735 = vsub.s32 %v732, %v734
          %v736 = vrot.slane %v361, %v735
          %v738 = vunpack.c.l.s4 1966171168
          %v739 = vunpack.c.0.s8 %v738
          %v740 = vlaneseq
          %v741 = vshrl.u32 %v740, 7
          %v742 = vsub.s32 %v739, %v741
          %v743 = vrot.slane %v729, %v742
          %v744 = vcombine.high %v736, %v736
          %v745 = vcombine.high %v743, %v743
          %v747 = vunpack.c.l.s4 1966171168
          %v748 = vunpack.c.0.s8 %v747
          %v749 = vlaneseq
          %v750 = vshrl.u32 %v749, 7
          %v751 = vsub.s32 %v748, %v750
          %v752 = vrot.slane %v736, %v751
          %v754 = vunpack.c.l.s4 1966171168
          %v755 = vunpack.c.0.s8 %v754
          %v756 = vlaneseq
          %v757 = vshrl.u32 %v756, 7
          %v758 = vsub.s32 %v755, %v757
          %v759 = vrot.slane %v743, %v758
          %v761 = vunpack.c.l.s4 1966171168
          %v762 = vunpack.c.0.s8 %v761
          %v763 = vlaneseq
          %v764 = vshrl.u32 %v763, 7
          %v765 = vsub.s32 %v762, %v764
          %v766 = vrot.slane %v744, %v765
          %v768 = vunpack.c.l.s4 1966171168
          %v769 = vunpack.c.0.s8 %v768
          %v770 = vlaneseq
          %v771 = vshrl.u32 %v770, 7
          %v772 = vsub.s32 %v769, %v771
          %v773 = vrot.slane %v745, %v772
          %v774 = vcombine.high %v752, %v752
          %v775 = vcombine.high %v759, %v759
          %v776 = vcombine.high %v766, %v766
          %v777 = vcombine.high %v773, %v773
          %v778 = vlaneseq
          %v779 = vshrl.u32 %v778, 7
          %v780 = vsub.s32 0, %v779
          %v781 = vrot.slane %v752, %v780
          %v782 = vlaneseq
          %v783 = vshrl.u32 %v782, 7
          %v784 = vsub.s32 0, %v783
          %v785 = vrot.slane %v766, %v784
          %v786 = vlaneseq
          %v787 = vshrl.u32 %v786, 7
          %v788 = vsub.s32 0, %v787
          %v789 = vrot.slane %v774, %v788
          %v790 = vlaneseq
          %v791 = vshrl.u32 %v790, 7
          %v792 = vsub.s32 0, %v791
          %v793 = vrot.slane %v776, %v792
          %v794 = vlaneseq
          %v795 = vshrl.u32 %v794, 7
          %v796 = vsub.s32 0, %v795
          %v797 = vrot.slane %v759, %v796
          %v798 = vlaneseq
          %v799 = vshrl.u32 %v798, 7
          %v800 = vsub.s32 0, %v799
          %v801 = vrot.slane %v773, %v800
          %v802 = vlaneseq
          %v803 = vshrl.u32 %v802, 7
          %v804 = vsub.s32 0, %v803
          %v805 = vrot.slane %v775, %v804
          %v806 = vlaneseq
          %v807 = vshrl.u32 %v806, 7
          %v808 = vsub.s32 0, %v807
          %v809 = vrot.slane %v777, %v808
          %v818 = vsub.f32 %v781, %v599
          %v819 = vsub.f32 %v781, %v600
          %v820 = vsub.f32 %v781, %v601
          %v821 = vsub.f32 %v781, %v602
          %v822 = vsub.f32 %v781, %v603
          %v823 = vsub.f32 %v781, %v604
          %v824 = vsub.f32 %v781, %v605
          %v825 = vsub.f32 %v781, %v606
          %v826 = vsub.f32 %v781, %v607
          %v827 = vsub.f32 %v781, %v608
          %v828 = vsub.f32 %v781, %v609
          %v829 = vsub.f32 %v781, %v610
          %v830 = vsub.f32 %v781, %v611
          %v831 = vsub.f32 %v781, %v612
          %v832 = vsub.f32 %v781, %v613
          %v833 = vsub.f32 %v781, %v614
          %v834 = vsub.f32 %v785, %v615
          %v835 = vsub.f32 %v785, %v616
          %v836 = vsub.f32 %v785, %v617
          %v837 = vsub.f32 %v785, %v618
          %v838 = vsub.f32 %v785, %v619
          %v839 = vsub.f32 %v785, %v620
          %v840 = vsub.f32 %v785, %v621
          %v841 = vsub.f32 %v785, %v622
          %v842 = vsub.f32 %v785, %v623
          %v843 = vsub.f32 %v785, %v624
          %v844 = vsub.f32 %v785, %v625
          %v845 = vsub.f32 %v785, %v626
          %v846 = vsub.f32 %v785, %v627
          %v847 = vsub.f32 %v785, %v628
          %v848 = vsub.f32 %v785, %v629
          %v849 = vsub.f32 %v785, %v630
          %v850 = vsub.f32 %v789, %v631
          %v851 = vsub.f32 %v789, %v632
          %v852 = vsub.f32 %v789, %v633
          %v853 = vsub.f32 %v789, %v634
          %v854 = vsub.f32 %v789, %v635
          %v855 = vsub.f32 %v789, %v636
          %v856 = vsub.f32 %v789, %v637
          %v857 = vsub.f32 %v789, %v638
          %v858 = vsub.f32 %v789, %v639
          %v859 = vsub.f32 %v789, %v640
          %v860 = vsub.f32 %v789, %v641
          %v861 = vsub.f32 %v789, %v642
          %v862 = vsub.f32 %v789, %v643
          %v863 = vsub.f32 %v789, %v644
          %v864 = vsub.f32 %v789, %v645
          %v865 = vsub.f32 %v789, %v646
          %v866 = vsub.f32 %v793, %v647
          %v867 = vsub.f32 %v793, %v648
          %v868 = vsub.f32 %v793, %v649
          %v869 = vsub.f32 %v793, %v650
          %v870 = vsub.f32 %v793, %v651
          %v871 = vsub.f32 %v793, %v652
          %v872 = vsub.f32 %v793, %v653
          %v873 = vsub.f32 %v793, %v654
          %v874 = vsub.f32 %v793, %v655
          %v875 = vsub.f32 %v793, %v656
          %v876 = vsub.f32 %v793, %v657
          %v877 = vsub.f32 %v793, %v658
          %v878 = vsub.f32 %v793, %v659
          %v879 = vsub.f32 %v793, %v660
          %v880 = vsub.f32 %v793, %v661
          %v881 = vsub.f32 %v793, %v662
          %v882 = vsub.f32 %v797, %v663
          %v883 = vsub.f32 %v797, %v664
          %v884 = vsub.f32 %v797, %v665
          %v885 = vsub.f32 %v797, %v666
          %v886 = vsub.f32 %v797, %v667
          %v887 = vsub.f32 %v797, %v668
          %v888 = vsub.f32 %v797, %v669
          %v889 = vsub.f32 %v797, %v670
          %v890 = vsub.f32 %v797, %v671
          %v891 = vsub.f32 %v797, %v672
          %v892 = vsub.f32 %v797, %v673
          %v893 = vsub.f32 %v797, %v674
          %v894 = vsub.f32 %v797, %v675
          %v895 = vsub.f32 %v797, %v676
          %v896 = vsub.f32 %v797, %v677
          %v897 = vsub.f32 %v797, %v678
          %v898 = vsub.f32 %v801, %v679
          %v899 = vsub.f32 %v801, %v680
          %v900 = vsub.f32 %v801, %v681
          %v901 = vsub.f32 %v801, %v682
          %v902 = vsub.f32 %v801, %v683
          %v903 = vsub.f32 %v801, %v684
          %v904 = vsub.f32 %v801, %v685
          %v905 = vsub.f32 %v801, %v686
          %v906 = vsub.f32 %v801, %v687
          %v907 = vsub.f32 %v801, %v688
          %v908 = vsub.f32 %v801, %v689
          %v909 = vsub.f32 %v801, %v690
          %v910 = vsub.f32 %v801, %v691
          %v911 = vsub.f32 %v801, %v692
          %v912 = vsub.f32 %v801, %v693
          %v913 = vsub.f32 %v801, %v694
          %v914 = vsub.f32 %v805, %v695
          %v915 = vsub.f32 %v805, %v696
          %v916 = vsub.f32 %v805, %v697
          %v917 = vsub.f32 %v805, %v698
          %v918 = vsub.f32 %v805, %v699
          %v919 = vsub.f32 %v805, %v700
          %v920 = vsub.f32 %v805, %v701
          %v921 = vsub.f32 %v805, %v702
          %v922 = vsub.f32 %v805, %v703
          %v923 = vsub.f32 %v805, %v704
          %v924 = vsub.f32 %v805, %v705
          %v925 = vsub.f32 %v805, %v706
          %v926 = vsub.f32 %v805, %v707
          %v927 = vsub.f32 %v805, %v708
          %v928 = vsub.f32 %v805, %v709
          %v929 = vsub.f32 %v805, %v710
          %v930 = vsub.f32 %v809, %v711
          %v931 = vsub.f32 %v809, %v712
          %v932 = vsub.f32 %v809, %v713
          %v933 = vsub.f32 %v809, %v714
          %v934 = vsub.f32 %v809, %v715
          %v935 = vsub.f32 %v809, %v716
          %v936 = vsub.f32 %v809, %v717
          %v937 = vsub.f32 %v809, %v718
          %v938 = vsub.f32 %v809, %v719
          %v939 = vsub.f32 %v809, %v720
          %v940 = vsub.f32 %v809, %v721
          %v941 = vsub.f32 %v809, %v722
          %v942 = vsub.f32 %v809, %v723
          %v943 = vsub.f32 %v809, %v724
          %v944 = vsub.f32 %v809, %v725
          %v945 = vsub.f32 %v809, %v726
          %v946 = vand.u32 2147483647, %v818
          %v947 = vand.u32 2147483647, %v819
          %v948 = vand.u32 2147483647, %v820
          %v949 = vand.u32 2147483647, %v821
          %v950 = vand.u32 2147483647, %v822
          %v951 = vand.u32 2147483647, %v823
          %v952 = vand.u32 2147483647, %v824
          %v953 = vand.u32 2147483647, %v825
          %v954 = vand.u32 2147483647, %v826
          %v955 = vand.u32 2147483647, %v827
          %v956 = vand.u32 2147483647, %v828
          %v957 = vand.u32 2147483647, %v829
          %v958 = vand.u32 2147483647, %v830
          %v959 = vand.u32 2147483647, %v831
          %v960 = vand.u32 2147483647, %v832
          %v961 = vand.u32 2147483647, %v833
          %v962 = vand.u32 2147483647, %v834
          %v963 = vand.u32 2147483647, %v835
          %v964 = vand.u32 2147483647, %v836
          %v965 = vand.u32 2147483647, %v837
          %v966 = vand.u32 2147483647, %v838
          %v967 = vand.u32 2147483647, %v839
          %v968 = vand.u32 2147483647, %v840
          %v969 = vand.u32 2147483647, %v841
          %v970 = vand.u32 2147483647, %v842
          %v971 = vand.u32 2147483647, %v843
          %v972 = vand.u32 2147483647, %v844
          %v973 = vand.u32 2147483647, %v845
          %v974 = vand.u32 2147483647, %v846
          %v975 = vand.u32 2147483647, %v847
          %v976 = vand.u32 2147483647, %v848
          %v977 = vand.u32 2147483647, %v849
          %v978 = vand.u32 2147483647, %v850
          %v979 = vand.u32 2147483647, %v851
          %v980 = vand.u32 2147483647, %v852
          %v981 = vand.u32 2147483647, %v853
          %v982 = vand.u32 2147483647, %v854
          %v983 = vand.u32 2147483647, %v855
          %v984 = vand.u32 2147483647, %v856
          %v985 = vand.u32 2147483647, %v857
          %v986 = vand.u32 2147483647, %v858
          %v987 = vand.u32 2147483647, %v859
          %v988 = vand.u32 2147483647, %v860
          %v989 = vand.u32 2147483647, %v861
          %v990 = vand.u32 2147483647, %v862
          %v991 = vand.u32 2147483647, %v863
          %v992 = vand.u32 2147483647, %v864
          %v993 = vand.u32 2147483647, %v865
          %v994 = vand.u32 2147483647, %v866
          %v995 = vand.u32 2147483647, %v867
          %v996 = vand.u32 2147483647, %v868
          %v997 = vand.u32 2147483647, %v869
          %v998 = vand.u32 2147483647, %v870
          %v999 = vand.u32 2147483647, %v871
          %v1000 = vand.u32 2147483647, %v872
          %v1001 = vand.u32 2147483647, %v873
          %v1002 = vand.u32 2147483647, %v874
          %v1003 = vand.u32 2147483647, %v875
          %v1004 = vand.u32 2147483647, %v876
          %v1005 = vand.u32 2147483647, %v877
          %v1006 = vand.u32 2147483647, %v878
          %v1007 = vand.u32 2147483647, %v879
          %v1008 = vand.u32 2147483647, %v880
          %v1009 = vand.u32 2147483647, %v881
          %v1010 = vand.u32 2147483647, %v882
          %v1011 = vand.u32 2147483647, %v883
          %v1012 = vand.u32 2147483647, %v884
          %v1013 = vand.u32 2147483647, %v885
          %v1014 = vand.u32 2147483647, %v886
          %v1015 = vand.u32 2147483647, %v887
          %v1016 = vand.u32 2147483647, %v888
          %v1017 = vand.u32 2147483647, %v889
          %v1018 = vand.u32 2147483647, %v890
          %v1019 = vand.u32 2147483647, %v891
          %v1020 = vand.u32 2147483647, %v892
          %v1021 = vand.u32 2147483647, %v893
          %v1022 = vand.u32 2147483647, %v894
          %v1023 = vand.u32 2147483647, %v895
          %v1024 = vand.u32 2147483647, %v896
          %v1025 = vand.u32 2147483647, %v897
          %v1026 = vand.u32 2147483647, %v898
          %v1027 = vand.u32 2147483647, %v899
          %v1028 = vand.u32 2147483647, %v900
          %v1029 = vand.u32 2147483647, %v901
          %v1030 = vand.u32 2147483647, %v902
          %v1031 = vand.u32 2147483647, %v903
          %v1032 = vand.u32 2147483647, %v904
          %v1033 = vand.u32 2147483647, %v905
          %v1034 = vand.u32 2147483647, %v906
          %v1035 = vand.u32 2147483647, %v907
          %v1036 = vand.u32 2147483647, %v908
          %v1037 = vand.u32 2147483647, %v909
          %v1038 = vand.u32 2147483647, %v910
          %v1039 = vand.u32 2147483647, %v911
          %v1040 = vand.u32 2147483647, %v912
          %v1041 = vand.u32 2147483647, %v913
          %v1042 = vand.u32 2147483647, %v914
          %v1043 = vand.u32 2147483647, %v915
          %v1044 = vand.u32 2147483647, %v916
          %v1045 = vand.u32 2147483647, %v917
          %v1046 = vand.u32 2147483647, %v918
          %v1047 = vand.u32 2147483647, %v919
          %v1048 = vand.u32 2147483647, %v920
          %v1049 = vand.u32 2147483647, %v921
          %v1050 = vand.u32 2147483647, %v922
          %v1051 = vand.u32 2147483647, %v923
          %v1052 = vand.u32 2147483647, %v924
          %v1053 = vand.u32 2147483647, %v925
          %v1054 = vand.u32 2147483647, %v926
          %v1055 = vand.u32 2147483647, %v927
          %v1056 = vand.u32 2147483647, %v928
          %v1057 = vand.u32 2147483647, %v929
          %v1058 = vand.u32 2147483647, %v930
          %v1059 = vand.u32 2147483647, %v931
          %v1060 = vand.u32 2147483647, %v932
          %v1061 = vand.u32 2147483647, %v933
          %v1062 = vand.u32 2147483647, %v934
          %v1063 = vand.u32 2147483647, %v935
          %v1064 = vand.u32 2147483647, %v936
          %v1065 = vand.u32 2147483647, %v937
          %v1066 = vand.u32 2147483647, %v938
          %v1067 = vand.u32 2147483647, %v939
          %v1068 = vand.u32 2147483647, %v940
          %v1069 = vand.u32 2147483647, %v941
          %v1070 = vand.u32 2147483647, %v942
          %v1071 = vand.u32 2147483647, %v943
          %v1072 = vand.u32 2147483647, %v944
          %v1073 = vand.u32 2147483647, %v945
          %1074 = vadd.xlane.f32.xlu0 %v946
          %v1075 = vpop.xlane.xlu0 %1074
          %1076 = vadd.xlane.f32.xlu0 %v947
          %v1077 = vpop.xlane.xlu0 %1076
          %1078 = vadd.xlane.f32.xlu0 %v948
          %v1079 = vpop.xlane.xlu0 %1078
          %1080 = vadd.xlane.f32.xlu0 %v949
          %v1081 = vpop.xlane.xlu0 %1080
          %1082 = vadd.xlane.f32.xlu0 %v950
          %v1083 = vpop.xlane.xlu0 %1082
          %1084 = vadd.xlane.f32.xlu0 %v951
          %v1085 = vpop.xlane.xlu0 %1084
          %1086 = vadd.xlane.f32.xlu0 %v952
          %v1087 = vpop.xlane.xlu0 %1086
          %1088 = vadd.xlane.f32.xlu0 %v953
          %v1089 = vpop.xlane.xlu0 %1088
          %1090 = vadd.xlane.f32.xlu0 %v954
          %v1091 = vpop.xlane.xlu0 %1090
          %1092 = vadd.xlane.f32.xlu0 %v955
          %v1093 = vpop.xlane.xlu0 %1092
          %1094 = vadd.xlane.f32.xlu0 %v956
          %v1095 = vpop.xlane.xlu0 %1094
          %1096 = vadd.xlane.f32.xlu0 %v957
          %v1097 = vpop.xlane.xlu0 %1096
          %1098 = vadd.xlane.f32.xlu0 %v958
          %v1099 = vpop.xlane.xlu0 %1098
          %1100 = vadd.xlane.f32.xlu0 %v959
          %v1101 = vpop.xlane.xlu0 %1100
          %1102 = vadd.xlane.f32.xlu0 %v960
          %v1103 = vpop.xlane.xlu0 %1102
          %1104 = vadd.xlane.f32.xlu0 %v961
          %v1105 = vpop.xlane.xlu0 %1104
          %1106 = vadd.xlane.f32.xlu0 %v962
          %v1107 = vpop.xlane.xlu0 %1106
          %1108 = vadd.xlane.f32.xlu0 %v963
          %v1109 = vpop.xlane.xlu0 %1108
          %1110 = vadd.xlane.f32.xlu0 %v964
          %v1111 = vpop.xlane.xlu0 %1110
          %1112 = vadd.xlane.f32.xlu0 %v965
          %v1113 = vpop.xlane.xlu0 %1112
          %1114 = vadd.xlane.f32.xlu0 %v966
          %v1115 = vpop.xlane.xlu0 %1114
          %1116 = vadd.xlane.f32.xlu0 %v967
          %v1117 = vpop.xlane.xlu0 %1116
          %1118 = vadd.xlane.f32.xlu0 %v968
          %v1119 = vpop.xlane.xlu0 %1118
          %1120 = vadd.xlane.f32.xlu0 %v969
          %v1121 = vpop.xlane.xlu0 %1120
          %1122 = vadd.xlane.f32.xlu0 %v970
          %v1123 = vpop.xlane.xlu0 %1122
          %1124 = vadd.xlane.f32.xlu0 %v971
          %v1125 = vpop.xlane.xlu0 %1124
          %1126 = vadd.xlane.f32.xlu0 %v972
          %v1127 = vpop.xlane.xlu0 %1126
          %1128 = vadd.xlane.f32.xlu0 %v973
          %v1129 = vpop.xlane.xlu0 %1128
          %1130 = vadd.xlane.f32.xlu0 %v974
          %v1131 = vpop.xlane.xlu0 %1130
          %1132 = vadd.xlane.f32.xlu0 %v975
          %v1133 = vpop.xlane.xlu0 %1132
          %1134 = vadd.xlane.f32.xlu0 %v976
          %v1135 = vpop.xlane.xlu0 %1134
          %1136 = vadd.xlane.f32.xlu0 %v977
          %v1137 = vpop.xlane.xlu0 %1136
          %1138 = vadd.xlane.f32.xlu0 %v978
          %v1139 = vpop.xlane.xlu0 %1138
          %1140 = vadd.xlane.f32.xlu0 %v979
          %v1141 = vpop.xlane.xlu0 %1140
          %1142 = vadd.xlane.f32.xlu0 %v980
          %v1143 = vpop.xlane.xlu0 %1142
          %1144 = vadd.xlane.f32.xlu0 %v981
          %v1145 = vpop.xlane.xlu0 %1144
          %1146 = vadd.xlane.f32.xlu0 %v982
          %v1147 = vpop.xlane.xlu0 %1146
          %1148 = vadd.xlane.f32.xlu0 %v983
          %v1149 = vpop.xlane.xlu0 %1148
          %1150 = vadd.xlane.f32.xlu0 %v984
          %v1151 = vpop.xlane.xlu0 %1150
          %1152 = vadd.xlane.f32.xlu0 %v985
          %v1153 = vpop.xlane.xlu0 %1152
          %1154 = vadd.xlane.f32.xlu0 %v986
          %v1155 = vpop.xlane.xlu0 %1154
          %1156 = vadd.xlane.f32.xlu0 %v987
          %v1157 = vpop.xlane.xlu0 %1156
          %1158 = vadd.xlane.f32.xlu0 %v988
          %v1159 = vpop.xlane.xlu0 %1158
          %1160 = vadd.xlane.f32.xlu0 %v989
          %v1161 = vpop.xlane.xlu0 %1160
          %1162 = vadd.xlane.f32.xlu0 %v990
          %v1163 = vpop.xlane.xlu0 %1162
          %1164 = vadd.xlane.f32.xlu0 %v991
          %v1165 = vpop.xlane.xlu0 %1164
          %1166 = vadd.xlane.f32.xlu0 %v992
          %v1167 = vpop.xlane.xlu0 %1166
          %1168 = vadd.xlane.f32.xlu0 %v993
          %v1169 = vpop.xlane.xlu0 %1168
          %1170 = vadd.xlane.f32.xlu0 %v994
          %v1171 = vpop.xlane.xlu0 %1170
          %1172 = vadd.xlane.f32.xlu0 %v995
          %v1173 = vpop.xlane.xlu0 %1172
          %1174 = vadd.xlane.f32.xlu0 %v996
          %v1175 = vpop.xlane.xlu0 %1174
          %1176 = vadd.xlane.f32.xlu0 %v997
          %v1177 = vpop.xlane.xlu0 %1176
          %1178 = vadd.xlane.f32.xlu0 %v998
          %v1179 = vpop.xlane.xlu0 %1178
          %1180 = vadd.xlane.f32.xlu0 %v999
          %v1181 = vpop.xlane.xlu0 %1180
          %1182 = vadd.xlane.f32.xlu0 %v1000
          %v1183 = vpop.xlane.xlu0 %1182
          %1184 = vadd.xlane.f32.xlu0 %v1001
          %v1185 = vpop.xlane.xlu0 %1184
          %1186 = vadd.xlane.f32.xlu0 %v1002
          %v1187 = vpop.xlane.xlu0 %1186
          %1188 = vadd.xlane.f32.xlu0 %v1003
          %v1189 = vpop.xlane.xlu0 %1188
          %1190 = vadd.xlane.f32.xlu0 %v1004
          %v1191 = vpop.xlane.xlu0 %1190
          %1192 = vadd.xlane.f32.xlu0 %v1005
          %v1193 = vpop.xlane.xlu0 %1192
          %1194 = vadd.xlane.f32.xlu0 %v1006
          %v1195 = vpop.xlane.xlu0 %1194
          %1196 = vadd.xlane.f32.xlu0 %v1007
          %v1197 = vpop.xlane.xlu0 %1196
          %1198 = vadd.xlane.f32.xlu0 %v1008
          %v1199 = vpop.xlane.xlu0 %1198
          %1200 = vadd.xlane.f32.xlu0 %v1009
          %v1201 = vpop.xlane.xlu0 %1200
          %1202 = vadd.xlane.f32.xlu0 %v1010
          %v1203 = vpop.xlane.xlu0 %1202
          %1204 = vadd.xlane.f32.xlu0 %v1011
          %v1205 = vpop.xlane.xlu0 %1204
          %1206 = vadd.xlane.f32.xlu0 %v1012
          %v1207 = vpop.xlane.xlu0 %1206
          %1208 = vadd.xlane.f32.xlu0 %v1013
          %v1209 = vpop.xlane.xlu0 %1208
          %1210 = vadd.xlane.f32.xlu0 %v1014
          %v1211 = vpop.xlane.xlu0 %1210
          %1212 = vadd.xlane.f32.xlu0 %v1015
          %v1213 = vpop.xlane.xlu0 %1212
          %1214 = vadd.xlane.f32.xlu0 %v1016
          %v1215 = vpop.xlane.xlu0 %1214
          %1216 = vadd.xlane.f32.xlu0 %v1017
          %v1217 = vpop.xlane.xlu0 %1216
          %1218 = vadd.xlane.f32.xlu0 %v1018
          %v1219 = vpop.xlane.xlu0 %1218
          %1220 = vadd.xlane.f32.xlu0 %v1019
          %v1221 = vpop.xlane.xlu0 %1220
          %1222 = vadd.xlane.f32.xlu0 %v1020
          %v1223 = vpop.xlane.xlu0 %1222
          %1224 = vadd.xlane.f32.xlu0 %v1021
          %v1225 = vpop.xlane.xlu0 %1224
          %1226 = vadd.xlane.f32.xlu0 %v1022
          %v1227 = vpop.xlane.xlu0 %1226
          %1228 = vadd.xlane.f32.xlu0 %v1023
          %v1229 = vpop.xlane.xlu0 %1228
          %1230 = vadd.xlane.f32.xlu0 %v1024
          %v1231 = vpop.xlane.xlu0 %1230
          %1232 = vadd.xlane.f32.xlu0 %v1025
          %v1233 = vpop.xlane.xlu0 %1232
          %1234 = vadd.xlane.f32.xlu0 %v1026
          %v1235 = vpop.xlane.xlu0 %1234
          %1236 = vadd.xlane.f32.xlu0 %v1027
          %v1237 = vpop.xlane.xlu0 %1236
          %1238 = vadd.xlane.f32.xlu0 %v1028
          %v1239 = vpop.xlane.xlu0 %1238
          %1240 = vadd.xlane.f32.xlu0 %v1029
          %v1241 = vpop.xlane.xlu0 %1240
          %1242 = vadd.xlane.f32.xlu0 %v1030
          %v1243 = vpop.xlane.xlu0 %1242
          %1244 = vadd.xlane.f32.xlu0 %v1031
          %v1245 = vpop.xlane.xlu0 %1244
          %1246 = vadd.xlane.f32.xlu0 %v1032
          %v1247 = vpop.xlane.xlu0 %1246
          %1248 = vadd.xlane.f32.xlu0 %v1033
          %v1249 = vpop.xlane.xlu0 %1248
          %1250 = vadd.xlane.f32.xlu0 %v1034
          %v1251 = vpop.xlane.xlu0 %1250
          %1252 = vadd.xlane.f32.xlu0 %v1035
          %v1253 = vpop.xlane.xlu0 %1252
          %1254 = vadd.xlane.f32.xlu0 %v1036
          %v1255 = vpop.xlane.xlu0 %1254
          %1256 = vadd.xlane.f32.xlu0 %v1037
          %v1257 = vpop.xlane.xlu0 %1256
          %1258 = vadd.xlane.f32.xlu0 %v1038
          %v1259 = vpop.xlane.xlu0 %1258
          %1260 = vadd.xlane.f32.xlu0 %v1039
          %v1261 = vpop.xlane.xlu0 %1260
          %1262 = vadd.xlane.f32.xlu0 %v1040
          %v1263 = vpop.xlane.xlu0 %1262
          %1264 = vadd.xlane.f32.xlu0 %v1041
          %v1265 = vpop.xlane.xlu0 %1264
          %1266 = vadd.xlane.f32.xlu0 %v1042
          %v1267 = vpop.xlane.xlu0 %1266
          %1268 = vadd.xlane.f32.xlu0 %v1043
          %v1269 = vpop.xlane.xlu0 %1268
          %1270 = vadd.xlane.f32.xlu0 %v1044
          %v1271 = vpop.xlane.xlu0 %1270
          %1272 = vadd.xlane.f32.xlu0 %v1045
          %v1273 = vpop.xlane.xlu0 %1272
          %1274 = vadd.xlane.f32.xlu0 %v1046
          %v1275 = vpop.xlane.xlu0 %1274
          %1276 = vadd.xlane.f32.xlu0 %v1047
          %v1277 = vpop.xlane.xlu0 %1276
          %1278 = vadd.xlane.f32.xlu0 %v1048
          %v1279 = vpop.xlane.xlu0 %1278
          %1280 = vadd.xlane.f32.xlu0 %v1049
          %v1281 = vpop.xlane.xlu0 %1280
          %1282 = vadd.xlane.f32.xlu0 %v1050
          %v1283 = vpop.xlane.xlu0 %1282
          %1284 = vadd.xlane.f32.xlu0 %v1051
          %v1285 = vpop.xlane.xlu0 %1284
          %1286 = vadd.xlane.f32.xlu0 %v1052
          %v1287 = vpop.xlane.xlu0 %1286
          %1288 = vadd.xlane.f32.xlu0 %v1053
          %v1289 = vpop.xlane.xlu0 %1288
          %1290 = vadd.xlane.f32.xlu0 %v1054
          %v1291 = vpop.xlane.xlu0 %1290
          %1292 = vadd.xlane.f32.xlu0 %v1055
          %v1293 = vpop.xlane.xlu0 %1292
          %1294 = vadd.xlane.f32.xlu0 %v1056
          %v1295 = vpop.xlane.xlu0 %1294
          %1296 = vadd.xlane.f32.xlu0 %v1057
          %v1297 = vpop.xlane.xlu0 %1296
          %1298 = vadd.xlane.f32.xlu0 %v1058
          %v1299 = vpop.xlane.xlu0 %1298
          %1300 = vadd.xlane.f32.xlu0 %v1059
          %v1301 = vpop.xlane.xlu0 %1300
          %1302 = vadd.xlane.f32.xlu0 %v1060
          %v1303 = vpop.xlane.xlu0 %1302
          %1304 = vadd.xlane.f32.xlu0 %v1061
          %v1305 = vpop.xlane.xlu0 %1304
          %1306 = vadd.xlane.f32.xlu0 %v1062
          %v1307 = vpop.xlane.xlu0 %1306
          %1308 = vadd.xlane.f32.xlu0 %v1063
          %v1309 = vpop.xlane.xlu0 %1308
          %1310 = vadd.xlane.f32.xlu0 %v1064
          %v1311 = vpop.xlane.xlu0 %1310
          %1312 = vadd.xlane.f32.xlu0 %v1065
          %v1313 = vpop.xlane.xlu0 %1312
          %1314 = vadd.xlane.f32.xlu0 %v1066
          %v1315 = vpop.xlane.xlu0 %1314
          %1316 = vadd.xlane.f32.xlu0 %v1067
          %v1317 = vpop.xlane.xlu0 %1316
          %1318 = vadd.xlane.f32.xlu0 %v1068
          %v1319 = vpop.xlane.xlu0 %1318
          %1320 = vadd.xlane.f32.xlu0 %v1069
          %v1321 = vpop.xlane.xlu0 %1320
          %1322 = vadd.xlane.f32.xlu0 %v1070
          %v1323 = vpop.xlane.xlu0 %1322
          %1324 = vadd.xlane.f32.xlu0 %v1071
          %v1325 = vpop.xlane.xlu0 %1324
          %1326 = vadd.xlane.f32.xlu0 %v1072
          %v1327 = vpop.xlane.xlu0 %1326
          %1328 = vadd.xlane.f32.xlu0 %v1073
          %v1329 = vpop.xlane.xlu0 %1328
          %v1330 = vsub.f32 12.0, %v1075
          %v1331 = vsub.f32 12.0, %v1077
          %v1332 = vsub.f32 12.0, %v1079
          %v1333 = vsub.f32 12.0, %v1081
          %v1334 = vsub.f32 12.0, %v1083
          %v1335 = vsub.f32 12.0, %v1085
          %v1336 = vsub.f32 12.0, %v1087
          %v1337 = vsub.f32 12.0, %v1089
          %v1338 = vsub.f32 12.0, %v1091
          %v1339 = vsub.f32 12.0, %v1093
          %v1340 = vsub.f32 12.0, %v1095
          %v1341 = vsub.f32 12.0, %v1097
          %v1342 = vsub.f32 12.0, %v1099
          %v1343 = vsub.f32 12.0, %v1101
          %v1344 = vsub.f32 12.0, %v1103
          %v1345 = vsub.f32 12.0, %v1105
          %v1346 = vsub.f32 12.0, %v1107
          %v1347 = vsub.f32 12.0, %v1109
          %v1348 = vsub.f32 12.0, %v1111
          %v1349 = vsub.f32 12.0, %v1113
          %v1350 = vsub.f32 12.0, %v1115
          %v1351 = vsub.f32 12.0, %v1117
          %v1352 = vsub.f32 12.0, %v1119
          %v1353 = vsub.f32 12.0, %v1121
          %v1354 = vsub.f32 12.0, %v1123
          %v1355 = vsub.f32 12.0, %v1125
          %v1356 = vsub.f32 12.0, %v1127
          %v1357 = vsub.f32 12.0, %v1129
          %v1358 = vsub.f32 12.0, %v1131
          %v1359 = vsub.f32 12.0, %v1133
          %v1360 = vsub.f32 12.0, %v1135
          %v1361 = vsub.f32 12.0, %v1137
          %v1362 = vsub.f32 12.0, %v1139
          %v1363 = vsub.f32 12.0, %v1141
          %v1364 = vsub.f32 12.0, %v1143
          %v1365 = vsub.f32 12.0, %v1145
          %v1366 = vsub.f32 12.0, %v1147
          %v1367 = vsub.f32 12.0, %v1149
          %v1368 = vsub.f32 12.0, %v1151
          %v1369 = vsub.f32 12.0, %v1153
          %v1370 = vsub.f32 12.0, %v1155
          %v1371 = vsub.f32 12.0, %v1157
          %v1372 = vsub.f32 12.0, %v1159
          %v1373 = vsub.f32 12.0, %v1161
          %v1374 = vsub.f32 12.0, %v1163
          %v1375 = vsub.f32 12.0, %v1165
          %v1376 = vsub.f32 12.0, %v1167
          %v1377 = vsub.f32 12.0, %v1169
          %v1378 = vsub.f32 12.0, %v1171
          %v1379 = vsub.f32 12.0, %v1173
          %v1380 = vsub.f32 12.0, %v1175
          %v1381 = vsub.f32 12.0, %v1177
          %v1382 = vsub.f32 12.0, %v1179
          %v1383 = vsub.f32 12.0, %v1181
          %v1384 = vsub.f32 12.0, %v1183
          %v1385 = vsub.f32 12.0, %v1185
          %v1386 = vsub.f32 12.0, %v1187
          %v1387 = vsub.f32 12.0, %v1189
          %v1388 = vsub.f32 12.0, %v1191
          %v1389 = vsub.f32 12.0, %v1193
          %v1390 = vsub.f32 12.0, %v1195
          %v1391 = vsub.f32 12.0, %v1197
          %v1392 = vsub.f32 12.0, %v1199
          %v1393 = vsub.f32 12.0, %v1201
          %v1394 = vsub.f32 12.0, %v1203
          %v1395 = vsub.f32 12.0, %v1205
          %v1396 = vsub.f32 12.0, %v1207
          %v1397 = vsub.f32 12.0, %v1209
          %v1398 = vsub.f32 12.0, %v1211
          %v1399 = vsub.f32 12.0, %v1213
          %v1400 = vsub.f32 12.0, %v1215
          %v1401 = vsub.f32 12.0, %v1217
          %v1402 = vsub.f32 12.0, %v1219
          %v1403 = vsub.f32 12.0, %v1221
          %v1404 = vsub.f32 12.0, %v1223
          %v1405 = vsub.f32 12.0, %v1225
          %v1406 = vsub.f32 12.0, %v1227
          %v1407 = vsub.f32 12.0, %v1229
          %v1408 = vsub.f32 12.0, %v1231
          %v1409 = vsub.f32 12.0, %v1233
          %v1410 = vsub.f32 12.0, %v1235
          %v1411 = vsub.f32 12.0, %v1237
          %v1412 = vsub.f32 12.0, %v1239
          %v1413 = vsub.f32 12.0, %v1241
          %v1414 = vsub.f32 12.0, %v1243
          %v1415 = vsub.f32 12.0, %v1245
          %v1416 = vsub.f32 12.0, %v1247
          %v1417 = vsub.f32 12.0, %v1249
          %v1418 = vsub.f32 12.0, %v1251
          %v1419 = vsub.f32 12.0, %v1253
          %v1420 = vsub.f32 12.0, %v1255
          %v1421 = vsub.f32 12.0, %v1257
          %v1422 = vsub.f32 12.0, %v1259
          %v1423 = vsub.f32 12.0, %v1261
          %v1424 = vsub.f32 12.0, %v1263
          %v1425 = vsub.f32 12.0, %v1265
          %v1426 = vsub.f32 12.0, %v1267
          %v1427 = vsub.f32 12.0, %v1269
          %v1428 = vsub.f32 12.0, %v1271
          %v1429 = vsub.f32 12.0, %v1273
          %v1430 = vsub.f32 12.0, %v1275
          %v1431 = vsub.f32 12.0, %v1277
          %v1432 = vsub.f32 12.0, %v1279
          %v1433 = vsub.f32 12.0, %v1281
          %v1434 = vsub.f32 12.0, %v1283
          %v1435 = vsub.f32 12.0, %v1285
          %v1436 = vsub.f32 12.0, %v1287
          %v1437 = vsub.f32 12.0, %v1289
          %v1438 = vsub.f32 12.0, %v1291
          %v1439 = vsub.f32 12.0, %v1293
          %v1440 = vsub.f32 12.0, %v1295
          %v1441 = vsub.f32 12.0, %v1297
          %v1442 = vsub.f32 12.0, %v1299
          %v1443 = vsub.f32 12.0, %v1301
          %v1444 = vsub.f32 12.0, %v1303
          %v1445 = vsub.f32 12.0, %v1305
          %v1446 = vsub.f32 12.0, %v1307
          %v1447 = vsub.f32 12.0, %v1309
          %v1448 = vsub.f32 12.0, %v1311
          %v1449 = vsub.f32 12.0, %v1313
          %v1450 = vsub.f32 12.0, %v1315
          %v1451 = vsub.f32 12.0, %v1317
          %v1452 = vsub.f32 12.0, %v1319
          %v1453 = vsub.f32 12.0, %v1321
          %v1454 = vsub.f32 12.0, %v1323
          %v1455 = vsub.f32 12.0, %v1325
          %v1456 = vsub.f32 12.0, %v1327
          %v1457 = vsub.f32 12.0, %v1329
          %v1586 = vlaneseq
          %v1587 = vand.u32 %v1586, 127
          %v1588 = vlaneseq
          %v1589 = vshrl.u32 %v1588, 7
          %v1590 = vsub.s32 %v1587, %v1589
          %v1591 = vrot.slane %v1330, %v1590
          %v1592 = vadd.s32 %v1587, 4294967288
          %v1593 = vlaneseq
          %v1594 = vshrl.u32 %v1593, 7
          %v1595 = vsub.s32 %v1592, %v1594
          %v1596 = vrot.slane %v1331, %v1595
          %vm1597 = vcmask 130112
          %v1598 = vsel %vm1597, %v1596, %v1591
          %v1599 = vadd.s32 %v1587, 4294967280
          %v1600 = vlaneseq
          %v1601 = vshrl.u32 %v1600, 7
          %v1602 = vsub.s32 %v1599, %v1601
          %v1603 = vrot.slane %v1332, %v1602
          %vm1604 = vcmask 195712
          %v1605 = vsel %vm1604, %v1603, %v1598
          %v1606 = vadd.s32 %v1587, 4294967272
          %v1607 = vlaneseq
          %v1608 = vshrl.u32 %v1607, 7
          %v1609 = vsub.s32 %v1606, %v1608
          %v1610 = vrot.slane %v1333, %v1609
          %vm1611 = vcmask 261312
          %v1612 = vsel %vm1611, %v1610, %v1605
          %v1613 = vadd.s32 %v1587, 4294967264
          %v1614 = vlaneseq
          %v1615 = vshrl.u32 %v1614, 7
          %v1616 = vsub.s32 %v1613, %v1615
          %v1617 = vrot.slane %v1334, %v1616
          %vm1618 = vcmask 326912
          %v1619 = vsel %vm1618, %v1617, %v1612
          %v1620 = vadd.s32 %v1587, 4294967256
          %v1621 = vlaneseq
          %v1622 = vshrl.u32 %v1621, 7
          %v1623 = vsub.s32 %v1620, %v1622
          %v1624 = vrot.slane %v1335, %v1623
          %vm1625 = vcmask 392512
          %v1626 = vsel %vm1625, %v1624, %v1619
          %v1627 = vadd.s32 %v1587, 4294967248
          %v1628 = vlaneseq
          %v1629 = vshrl.u32 %v1628, 7
          %v1630 = vsub.s32 %v1627, %v1629
          %v1631 = vrot.slane %v1336, %v1630
          %vm1632 = vcmask 458112
          %v1633 = vsel %vm1632, %v1631, %v1626
          %v1634 = vadd.s32 %v1587, 4294967240
          %v1635 = vlaneseq
          %v1636 = vshrl.u32 %v1635, 7
          %v1637 = vsub.s32 %v1634, %v1636
          %v1638 = vrot.slane %v1337, %v1637
          %vm1639 = vcmask 523712
          %v1640 = vsel %vm1639, %v1638, %v1633
          %v1641 = vadd.s32 %v1587, 4294967232
          %v1642 = vlaneseq
          %v1643 = vshrl.u32 %v1642, 7
          %v1644 = vsub.s32 %v1641, %v1643
          %v1645 = vrot.slane %v1338, %v1644
          %vm1646 = vcmask 589312
          %v1647 = vsel %vm1646, %v1645, %v1640
          %v1648 = vadd.s32 %v1587, 4294967224
          %v1649 = vlaneseq
          %v1650 = vshrl.u32 %v1649, 7
          %v1651 = vsub.s32 %v1648, %v1650
          %v1652 = vrot.slane %v1339, %v1651
          %vm1653 = vcmask 654912
          %v1654 = vsel %vm1653, %v1652, %v1647
          %v1655 = vadd.s32 %v1587, 4294967216
          %v1656 = vlaneseq
          %v1657 = vshrl.u32 %v1656, 7
          %v1658 = vsub.s32 %v1655, %v1657
          %v1659 = vrot.slane %v1340, %v1658
          %vm1660 = vcmask 720512
          %v1661 = vsel %vm1660, %v1659, %v1654
          %v1662 = vadd.s32 %v1587, 4294967208
          %v1663 = vlaneseq
          %v1664 = vshrl.u32 %v1663, 7
          %v1665 = vsub.s32 %v1662, %v1664
          %v1666 = vrot.slane %v1341, %v1665
          %vm1667 = vcmask 786112
          %v1668 = vsel %vm1667, %v1666, %v1661
          %v1669 = vadd.s32 %v1587, 4294967200
          %v1670 = vlaneseq
          %v1671 = vshrl.u32 %v1670, 7
          %v1672 = vsub.s32 %v1669, %v1671
          %v1673 = vrot.slane %v1342, %v1672
          %vm1674 = vcmask 851712
          %v1675 = vsel %vm1674, %v1673, %v1668
          %v1676 = vadd.s32 %v1587, 4294967192
          %v1677 = vlaneseq
          %v1678 = vshrl.u32 %v1677, 7
          %v1679 = vsub.s32 %v1676, %v1678
          %v1680 = vrot.slane %v1343, %v1679
          %vm1681 = vcmask 917312
          %v1682 = vsel %vm1681, %v1680, %v1675
          %v1683 = vadd.s32 %v1587, 4294967184
          %v1684 = vlaneseq
          %v1685 = vshrl.u32 %v1684, 7
          %v1686 = vsub.s32 %v1683, %v1685
          %v1687 = vrot.slane %v1344, %v1686
          %vm1688 = vcmask 982912
          %v1689 = vsel %vm1688, %v1687, %v1682
          %v1690 = vadd.s32 %v1587, 4294967176
          %v1691 = vlaneseq
          %v1692 = vshrl.u32 %v1691, 7
          %v1693 = vsub.s32 %v1690, %v1692
          %v1694 = vrot.slane %v1345, %v1693
          %vm1695 = vcmask 1048512
          %v1696 = vsel %vm1695, %v1694, %v1689
          %v1697 = vlaneseq
          %v1698 = vshrl.u32 %v1697, 7
          %v1699 = vsub.s32 %v1587, %v1698
          %v1700 = vrot.slane %v1346, %v1699
          %v1701 = vlaneseq
          %v1702 = vshrl.u32 %v1701, 7
          %v1703 = vsub.s32 %v1592, %v1702
          %v1704 = vrot.slane %v1347, %v1703
          %v1705 = vsel %vm1597, %v1704, %v1700
          %v1706 = vlaneseq
          %v1707 = vshrl.u32 %v1706, 7
          %v1708 = vsub.s32 %v1599, %v1707
          %v1709 = vrot.slane %v1348, %v1708
          %v1710 = vsel %vm1604, %v1709, %v1705
          %v1711 = vlaneseq
          %v1712 = vshrl.u32 %v1711, 7
          %v1713 = vsub.s32 %v1606, %v1712
          %v1714 = vrot.slane %v1349, %v1713
          %v1715 = vsel %vm1611, %v1714, %v1710
          %v1716 = vlaneseq
          %v1717 = vshrl.u32 %v1716, 7
          %v1718 = vsub.s32 %v1613, %v1717
          %v1719 = vrot.slane %v1350, %v1718
          %v1720 = vsel %vm1618, %v1719, %v1715
          %v1721 = vlaneseq
          %v1722 = vshrl.u32 %v1721, 7
          %v1723 = vsub.s32 %v1620, %v1722
          %v1724 = vrot.slane %v1351, %v1723
          %v1725 = vsel %vm1625, %v1724, %v1720
          %v1726 = vlaneseq
          %v1727 = vshrl.u32 %v1726, 7
          %v1728 = vsub.s32 %v1627, %v1727
          %v1729 = vrot.slane %v1352, %v1728
          %v1730 = vsel %vm1632, %v1729, %v1725
          %v1731 = vlaneseq
          %v1732 = vshrl.u32 %v1731, 7
          %v1733 = vsub.s32 %v1634, %v1732
          %v1734 = vrot.slane %v1353, %v1733
          %v1735 = vsel %vm1639, %v1734, %v1730
          %v1736 = vlaneseq
          %v1737 = vshrl.u32 %v1736, 7
          %v1738 = vsub.s32 %v1641, %v1737
          %v1739 = vrot.slane %v1354, %v1738
          %v1740 = vsel %vm1646, %v1739, %v1735
          %v1741 = vlaneseq
          %v1742 = vshrl.u32 %v1741, 7
          %v1743 = vsub.s32 %v1648, %v1742
          %v1744 = vrot.slane %v1355, %v1743
          %v1745 = vsel %vm1653, %v1744, %v1740
          %v1746 = vlaneseq
          %v1747 = vshrl.u32 %v1746, 7
          %v1748 = vsub.s32 %v1655, %v1747
          %v1749 = vrot.slane %v1356, %v1748
          %v1750 = vsel %vm1660, %v1749, %v1745
          %v1751 = vlaneseq
          %v1752 = vshrl.u32 %v1751, 7
          %v1753 = vsub.s32 %v1662, %v1752
          %v1754 = vrot.slane %v1357, %v1753
          %v1755 = vsel %vm1667, %v1754, %v1750
          %v1756 = vlaneseq
          %v1757 = vshrl.u32 %v1756, 7
          %v1758 = vsub.s32 %v1669, %v1757
          %v1759 = vrot.slane %v1358, %v1758
          %v1760 = vsel %vm1674, %v1759, %v1755
          %v1761 = vlaneseq
          %v1762 = vshrl.u32 %v1761, 7
          %v1763 = vsub.s32 %v1676, %v1762
          %v1764 = vrot.slane %v1359, %v1763
          %v1765 = vsel %vm1681, %v1764, %v1760
          %v1766 = vlaneseq
          %v1767 = vshrl.u32 %v1766, 7
          %v1768 = vsub.s32 %v1683, %v1767
          %v1769 = vrot.slane %v1360, %v1768
          %v1770 = vsel %vm1688, %v1769, %v1765
          %v1771 = vlaneseq
          %v1772 = vshrl.u32 %v1771, 7
          %v1773 = vsub.s32 %v1690, %v1772
          %v1774 = vrot.slane %v1361, %v1773
          %v1775 = vsel %vm1695, %v1774, %v1770
          %v1776 = vlaneseq
          %v1777 = vshrl.u32 %v1776, 7
          %v1778 = vsub.s32 %v1587, %v1777
          %v1779 = vrot.slane %v1362, %v1778
          %v1780 = vlaneseq
          %v1781 = vshrl.u32 %v1780, 7
          %v1782 = vsub.s32 %v1592, %v1781
          %v1783 = vrot.slane %v1363, %v1782
          %v1784 = vsel %vm1597, %v1783, %v1779
          %v1785 = vlaneseq
          %v1786 = vshrl.u32 %v1785, 7
          %v1787 = vsub.s32 %v1599, %v1786
          %v1788 = vrot.slane %v1364, %v1787
          %v1789 = vsel %vm1604, %v1788, %v1784
          %v1790 = vlaneseq
          %v1791 = vshrl.u32 %v1790, 7
          %v1792 = vsub.s32 %v1606, %v1791
          %v1793 = vrot.slane %v1365, %v1792
          %v1794 = vsel %vm1611, %v1793, %v1789
          %v1795 = vlaneseq
          %v1796 = vshrl.u32 %v1795, 7
          %v1797 = vsub.s32 %v1613, %v1796
          %v1798 = vrot.slane %v1366, %v1797
          %v1799 = vsel %vm1618, %v1798, %v1794
          %v1800 = vlaneseq
          %v1801 = vshrl.u32 %v1800, 7
          %v1802 = vsub.s32 %v1620, %v1801
          %v1803 = vrot.slane %v1367, %v1802
          %v1804 = vsel %vm1625, %v1803, %v1799
          %v1805 = vlaneseq
          %v1806 = vshrl.u32 %v1805, 7
          %v1807 = vsub.s32 %v1627, %v1806
          %v1808 = vrot.slane %v1368, %v1807
          %v1809 = vsel %vm1632, %v1808, %v1804
          %v1810 = vlaneseq
          %v1811 = vshrl.u32 %v1810, 7
          %v1812 = vsub.s32 %v1634, %v1811
          %v1813 = vrot.slane %v1369, %v1812
          %v1814 = vsel %vm1639, %v1813, %v1809
          %v1815 = vlaneseq
          %v1816 = vshrl.u32 %v1815, 7
          %v1817 = vsub.s32 %v1641, %v1816
          %v1818 = vrot.slane %v1370, %v1817
          %v1819 = vsel %vm1646, %v1818, %v1814
          %v1820 = vlaneseq
          %v1821 = vshrl.u32 %v1820, 7
          %v1822 = vsub.s32 %v1648, %v1821
          %v1823 = vrot.slane %v1371, %v1822
          %v1824 = vsel %vm1653, %v1823, %v1819
          %v1825 = vlaneseq
          %v1826 = vshrl.u32 %v1825, 7
          %v1827 = vsub.s32 %v1655, %v1826
          %v1828 = vrot.slane %v1372, %v1827
          %v1829 = vsel %vm1660, %v1828, %v1824
          %v1830 = vlaneseq
          %v1831 = vshrl.u32 %v1830, 7
          %v1832 = vsub.s32 %v1662, %v1831
          %v1833 = vrot.slane %v1373, %v1832
          %v1834 = vsel %vm1667, %v1833, %v1829
          %v1835 = vlaneseq
          %v1836 = vshrl.u32 %v1835, 7
          %v1837 = vsub.s32 %v1669, %v1836
          %v1838 = vrot.slane %v1374, %v1837
          %v1839 = vsel %vm1674, %v1838, %v1834
          %v1840 = vlaneseq
          %v1841 = vshrl.u32 %v1840, 7
          %v1842 = vsub.s32 %v1676, %v1841
          %v1843 = vrot.slane %v1375, %v1842
          %v1844 = vsel %vm1681, %v1843, %v1839
          %v1845 = vlaneseq
          %v1846 = vshrl.u32 %v1845, 7
          %v1847 = vsub.s32 %v1683, %v1846
          %v1848 = vrot.slane %v1376, %v1847
          %v1849 = vsel %vm1688, %v1848, %v1844
          %v1850 = vlaneseq
          %v1851 = vshrl.u32 %v1850, 7
          %v1852 = vsub.s32 %v1690, %v1851
          %v1853 = vrot.slane %v1377, %v1852
          %v1854 = vsel %vm1695, %v1853, %v1849
          %v1855 = vlaneseq
          %v1856 = vshrl.u32 %v1855, 7
          %v1857 = vsub.s32 %v1587, %v1856
          %v1858 = vrot.slane %v1378, %v1857
          %v1859 = vlaneseq
          %v1860 = vshrl.u32 %v1859, 7
          %v1861 = vsub.s32 %v1592, %v1860
          %v1862 = vrot.slane %v1379, %v1861
          %v1863 = vsel %vm1597, %v1862, %v1858
          %v1864 = vlaneseq
          %v1865 = vshrl.u32 %v1864, 7
          %v1866 = vsub.s32 %v1599, %v1865
          %v1867 = vrot.slane %v1380, %v1866
          %v1868 = vsel %vm1604, %v1867, %v1863
          %v1869 = vlaneseq
          %v1870 = vshrl.u32 %v1869, 7
          %v1871 = vsub.s32 %v1606, %v1870
          %v1872 = vrot.slane %v1381, %v1871
          %v1873 = vsel %vm1611, %v1872, %v1868
          %v1874 = vlaneseq
          %v1875 = vshrl.u32 %v1874, 7
          %v1876 = vsub.s32 %v1613, %v1875
          %v1877 = vrot.slane %v1382, %v1876
          %v1878 = vsel %vm1618, %v1877, %v1873
          %v1879 = vlaneseq
          %v1880 = vshrl.u32 %v1879, 7
          %v1881 = vsub.s32 %v1620, %v1880
          %v1882 = vrot.slane %v1383, %v1881
          %v1883 = vsel %vm1625, %v1882, %v1878
          %v1884 = vlaneseq
          %v1885 = vshrl.u32 %v1884, 7
          %v1886 = vsub.s32 %v1627, %v1885
          %v1887 = vrot.slane %v1384, %v1886
          %v1888 = vsel %vm1632, %v1887, %v1883
          %v1889 = vlaneseq
          %v1890 = vshrl.u32 %v1889, 7
          %v1891 = vsub.s32 %v1634, %v1890
          %v1892 = vrot.slane %v1385, %v1891
          %v1893 = vsel %vm1639, %v1892, %v1888
          %v1894 = vlaneseq
          %v1895 = vshrl.u32 %v1894, 7
          %v1896 = vsub.s32 %v1641, %v1895
          %v1897 = vrot.slane %v1386, %v1896
          %v1898 = vsel %vm1646, %v1897, %v1893
          %v1899 = vlaneseq
          %v1900 = vshrl.u32 %v1899, 7
          %v1901 = vsub.s32 %v1648, %v1900
          %v1902 = vrot.slane %v1387, %v1901
          %v1903 = vsel %vm1653, %v1902, %v1898
          %v1904 = vlaneseq
          %v1905 = vshrl.u32 %v1904, 7
          %v1906 = vsub.s32 %v1655, %v1905
          %v1907 = vrot.slane %v1388, %v1906
          %v1908 = vsel %vm1660, %v1907, %v1903
          %v1909 = vlaneseq
          %v1910 = vshrl.u32 %v1909, 7
          %v1911 = vsub.s32 %v1662, %v1910
          %v1912 = vrot.slane %v1389, %v1911
          %v1913 = vsel %vm1667, %v1912, %v1908
          %v1914 = vlaneseq
          %v1915 = vshrl.u32 %v1914, 7
          %v1916 = vsub.s32 %v1669, %v1915
          %v1917 = vrot.slane %v1390, %v1916
          %v1918 = vsel %vm1674, %v1917, %v1913
          %v1919 = vlaneseq
          %v1920 = vshrl.u32 %v1919, 7
          %v1921 = vsub.s32 %v1676, %v1920
          %v1922 = vrot.slane %v1391, %v1921
          %v1923 = vsel %vm1681, %v1922, %v1918
          %v1924 = vlaneseq
          %v1925 = vshrl.u32 %v1924, 7
          %v1926 = vsub.s32 %v1683, %v1925
          %v1927 = vrot.slane %v1392, %v1926
          %v1928 = vsel %vm1688, %v1927, %v1923
          %v1929 = vlaneseq
          %v1930 = vshrl.u32 %v1929, 7
          %v1931 = vsub.s32 %v1690, %v1930
          %v1932 = vrot.slane %v1393, %v1931
          %v1933 = vsel %vm1695, %v1932, %v1928
          %v1934 = vlaneseq
          %v1935 = vshrl.u32 %v1934, 7
          %v1936 = vsub.s32 %v1587, %v1935
          %v1937 = vrot.slane %v1394, %v1936
          %v1938 = vlaneseq
          %v1939 = vshrl.u32 %v1938, 7
          %v1940 = vsub.s32 %v1592, %v1939
          %v1941 = vrot.slane %v1395, %v1940
          %v1942 = vsel %vm1597, %v1941, %v1937
          %v1943 = vlaneseq
          %v1944 = vshrl.u32 %v1943, 7
          %v1945 = vsub.s32 %v1599, %v1944
          %v1946 = vrot.slane %v1396, %v1945
          %v1947 = vsel %vm1604, %v1946, %v1942
          %v1948 = vlaneseq
          %v1949 = vshrl.u32 %v1948, 7
          %v1950 = vsub.s32 %v1606, %v1949
          %v1951 = vrot.slane %v1397, %v1950
          %v1952 = vsel %vm1611, %v1951, %v1947
          %v1953 = vlaneseq
          %v1954 = vshrl.u32 %v1953, 7
          %v1955 = vsub.s32 %v1613, %v1954
          %v1956 = vrot.slane %v1398, %v1955
          %v1957 = vsel %vm1618, %v1956, %v1952
          %v1958 = vlaneseq
          %v1959 = vshrl.u32 %v1958, 7
          %v1960 = vsub.s32 %v1620, %v1959
          %v1961 = vrot.slane %v1399, %v1960
          %v1962 = vsel %vm1625, %v1961, %v1957
          %v1963 = vlaneseq
          %v1964 = vshrl.u32 %v1963, 7
          %v1965 = vsub.s32 %v1627, %v1964
          %v1966 = vrot.slane %v1400, %v1965
          %v1967 = vsel %vm1632, %v1966, %v1962
          %v1968 = vlaneseq
          %v1969 = vshrl.u32 %v1968, 7
          %v1970 = vsub.s32 %v1634, %v1969
          %v1971 = vrot.slane %v1401, %v1970
          %v1972 = vsel %vm1639, %v1971, %v1967
          %v1973 = vlaneseq
          %v1974 = vshrl.u32 %v1973, 7
          %v1975 = vsub.s32 %v1641, %v1974
          %v1976 = vrot.slane %v1402, %v1975
          %v1977 = vsel %vm1646, %v1976, %v1972
          %v1978 = vlaneseq
          %v1979 = vshrl.u32 %v1978, 7
          %v1980 = vsub.s32 %v1648, %v1979
          %v1981 = vrot.slane %v1403, %v1980
          %v1982 = vsel %vm1653, %v1981, %v1977
          %v1983 = vlaneseq
          %v1984 = vshrl.u32 %v1983, 7
          %v1985 = vsub.s32 %v1655, %v1984
          %v1986 = vrot.slane %v1404, %v1985
          %v1987 = vsel %vm1660, %v1986, %v1982
          %v1988 = vlaneseq
          %v1989 = vshrl.u32 %v1988, 7
          %v1990 = vsub.s32 %v1662, %v1989
          %v1991 = vrot.slane %v1405, %v1990
          %v1992 = vsel %vm1667, %v1991, %v1987
          %v1993 = vlaneseq
          %v1994 = vshrl.u32 %v1993, 7
          %v1995 = vsub.s32 %v1669, %v1994
          %v1996 = vrot.slane %v1406, %v1995
          %v1997 = vsel %vm1674, %v1996, %v1992
          %v1998 = vlaneseq
          %v1999 = vshrl.u32 %v1998, 7
          %v2000 = vsub.s32 %v1676, %v1999
          %v2001 = vrot.slane %v1407, %v2000
          %v2002 = vsel %vm1681, %v2001, %v1997
          %v2003 = vlaneseq
          %v2004 = vshrl.u32 %v2003, 7
          %v2005 = vsub.s32 %v1683, %v2004
          %v2006 = vrot.slane %v1408, %v2005
          %v2007 = vsel %vm1688, %v2006, %v2002
          %v2008 = vlaneseq
          %v2009 = vshrl.u32 %v2008, 7
          %v2010 = vsub.s32 %v1690, %v2009
          %v2011 = vrot.slane %v1409, %v2010
          %v2012 = vsel %vm1695, %v2011, %v2007
          %v2013 = vlaneseq
          %v2014 = vshrl.u32 %v2013, 7
          %v2015 = vsub.s32 %v1587, %v2014
          %v2016 = vrot.slane %v1410, %v2015
          %v2017 = vlaneseq
          %v2018 = vshrl.u32 %v2017, 7
          %v2019 = vsub.s32 %v1592, %v2018
          %v2020 = vrot.slane %v1411, %v2019
          %v2021 = vsel %vm1597, %v2020, %v2016
          %v2022 = vlaneseq
          %v2023 = vshrl.u32 %v2022, 7
          %v2024 = vsub.s32 %v1599, %v2023
          %v2025 = vrot.slane %v1412, %v2024
          %v2026 = vsel %vm1604, %v2025, %v2021
          %v2027 = vlaneseq
          %v2028 = vshrl.u32 %v2027, 7
          %v2029 = vsub.s32 %v1606, %v2028
          %v2030 = vrot.slane %v1413, %v2029
          %v2031 = vsel %vm1611, %v2030, %v2026
          %v2032 = vlaneseq
          %v2033 = vshrl.u32 %v2032, 7
          %v2034 = vsub.s32 %v1613, %v2033
          %v2035 = vrot.slane %v1414, %v2034
          %v2036 = vsel %vm1618, %v2035, %v2031
          %v2037 = vlaneseq
          %v2038 = vshrl.u32 %v2037, 7
          %v2039 = vsub.s32 %v1620, %v2038
          %v2040 = vrot.slane %v1415, %v2039
          %v2041 = vsel %vm1625, %v2040, %v2036
          %v2042 = vlaneseq
          %v2043 = vshrl.u32 %v2042, 7
          %v2044 = vsub.s32 %v1627, %v2043
          %v2045 = vrot.slane %v1416, %v2044
          %v2046 = vsel %vm1632, %v2045, %v2041
          %v2047 = vlaneseq
          %v2048 = vshrl.u32 %v2047, 7
          %v2049 = vsub.s32 %v1634, %v2048
          %v2050 = vrot.slane %v1417, %v2049
          %v2051 = vsel %vm1639, %v2050, %v2046
          %v2052 = vlaneseq
          %v2053 = vshrl.u32 %v2052, 7
          %v2054 = vsub.s32 %v1641, %v2053
          %v2055 = vrot.slane %v1418, %v2054
          %v2056 = vsel %vm1646, %v2055, %v2051
          %v2057 = vlaneseq
          %v2058 = vshrl.u32 %v2057, 7
          %v2059 = vsub.s32 %v1648, %v2058
          %v2060 = vrot.slane %v1419, %v2059
          %v2061 = vsel %vm1653, %v2060, %v2056
          %v2062 = vlaneseq
          %v2063 = vshrl.u32 %v2062, 7
          %v2064 = vsub.s32 %v1655, %v2063
          %v2065 = vrot.slane %v1420, %v2064
          %v2066 = vsel %vm1660, %v2065, %v2061
          %v2067 = vlaneseq
          %v2068 = vshrl.u32 %v2067, 7
          %v2069 = vsub.s32 %v1662, %v2068
          %v2070 = vrot.slane %v1421, %v2069
          %v2071 = vsel %vm1667, %v2070, %v2066
          %v2072 = vlaneseq
          %v2073 = vshrl.u32 %v2072, 7
          %v2074 = vsub.s32 %v1669, %v2073
          %v2075 = vrot.slane %v1422, %v2074
          %v2076 = vsel %vm1674, %v2075, %v2071
          %v2077 = vlaneseq
          %v2078 = vshrl.u32 %v2077, 7
          %v2079 = vsub.s32 %v1676, %v2078
          %v2080 = vrot.slane %v1423, %v2079
          %v2081 = vsel %vm1681, %v2080, %v2076
          %v2082 = vlaneseq
          %v2083 = vshrl.u32 %v2082, 7
          %v2084 = vsub.s32 %v1683, %v2083
          %v2085 = vrot.slane %v1424, %v2084
          %v2086 = vsel %vm1688, %v2085, %v2081
          %v2087 = vlaneseq
          %v2088 = vshrl.u32 %v2087, 7
          %v2089 = vsub.s32 %v1690, %v2088
          %v2090 = vrot.slane %v1425, %v2089
          %v2091 = vsel %vm1695, %v2090, %v2086
          %v2092 = vlaneseq
          %v2093 = vshrl.u32 %v2092, 7
          %v2094 = vsub.s32 %v1587, %v2093
          %v2095 = vrot.slane %v1426, %v2094
          %v2096 = vlaneseq
          %v2097 = vshrl.u32 %v2096, 7
          %v2098 = vsub.s32 %v1592, %v2097
          %v2099 = vrot.slane %v1427, %v2098
          %v2100 = vsel %vm1597, %v2099, %v2095
          %v2101 = vlaneseq
          %v2102 = vshrl.u32 %v2101, 7
          %v2103 = vsub.s32 %v1599, %v2102
          %v2104 = vrot.slane %v1428, %v2103
          %v2105 = vsel %vm1604, %v2104, %v2100
          %v2106 = vlaneseq
          %v2107 = vshrl.u32 %v2106, 7
          %v2108 = vsub.s32 %v1606, %v2107
          %v2109 = vrot.slane %v1429, %v2108
          %v2110 = vsel %vm1611, %v2109, %v2105
          %v2111 = vlaneseq
          %v2112 = vshrl.u32 %v2111, 7
          %v2113 = vsub.s32 %v1613, %v2112
          %v2114 = vrot.slane %v1430, %v2113
          %v2115 = vsel %vm1618, %v2114, %v2110
          %v2116 = vlaneseq
          %v2117 = vshrl.u32 %v2116, 7
          %v2118 = vsub.s32 %v1620, %v2117
          %v2119 = vrot.slane %v1431, %v2118
          %v2120 = vsel %vm1625, %v2119, %v2115
          %v2121 = vlaneseq
          %v2122 = vshrl.u32 %v2121, 7
          %v2123 = vsub.s32 %v1627, %v2122
          %v2124 = vrot.slane %v1432, %v2123
          %v2125 = vsel %vm1632, %v2124, %v2120
          %v2126 = vlaneseq
          %v2127 = vshrl.u32 %v2126, 7
          %v2128 = vsub.s32 %v1634, %v2127
          %v2129 = vrot.slane %v1433, %v2128
          %v2130 = vsel %vm1639, %v2129, %v2125
          %v2131 = vlaneseq
          %v2132 = vshrl.u32 %v2131, 7
          %v2133 = vsub.s32 %v1641, %v2132
          %v2134 = vrot.slane %v1434, %v2133
          %v2135 = vsel %vm1646, %v2134, %v2130
          %v2136 = vlaneseq
          %v2137 = vshrl.u32 %v2136, 7
          %v2138 = vsub.s32 %v1648, %v2137
          %v2139 = vrot.slane %v1435, %v2138
          %v2140 = vsel %vm1653, %v2139, %v2135
          %v2141 = vlaneseq
          %v2142 = vshrl.u32 %v2141, 7
          %v2143 = vsub.s32 %v1655, %v2142
          %v2144 = vrot.slane %v1436, %v2143
          %v2145 = vsel %vm1660, %v2144, %v2140
          %v2146 = vlaneseq
          %v2147 = vshrl.u32 %v2146, 7
          %v2148 = vsub.s32 %v1662, %v2147
          %v2149 = vrot.slane %v1437, %v2148
          %v2150 = vsel %vm1667, %v2149, %v2145
          %v2151 = vlaneseq
          %v2152 = vshrl.u32 %v2151, 7
          %v2153 = vsub.s32 %v1669, %v2152
          %v2154 = vrot.slane %v1438, %v2153
          %v2155 = vsel %vm1674, %v2154, %v2150
          %v2156 = vlaneseq
          %v2157 = vshrl.u32 %v2156, 7
          %v2158 = vsub.s32 %v1676, %v2157
          %v2159 = vrot.slane %v1439, %v2158
          %v2160 = vsel %vm1681, %v2159, %v2155
          %v2161 = vlaneseq
          %v2162 = vshrl.u32 %v2161, 7
          %v2163 = vsub.s32 %v1683, %v2162
          %v2164 = vrot.slane %v1440, %v2163
          %v2165 = vsel %vm1688, %v2164, %v2160
          %v2166 = vlaneseq
          %v2167 = vshrl.u32 %v2166, 7
          %v2168 = vsub.s32 %v1690, %v2167
          %v2169 = vrot.slane %v1441, %v2168
          %v2170 = vsel %vm1695, %v2169, %v2165
          %v2171 = vlaneseq
          %v2172 = vshrl.u32 %v2171, 7
          %v2173 = vsub.s32 %v1587, %v2172
          %v2174 = vrot.slane %v1442, %v2173
          %v2175 = vlaneseq
          %v2176 = vshrl.u32 %v2175, 7
          %v2177 = vsub.s32 %v1592, %v2176
          %v2178 = vrot.slane %v1443, %v2177
          %v2179 = vsel %vm1597, %v2178, %v2174
          %v2180 = vlaneseq
          %v2181 = vshrl.u32 %v2180, 7
          %v2182 = vsub.s32 %v1599, %v2181
          %v2183 = vrot.slane %v1444, %v2182
          %v2184 = vsel %vm1604, %v2183, %v2179
          %v2185 = vlaneseq
          %v2186 = vshrl.u32 %v2185, 7
          %v2187 = vsub.s32 %v1606, %v2186
          %v2188 = vrot.slane %v1445, %v2187
          %v2189 = vsel %vm1611, %v2188, %v2184
          %v2190 = vlaneseq
          %v2191 = vshrl.u32 %v2190, 7
          %v2192 = vsub.s32 %v1613, %v2191
          %v2193 = vrot.slane %v1446, %v2192
          %v2194 = vsel %vm1618, %v2193, %v2189
          %v2195 = vlaneseq
          %v2196 = vshrl.u32 %v2195, 7
          %v2197 = vsub.s32 %v1620, %v2196
          %v2198 = vrot.slane %v1447, %v2197
          %v2199 = vsel %vm1625, %v2198, %v2194
          %v2200 = vlaneseq
          %v2201 = vshrl.u32 %v2200, 7
          %v2202 = vsub.s32 %v1627, %v2201
          %v2203 = vrot.slane %v1448, %v2202
          %v2204 = vsel %vm1632, %v2203, %v2199
          %v2205 = vlaneseq
          %v2206 = vshrl.u32 %v2205, 7
          %v2207 = vsub.s32 %v1634, %v2206
          %v2208 = vrot.slane %v1449, %v2207
          %v2209 = vsel %vm1639, %v2208, %v2204
          %v2210 = vlaneseq
          %v2211 = vshrl.u32 %v2210, 7
          %v2212 = vsub.s32 %v1641, %v2211
          %v2213 = vrot.slane %v1450, %v2212
          %v2214 = vsel %vm1646, %v2213, %v2209
          %v2215 = vlaneseq
          %v2216 = vshrl.u32 %v2215, 7
          %v2217 = vsub.s32 %v1648, %v2216
          %v2218 = vrot.slane %v1451, %v2217
          %v2219 = vsel %vm1653, %v2218, %v2214
          %v2220 = vlaneseq
          %v2221 = vshrl.u32 %v2220, 7
          %v2222 = vsub.s32 %v1655, %v2221
          %v2223 = vrot.slane %v1452, %v2222
          %v2224 = vsel %vm1660, %v2223, %v2219
          %v2225 = vlaneseq
          %v2226 = vshrl.u32 %v2225, 7
          %v2227 = vsub.s32 %v1662, %v2226
          %v2228 = vrot.slane %v1453, %v2227
          %v2229 = vsel %vm1667, %v2228, %v2224
          %v2230 = vlaneseq
          %v2231 = vshrl.u32 %v2230, 7
          %v2232 = vsub.s32 %v1669, %v2231
          %v2233 = vrot.slane %v1454, %v2232
          %v2234 = vsel %vm1674, %v2233, %v2229
          %v2235 = vlaneseq
          %v2236 = vshrl.u32 %v2235, 7
          %v2237 = vsub.s32 %v1676, %v2236
          %v2238 = vrot.slane %v1455, %v2237
          %v2239 = vsel %vm1681, %v2238, %v2234
          %v2240 = vlaneseq
          %v2241 = vshrl.u32 %v2240, 7
          %v2242 = vsub.s32 %v1683, %v2241
          %v2243 = vrot.slane %v1456, %v2242
          %v2244 = vsel %vm1688, %v2243, %v2239
          %v2245 = vlaneseq
          %v2246 = vshrl.u32 %v2245, 7
          %v2247 = vsub.s32 %v1690, %v2246
          %v2248 = vrot.slane %v1457, %v2247
          %v2249 = vsel %vm1695, %v2248, %v2244
          %vm2250 = vcmask 1041409
          %v2251 = vsel %vm2250, %v1775, %v1696
          %vm2252 = vcmask 1042434
          %v2253 = vsel %vm2252, %v1854, %v2251
          %vm2254 = vcmask 1043459
          %v2255 = vsel %vm2254, %v1933, %v2253
          %vm2256 = vcmask 1044484
          %v2257 = vsel %vm2256, %v2012, %v2255
          %vm2258 = vcmask 1045509
          %v2259 = vsel %vm2258, %v2091, %v2257
          %vm2260 = vcmask 1046534
          %v2261 = vsel %vm2260, %v2170, %v2259
          %vm2262 = vcmask 1047559
          %v2263 = vsel %vm2262, %v2249, %v2261
          %s2265 = sshra.s32 %s727, 7
          %s2266 = sand.u32 %s727, 127
          %s2267 = smul.addr %s2265, 8
          %s2268 = scalar_lea.vmem %s151, %s2267 [#allocation9]
          %2269 = vst [vmem:[%s2268] sm:$0xff] %v2263
        $region121: #{tpu_custom_call.1} parent=23 // loop_footer
          %s367 = sadd.s32 1, %s363
        $region122: #{tpu_custom_call.1} parent=23 // loop_footer_branch
          %362 = sbr.rel target = $region118
        $region123: #{tpu_custom_call.1} parent=23 // loop_exit
          _
        %s2270 = sand.u32 %s72, 1
        %s2271 = scalar_lea.sflag [#allocation8], %s2270
        %s2272 = sand.u32 %s72, 1
        %s2273 = smul.addr %s2272, 64
        %s2274 = scalar_lea.vmem [#allocation9], %s2273
        // Predicated region
        $region216: #{tpu_custom_call.1} parent=23 // pred_check
          %p2275 = pneg %p82
        $region217: #{tpu_custom_call.1} parent=23 // pred_check_branch
          %2277 = sbr.rel (%p2275) target = $region219
        $region218: #{tpu_custom_call.1} parent=23 // pred_region
          %s2278 = smul.u32 8, %s28
          %s2280 = ssub.s32 1024, 1024
          %2281 = vsyncadd %s2271, %s2280
          %s2282 = smul.addr %s29, 16
          %s2283 = sadd.s32 %s2278, %s2282
          %s2284 = smul.addr %s2283, 128
          %s2285 = scalar_lea.hbm %s3, %s2284
          %s2287 = sshll.u32 %s2274, 4
          %s2288 = int_to_ptr.vmem [resolvable:$true] %s2287
          %2290 = dma.vmem_to_hbm [thread:$0]  %s2288, 1024, %s2285, %s2271
        $region219: #{tpu_custom_call.1} parent=23 // pred_fallthru
          _
      $region24: #{tpu_custom_call.1} parent=5 // pred_fallthru
        _
      %p2291 = scmp.le.s32.totalorder 2, %s19
      // Predicated region
      $region220: #{tpu_custom_call.1} parent=5 // pred_check
        %p2292 = pneg %p2291
      $region221: #{tpu_custom_call.1} parent=5 // pred_check_branch
        %2294 = sbr.rel (%p2292) target = $region223
      $region222: #{tpu_custom_call.1} parent=5 // pred_region
        %s2295 = ssub.s32 %s19, 2
        // Predicated region
        $region224: #{tpu_custom_call.1} parent=222 // pred_check
          %p2296 = pneg %p88
        $region225: #{tpu_custom_call.1} parent=222 // pred_check_branch
          %2298 = sbr.rel (%p2296) target = $region227
        $region226: #{tpu_custom_call.1} parent=222 // pred_region
          %s2299 = sand.u32 %s73, 1
          %s2300 = scalar_lea.sflag [#allocation8], %s2299
          %s2301 = sand.u32 %s73, 1
          %s2302 = smul.addr %s2301, 64
          %s2303 = scalar_lea.vmem [#allocation9], %s2302
          %2304 = dma.done %s2300, 1024
        $region227: #{tpu_custom_call.1} parent=222 // pred_fallthru
          _
      $region223: #{tpu_custom_call.1} parent=5 // pred_fallthru
        _
    $region6: #{tpu_custom_call.1} parent=1 // loop_footer
      %s23 = sadd.s32 1, %s19
    $region7: #{tpu_custom_call.1} parent=1 // loop_footer_branch
      %18 = sbr.rel target = $region3
    $region8: #{tpu_custom_call.1} parent=1 // loop_exit
      _
    %2305 = vsyncpa [#allocation7], 1
    %s2306 = scalar_lea.sflag [#allocation7], 1
    %2307 = vsyncpa %s2306, 1
    %2308 = vsyncpa [#allocation8], 1
    %s2309 = scalar_lea.sflag [#allocation8], 1
    %2310 = vsyncpa %s2309, 1
  %2311 = vsyncmov [#allocation3]
  %s2312 = vpop.sfrf %2311
  %p2313 = scmp.eq.s32.totalorder %s2312, 0
  %p2314 = pneg %p2313
  %2316 = shalt.err (%p2314)
  %s2317 = scalar_lea.sflag [#allocation3], 1
  %2318 = vsyncmov %s2317
  %s2319 = vpop.sfrf %2318
  %p2320 = scmp.eq.s32.totalorder %s2319, 0
  %p2321 = pneg %p2320
  %2323 = shalt.err (%p2321)

</llo_original>
